<compile_context>
chip_gen: v5e
topology: v5e:2x2
jax: 0.10.0
libtpu: 0.0.40
codegen_flags: <defaults>
</compile_context>

<pallas_src>
import math

import jax
import jax.numpy as jnp
from jax import lax
from jax.experimental import pallas as pl
from jax.experimental.pallas import tpu as pltpu


# MXU-native input precision for all matmuls (f32 accumulation via
# preferred_element_type).  Set to jnp.float32 to recover exact f32 matmuls.
MXU_DTYPE = jnp.bfloat16

# Row tile for the token-parallel kernels.  256 rows keeps the double-buffered
# working set of every linear / norm kernel far below the 32 MiB scoped-VMEM
# default even on v7x (64 MiB physical); v5e/v6e (128 MiB) have ample slack.
ROW_TILE = 256


def _row_tile(m, tile=ROW_TILE):
    # Block second-minor dim must be a multiple of 8 OR equal the full dim.
    return m if m <= tile else tile


# ------------------------------------------------------------------
# Pallas kernels
# ------------------------------------------------------------------

def _matmul_bias_kernel(x_ref, w_ref, b_ref, o_ref):
    o_ref[...] = (jnp.dot(x_ref[...], w_ref[...],
                          preferred_element_type=jnp.float32) + b_ref[...])


def _matmul_kernel(x_ref, w_ref, o_ref):
    o_ref[...] = jnp.dot(x_ref[...], w_ref[...],
                         preferred_element_type=jnp.float32)


def pallas_linear(x, w, b=None):
    """out = x @ w (+ b) ; x:(M,K)  w:(K,N)  b:(N,)|None.

    Row-tiled (software-pipelined over tokens), bf16 MXU inputs with f32
    accumulation.  Channel dims are small, so full K / N per tile."""
    M, K = x.shape
    Kw, N = w.shape
    assert K == Kw
    tm = _row_tile(M)
    grid = (pl.cdiv(M, tm),)
    x_spec = pl.BlockSpec((tm, K), lambda i: (i, 0))
    w_spec = pl.BlockSpec((K, N), lambda i: (0, 0))
    o_spec = pl.BlockSpec((tm, N), lambda i: (i, 0))
    cparams = pltpu.CompilerParams(dimension_semantics=("parallel",))
    xd = x.astype(MXU_DTYPE)
    wd = w.astype(MXU_DTYPE)
    if b is None:
        return pl.pallas_call(
            _matmul_kernel,
            out_shape=jax.ShapeDtypeStruct((M, N), jnp.float32),
            grid=grid,
            in_specs=[x_spec, w_spec],
            out_specs=o_spec,
            compiler_params=cparams,
        )(xd, wd)
    b2 = b.reshape(1, N).astype(jnp.float32)
    return pl.pallas_call(
        _matmul_bias_kernel,
        out_shape=jax.ShapeDtypeStruct((M, N), jnp.float32),
        grid=grid,
        in_specs=[x_spec, w_spec, pl.BlockSpec((1, N), lambda i: (0, 0))],
        out_specs=o_spec,
        compiler_params=cparams,
    )(xd, wd, b2)


def pallas_layernorm(x, w, b, eps=1e-5):
    """LayerNorm over last dim ; x:(M,C).  Row-tiled, parallel grid."""
    M, C = x.shape
    tm = _row_tile(M, 512)
    w2 = w.reshape(1, C).astype(jnp.float32)
    b2 = b.reshape(1, C).astype(jnp.float32)

    def kernel(x_ref, w_ref, b_ref, o_ref):
        xv = x_ref[...]
        mu = jnp.mean(xv, axis=-1, keepdims=True)
        xc = xv - mu
        var = jnp.mean(xc * xc, axis=-1, keepdims=True)
        o_ref[...] = xc * lax.rsqrt(var + eps) * w_ref[...] + b_ref[...]

    return pl.pallas_call(
        kernel,
        out_shape=jax.ShapeDtypeStruct((M, C), jnp.float32),
        grid=(pl.cdiv(M, tm),),
        in_specs=[pl.BlockSpec((tm, C), lambda i: (i, 0)),
                  pl.BlockSpec((1, C), lambda i: (0, 0)),
                  pl.BlockSpec((1, C), lambda i: (0, 0))],
        out_specs=pl.BlockSpec((tm, C), lambda i: (i, 0)),
        compiler_params=pltpu.CompilerParams(
            dimension_semantics=("parallel",)),
    )(x.astype(jnp.float32), w2, b2)


def pallas_rmsnorm(x, w, eps=1e-5):
    """RMSNorm over last dim (first block of a stage: residual is the input)."""
    M, C = x.shape
    tm = _row_tile(M, 512)
    w2 = w.reshape(1, C).astype(jnp.float32)

    def kernel(x_ref, w_ref, o_ref):
        xv = x_ref[...]
        ms = jnp.mean(xv * xv, axis=-1, keepdims=True)
        o_ref[...] = xv * lax.rsqrt(ms + eps) * w_ref[...]

    return pl.pallas_call(
        kernel,
        out_shape=jax.ShapeDtypeStruct((M, C), jnp.float32),
        grid=(pl.cdiv(M, tm),),
        in_specs=[pl.BlockSpec((tm, C), lambda i: (i, 0)),
                  pl.BlockSpec((1, C), lambda i: (0, 0))],
        out_specs=pl.BlockSpec((tm, C), lambda i: (i, 0)),
        compiler_params=pltpu.CompilerParams(
            dimension_semantics=("parallel",)),
    )(x.astype(jnp.float32), w2)


def pallas_rmsnorm_add(h, r, w, eps=1e-5):
    """Fused add + RMSNorm (prenorm): residual = h + r ; out = rmsnorm(res)*w.
       Returns (normed, residual).  Row-tiled, parallel grid."""
    M, C = h.shape
    tm = _row_tile(M, 512)
    w2 = w.reshape(1, C).astype(jnp.float32)

    def kernel(h_ref, r_ref, w_ref, o_ref, res_ref):
        res = h_ref[...] + r_ref[...]
        res_ref[...] = res
        ms = jnp.mean(res * res, axis=-1, keepdims=True)
        o_ref[...] = res * lax.rsqrt(ms + eps) * w_ref[...]

    return pl.pallas_call(
        kernel,
        out_shape=(jax.ShapeDtypeStruct((M, C), jnp.float32),
                   jax.ShapeDtypeStruct((M, C), jnp.float32)),
        grid=(pl.cdiv(M, tm),),
        in_specs=[pl.BlockSpec((tm, C), lambda i: (i, 0)),
                  pl.BlockSpec((tm, C), lambda i: (i, 0)),
                  pl.BlockSpec((1, C), lambda i: (0, 0))],
        out_specs=(pl.BlockSpec((tm, C), lambda i: (i, 0)),
                   pl.BlockSpec((tm, C), lambda i: (i, 0))),
        compiler_params=pltpu.CompilerParams(
            dimension_semantics=("parallel",)),
    )(h.astype(jnp.float32), r.astype(jnp.float32), w2)


def pallas_causal_conv_silu(x, w, b):
    """Depthwise causal conv1d (kernel Kc, left pad Kc-1, keep first L) + SiLU.
       x:(Bc,L,Din)  w:(Kc,Din)  b:(Din,).
       Causal zero pad is built inside the kernel (no padded HBM copy)."""
    Bc, L, Din = x.shape
    Kc = w.shape[0]
    b2 = b.reshape(1, Din).astype(jnp.float32)

    def kernel(x_ref, w_ref, b_ref, o_ref):
        xv = x_ref[0]                                            # (L, Din)
        xp = jnp.concatenate(
            [jnp.zeros((Kc - 1, Din), jnp.float32), xv], axis=0)  # (L+Kc-1,Din)
        acc = jnp.zeros((L, Din), jnp.float32) + b_ref[...]
        for k in range(Kc):                                      # static taps
            acc = acc + xp[k:k + L, :] * w_ref[pl.ds(k, 1), :]
        o_ref[0] = acc * (1.0 / (1.0 + jnp.exp(-acc)))           # SiLU

    return pl.pallas_call(
        kernel,
        out_shape=jax.ShapeDtypeStruct((Bc, L, Din), jnp.float32),
        grid=(Bc,),
        in_specs=[pl.BlockSpec((1, L, Din), lambda bb: (bb, 0, 0)),
                  pl.BlockSpec((Kc, Din), lambda bb: (0, 0)),
                  pl.BlockSpec((1, Din), lambda bb: (0, 0))],
        out_specs=pl.BlockSpec((1, L, Din), lambda bb: (bb, 0, 0)),
        compiler_params=pltpu.CompilerParams(
            dimension_semantics=("parallel",)),   # batch items independent
    )(x.astype(jnp.float32), w.astype(jnp.float32), b2)


def pallas_selective_scan(u, dt_raw, Bm, Cm, z, A_t, D, dt_bias):
    """Mamba selective scan with softplus(dt+bias), D skip and SiLU(z) gate.
       u, dt_raw, z : (Bc,L,Din)
       Bm, Cm       : (Bc,L,S)   (row-major: lane-dense (1,S) rows per step)
       A_t          : (S,Din)    (= (-exp(A_log)).T)
       D, dt_bias   : (Din,)
       returns y    : (Bc,L,Din).

    Serial critical path per step is only h = dA*h + dBu; everything
    elementwise (softplus, delta*u, SiLU gate, D skip) is hoisted and
    vectorized over the whole (L,Din) block, exp / outer-product / the C·h
    MXU dot are off the recurrence dependency chain and overlap via unroll."""
    Bc, L, Din = u.shape
    S = A_t.shape[0]
    D2 = D.reshape(1, Din).astype(jnp.float32)
    dtb2 = dt_bias.reshape(1, Din).astype(jnp.float32)
    unroll = True if L <= 32 else 8

    def kernel(u_ref, dt_ref, b_ref, c_ref, z_ref, a_ref, d_ref, dtb_ref,
               y_ref, delta_sc, du_sc, bT_sc):
        u_all = u_ref[0]                                  # (L, Din)
        xdt = dt_ref[0] + dtb_ref[...]                    # (L, Din)
        # numerically-stable softplus, hoisted out of the time loop
        delta = jnp.maximum(xdt, 0.0) + jnp.log(1.0 + jnp.exp(-jnp.abs(xdt)))
        delta_sc[...] = delta
        du_sc[...] = delta * u_all                        # delta * u, hoisted
        # one XLU transpose per block so the per-step B read is a column of a
        # small VMEM scratch (off the critical chain), not an HBM transpose.
        bT_sc[...] = jnp.transpose(b_ref[0])              # (S, L)
        A = a_ref[...]                                    # (S, Din)

        def body(t, h):
            dlt = delta_sc[pl.ds(t, 1), :]                # (1, Din)
            dut = du_sc[pl.ds(t, 1), :]                   # (1, Din)
            bt = bT_sc[:, pl.ds(t, 1)]                    # (S, 1)
            ct = c_ref[0, pl.ds(t, 1), :]                 # (1, S) lane-dense
            dA = jnp.exp(dlt * A)                         # (S, Din) (EUP)
            h = dA * h + bt * dut                         # recurrence (VALU)
            y_ref[0, pl.ds(t, 1), :] = jnp.dot(
                ct, h, preferred_element_type=jnp.float32)  # (1, Din) via MXU
            return h

        h0 = jnp.zeros((S, Din), jnp.float32)             # h lives in vregs
        lax.fori_loop(0, L, body, h0, unroll=unroll)

        # epilogue: D skip + SiLU(z) gate, vectorized over the whole block
        zv = z_ref[0]
        gate = zv * (1.0 / (1.0 + jnp.exp(-zv)))
        y_ref[0] = (y_ref[0] + d_ref[...] * u_all) * gate

    # NOTE: at small widths (Din=64) lanes are half-filled; packing the
    # fwd/bwd directions onto the lane axis (Din*2 >= 128) is a further win.
    return pl.pallas_call(
        kernel,
        out_shape=jax.ShapeDtypeStruct((Bc, L, Din), jnp.float32),
        grid=(Bc,),
        in_specs=[pl.BlockSpec((1, L, Din), lambda bb: (bb, 0, 0)),   # u
                  pl.BlockSpec((1, L, Din), lambda bb: (bb, 0, 0)),   # dt raw
                  pl.BlockSpec((1, L, S), lambda bb: (bb, 0, 0)),     # B
                  pl.BlockSpec((1, L, S), lambda bb: (bb, 0, 0)),     # C
                  pl.BlockSpec((1, L, Din), lambda bb: (bb, 0, 0)),   # z
                  pl.BlockSpec((S, Din), lambda bb: (0, 0)),          # A^T
                  pl.BlockSpec((1, Din), lambda bb: (0, 0)),          # D
                  pl.BlockSpec((1, Din), lambda bb: (0, 0))],         # dt bias
        out_specs=pl.BlockSpec((1, L, Din), lambda bb: (bb, 0, 0)),
        scratch_shapes=[pltpu.VMEM((L, Din), jnp.float32),   # delta
                        pltpu.VMEM((L, Din), jnp.float32),   # delta*u
                        pltpu.VMEM((S, L), jnp.float32)],    # B^T
        compiler_params=pltpu.CompilerParams(
            dimension_semantics=("parallel",)),   # batch items independent
    )(u.astype(jnp.float32), dt_raw.astype(jnp.float32),
      Bm.astype(jnp.float32), Cm.astype(jnp.float32),
      z.astype(jnp.float32), A_t.astype(jnp.float32), D2, dtb2)


def pallas_meanpool(x):
    """Mean over the sequence axis ; x:(B,L,C) -> (B,C)."""
    B, L, C = x.shape

    def kernel(x_ref, o_ref):
        o_ref[...] = jnp.mean(x_ref[...], axis=1)

    return pl.pallas_call(
        kernel,
        out_shape=jax.ShapeDtypeStruct((B, C), jnp.float32),
        grid=(1,),
        in_specs=[pl.BlockSpec((B, L, C), lambda i: (0, 0, 0))],
        out_specs=pl.BlockSpec((B, C), lambda i: (0, 0)),
    )(x.astype(jnp.float32))


# ------------------------------------------------------------------
# Model glue (plain JAX: reshapes, slicing, flips, param plumbing)
# ------------------------------------------------------------------

def mamba_bidirectional(p, normed):
    """Shared-weight bidirectional Mamba mixer:
       out = mixer(x) + flip(mixer(flip(x))).
       in_proj / out_proj are token-wise (flip-equivariant) so they run once;
       only conv + selective scan run on the doubled (fwd, bwd) batch."""
    B, L, dm = normed.shape
    d_inner, S = p["d_inner"], p["d_state"]

    xz = pallas_linear(normed.reshape(B * L, dm), p["in_proj_w"])
    xz = xz.reshape(B, L, 2 * d_inner)
    xm, z = xz[..., :d_inner], xz[..., d_inner:]

    xm_fb = jnp.concatenate([xm, jnp.flip(xm, axis=1)], axis=0)   # (2B,L,Din)
    z_fb = jnp.concatenate([z, jnp.flip(z, axis=1)], axis=0)

    xc = pallas_causal_conv_silu(xm_fb, p["conv_w"], p["conv_b"])

    # x_proj with dt_proj folded in: one matmul emits (dt_full | B | C)
    proj = pallas_linear(xc.reshape(2 * B * L, d_inner), p["xdt_proj_w"])
    dt_full = proj[:, :d_inner].reshape(2 * B, L, d_inner)
    Bm = proj[:, d_inner:d_inner + S].reshape(2 * B, L, S)
    Cm = proj[:, d_inner + S:].reshape(2 * B, L, S)

    y = pallas_selective_scan(xc, dt_full, Bm, Cm, z_fb,
                              p["A_t"], p["D"], p["dt_proj_b"])
    y_f, y_b = y[:B], y[B:]
    y_sum = (y_f + jnp.flip(y_b, axis=1)).reshape(B * L, d_inner)

    out = pallas_linear(y_sum, p["out_proj_w"])
    return out.reshape(B, L, dm)


def block_forward(p, hidden, residual):
    """Block: fused add + RMSNorm (prenorm) + bidirectional shared mixer.
       DropPath == identity at inference."""
    B, L, C = hidden.shape
    h2 = hidden.reshape(B * L, C)
    if residual is None:
        new_res = hidden                              # residual := input
        normed = pallas_rmsnorm(h2, p["norm_w"])
    else:
        normed, res2 = pallas_rmsnorm_add(h2, residual.reshape(B * L, C),
                                          p["norm_w"])
        new_res = res2.reshape(B, L, C)
    normed = normed.reshape(B, L, C)
    hidden_out = mamba_bidirectional(p["mixer"], normed)
    return hidden_out, new_res


def patch_embed_forward(p, x):
    """x:(B,Cin,H,W) NCHW -> (B, Hp*Wp, embed_dim)."""
    B, Cin, H, W = x.shape
    ps = p["patch"]
    Hp, Wp = H // ps, W // ps
    xp = x.reshape(B, Cin, Hp, ps, Wp, ps)
    xp = jnp.transpose(xp, (0, 2, 4, 1, 3, 5)).reshape(B, Hp * Wp,
                                                       Cin * ps * ps)
    y = pallas_linear(xp.reshape(B * Hp * Wp, Cin * ps * ps),
                      p["proj_w"], p["proj_b"])
    y = pallas_layernorm(y, p["norm_w"], p["norm_b"])
    return y.reshape(B, Hp * Wp, -1)


def patch_merging_forward(p, x, H, W):
    """2x2 patch merging: (B, H*W, C) -> (B, H*W/4, 2C)."""
    B, L, C = x.shape
    xv = x.reshape(B, H, W, C)
    x0 = xv[:, 0::2, 0::2, :]
    x1 = xv[:, 1::2, 0::2, :]
    x2 = xv[:, 0::2, 1::2, :]
    x3 = xv[:, 1::2, 1::2, :]
    xm = jnp.concatenate([x0, x1, x2, x3], axis=-1).reshape(B, -1, 4 * C)
    B2, L2, C4 = xm.shape
    xn = pallas_layernorm(xm.reshape(B2 * L2, C4), p["norm_w"], p["norm_b"])
    xr = pallas_linear(xn, p["red_w"])     # bias=False
    return xr.reshape(B2, L2, 2 * C)


def hierarchical_vim_forward(params, x):
    x = patch_embed_forward(params["patch_embed"], x)
    for i, layer in enumerate(params["layers"]):
        residual = None
        for blk in layer["blocks"]:
            x, residual = block_forward(blk, x, residual)
        if layer["downsample"] is not None:
            H, W = params["resolutions"][i]
            x = patch_merging_forward(layer["downsample"], x, H, W)
    B, L, C = x.shape
    xn = pallas_layernorm(x.reshape(B * L, C), params["norm_w"],
                          params["norm_b"]).reshape(B, L, C)
    feat = pallas_meanpool(xn)                         # AdaptiveAvgPool1d(1)
    logits = pallas_linear(feat, params["head_w"], params["head_b"])
    return logits


# ------------------------------------------------------------------
# Deterministic parameter initialization (synthetic, no checkpoint)
# ------------------------------------------------------------------

def _normal(key, shape, std=0.02):
    return jax.random.normal(key, shape, dtype=jnp.float32) * std


def init_mamba_params(key, d_model, d_state=16, d_conv=4, expand=2):
    d_inner = expand * d_model
    dt_rank = math.ceil(d_model / 16)
    ks = jax.random.split(key, 6)
    A_log = jnp.log(jnp.broadcast_to(
        jnp.arange(1, d_state + 1, dtype=jnp.float32), (d_inner, d_state)))
    x_proj_w = _normal(ks[2], (d_inner, dt_rank + 2 * d_state))
    dt_proj_w = _normal(ks[3], (dt_rank, d_inner))
    # Fold dt_proj into x_proj: one matmul now emits (dt_full | B | C); the
    # K=dt_rank matmul disappears (algebraically identical, dt bias is applied
    # inside the scan via softplus(dt + bias)).
    xdt_proj_w = jnp.concatenate(
        [x_proj_w[:, :dt_rank] @ dt_proj_w, x_proj_w[:, dt_rank:]], axis=1)
    return {
        "d_inner": d_inner, "d_state": d_state, "dt_rank": dt_rank,
        "in_proj_w": _normal(ks[0], (d_model, 2 * d_inner)),
        "conv_w": _normal(ks[1], (d_conv, d_inner)),
        "conv_b": jnp.zeros((d_inner,), jnp.float32),
        "xdt_proj_w": xdt_proj_w,
        # inverse-softplus of 0.01 (canonical Mamba dt-bias style init)
        "dt_proj_b": jnp.full((d_inner,),
                              float(math.log(math.expm1(0.01))), jnp.float32),
        "A_t": -jnp.exp(A_log).T,                      # (d_state, d_inner)
        "D": jnp.ones((d_inner,), jnp.float32),
        "out_proj_w": _normal(ks[4], (d_inner, d_model)),
    }


def init_params(key, img_size=16, patch_size=4, in_chans=3, num_classes=10,
                embed_dim=32, depths=(1, 1)):
    num_layers = len(depths)
    num_features = int(embed_dim * 2 ** (num_layers - 1))
    Hp = Wp = img_size // patch_size

    keys = jax.random.split(key, 64)
    kidx = 0

    def nk():
        nonlocal kidx
        k = keys[kidx]
        kidx += 1
        return k

    params = {
        "patch_embed": {
            "patch": patch_size,
            "proj_w": _normal(nk(), (in_chans * patch_size * patch_size,
                                     embed_dim)),
            "proj_b": jnp.zeros((embed_dim,), jnp.float32),
            "norm_w": jnp.ones((embed_dim,), jnp.float32),
            "norm_b": jnp.zeros((embed_dim,), jnp.float32),
        },
        "resolutions": [(Hp // (2 ** i), Wp // (2 ** i))
                        for i in range(num_layers)],
        "layers": [],
        "norm_w": jnp.ones((num_features,), jnp.float32),
        "norm_b": jnp.zeros((num_features,), jnp.float32),
        "head_w": _normal(nk(), (num_features, num_classes)),
        "head_b": jnp.zeros((num_classes,), jnp.float32),
    }

    for i_layer in range(num_layers):
        dim = int(embed_dim * 2 ** i_layer)
        blocks = []
        for _ in range(depths[i_layer]):
            blocks.append({
                "norm_w": jnp.ones((dim,), jnp.float32),   # RMSNorm weight
                "mixer": init_mamba_params(nk(), dim),
            })
        if i_layer < num_layers - 1:
            downsample = {
                "norm_w": jnp.ones((4 * dim,), jnp.float32),
                "norm_b": jnp.zeros((4 * dim,), jnp.float32),
                "red_w": _normal(nk(), (4 * dim, 2 * dim)),
            }
        else:
            downsample = None
        params["layers"].append({"blocks": blocks, "downsample": downsample})

    return params


# ------------------------------------------------------------------
# Main
# ------------------------------------------------------------------

if __name__ == "__main__":
    key = jax.random.PRNGKey(0)
    k_param, k_input = jax.random.split(key)

    # small HierarchicalVim: img 16, patch 4, embed 32, depths (1,1), 10 classes
    params = init_params(k_param, img_size=16, patch_size=4, in_chans=3,
                         num_classes=10, embed_dim=32, depths=(1, 1))

    x = jax.random.normal(k_input, (2, 3, 16, 16), dtype=jnp.float32)  # NCHW

    @jax.jit
    def run(inp):
        return hierarchical_vim_forward(params, inp)

    logits = jax.block_until_ready(run(x))

    assert logits.shape == (2, 10), logits.shape
    assert bool(jnp.all(jnp.isfinite(logits)))
    print("KERNEL_OK")
</pallas_src>

<mosaic_0001>
module attributes {stable_mosaic.version = 11 : i64} {
  func.func @_matmul_bias_kernel(%arg0: i32, %arg1: memref<32x48xbf16, #tpu.memory_space<vmem>>, %arg2: memref<48x32xbf16, #tpu.memory_space<vmem>>, %arg3: memref<1x32xf32, #tpu.memory_space<vmem>>, %arg4: memref<32x32xf32, #tpu.memory_space<vmem>>) attributes {dimension_semantics = [#tpu.dimension_semantics<parallel>], iteration_bounds = array<i64: 1>, scalar_prefetch = 0 : i64, scratch_operands = 0 : i64, tpu.core_type = #tpu.core_type<tc>, window_params = [{transform_indices = @transform_0, window_bounds = array<i64: 32, 48>}, {pipeline_mode = #tpu.pipeline_mode<synchronous>, transform_indices = @transform_1, window_bounds = array<i64: 48, 32>}, {pipeline_mode = #tpu.pipeline_mode<synchronous>, transform_indices = @transform_2, window_bounds = array<i64: 1, 32>}, {transform_indices = @transform_3, window_bounds = array<i64: 32, 32>}]} {
    %c0 = arith.constant 0 : index
    %c0_0 = arith.constant 0 : index
    %0 = vector.load %arg1[%c0, %c0_0] : memref<32x48xbf16, #tpu.memory_space<vmem>>, vector<32x48xbf16>
    %c0_1 = arith.constant 0 : index
    %c0_2 = arith.constant 0 : index
    %1 = vector.load %arg2[%c0_1, %c0_2] : memref<48x32xbf16, #tpu.memory_space<vmem>>, vector<48x32xbf16>
    %cst = arith.constant dense<0.000000e+00> : vector<32x32xf32>
    %2 = tpu.matmul %0, %1, %cst {dimension_numbers = #tpu.dot_dimension_numbers<[1], [0], [0], [1], [0, 0, 1, 1], [], []>} : vector<32x48xbf16>, vector<48x32xbf16>, vector<32x32xf32> -> vector<32x32xf32>
    %c0_3 = arith.constant 0 : index
    %c0_4 = arith.constant 0 : index
    %3 = vector.load %arg3[%c0_3, %c0_4] : memref<1x32xf32, #tpu.memory_space<vmem>>, vector<1x32xf32>
    %4 = vector.broadcast %3 : vector<1x32xf32> to vector<32x32xf32>
    %5 = arith.addf %2, %4 : vector<32x32xf32>
    %c0_5 = arith.constant 0 : index
    %c0_6 = arith.constant 0 : index
    %6 = vector.load %arg4[%c0_5, %c0_6] : memref<32x32xf32, #tpu.memory_space<vmem>>, vector<32x32xf32>
    tpu.vector_store %arg4[%c0_5, %c0_6], %5 {strides = array<i32>} : memref<32x32xf32, #tpu.memory_space<vmem>>, vector<32x32xf32>,
    return
  }
  func.func @transform_0(%arg0: i32) -> (i32, i32) {
    %c0_i32 = arith.constant 0 : i32
    %c0_i32_0 = arith.constant 0 : i32
    return %arg0, %c0_i32 : i32, i32
  }
  func.func @transform_1(%arg0: i32) -> (i32, i32) {
    %c0_i32 = arith.constant 0 : i32
    %c0_i32_0 = arith.constant 0 : i32
    %c0_i32_1 = arith.constant 0 : i32
    return %c0_i32, %c0_i32_0 : i32, i32
  }
  func.func @transform_2(%arg0: i32) -> (i32, i32) {
    %c0_i32 = arith.constant 0 : i32
    %c0_i32_0 = arith.constant 0 : i32
    %c0_i32_1 = arith.constant 0 : i32
    return %c0_i32, %c0_i32_0 : i32, i32
  }
  func.func @transform_3(%arg0: i32) -> (i32, i32) {
    %c0_i32 = arith.constant 0 : i32
    %c0_i32_0 = arith.constant 0 : i32
    return %arg0, %c0_i32 : i32, i32
  }
}

module attributes {stable_mosaic.version = 11 : i64} {
  func.func @kernel(%arg0: i32, %arg1: memref<32x32xf32, #tpu.memory_space<vmem>>, %arg2: memref<1x32xf32, #tpu.memory_space<vmem>>, %arg3: memref<1x32xf32, #tpu.memory_space<vmem>>, %arg4: memref<32x32xf32, #tpu.memory_space<vmem>>) attributes {dimension_semantics = [#tpu.dimension_semantics<parallel>], iteration_bounds = array<i64: 1>, scalar_prefetch = 0 : i64, scratch_operands = 0 : i64, tpu.core_type = #tpu.core_type<tc>, window_params = [{transform_indices = @transform_0, window_bounds = array<i64: 32, 32>}, {pipeline_mode = #tpu.pipeline_mode<synchronous>, transform_indices = @transform_1, window_bounds = array<i64: 1, 32>}, {pipeline_mode = #tpu.pipeline_mode<synchronous>, transform_indices = @transform_2, window_bounds = array<i64: 1, 32>}, {transform_indices = @transform_3, window_bounds = array<i64: 32, 32>}]} {
    %c0 = arith.constant 0 : index
    %c0_0 = arith.constant 0 : index
    %0 = vector.load %arg1[%c0, %c0_0] : memref<32x32xf32, #tpu.memory_space<vmem>>, vector<32x32xf32>
    %cst = arith.constant dense<0.000000e+00> : vector<32xf32>
    %1 = vector.multi_reduction <add>, %0, %cst [1] : vector<32x32xf32> to vector<32xf32>
    %2 = vector.shape_cast %1 : vector<32xf32> to vector<32x1xf32>
    %cst_1 = arith.constant 3.200000e+01 : f32
    %3 = vector.broadcast %cst_1 : f32 to vector<32x1xf32>
    %4 = arith.divf %2, %3 : vector<32x1xf32>
    %5 = vector.broadcast %4 : vector<32x1xf32> to vector<32x32xf32>
    %6 = arith.subf %0, %5 : vector<32x32xf32>
    %7 = arith.mulf %6, %6 : vector<32x32xf32>
    %cst_2 = arith.constant dense<0.000000e+00> : vector<32xf32>
    %8 = vector.multi_reduction <add>, %7, %cst_2 [1] : vector<32x32xf32> to vector<32xf32>
    %9 = vector.shape_cast %8 : vector<32xf32> to vector<32x1xf32>
    %cst_3 = arith.constant 3.200000e+01 : f32
    %10 = vector.broadcast %cst_3 : f32 to vector<32x1xf32>
    %11 = arith.divf %9, %10 : vector<32x1xf32>
    %cst_4 = arith.constant 9.99999974E-6 : f32
    %12 = vector.broadcast %cst_4 : f32 to vector<32x1xf32>
    %13 = arith.addf %11, %12 : vector<32x1xf32>
    %14 = math.rsqrt %13 : vector<32x1xf32>
    %15 = vector.broadcast %14 : vector<32x1xf32> to vector<32x32xf32>
    %16 = arith.mulf %6, %15 : vector<32x32xf32>
    %c0_5 = arith.constant 0 : index
    %c0_6 = arith.constant 0 : index
    %17 = vector.load %arg2[%c0_5, %c0_6] : memref<1x32xf32, #tpu.memory_space<vmem>>, vector<1x32xf32>
    %18 = vector.broadcast %17 : vector<1x32xf32> to vector<32x32xf32>
    %19 = arith.mulf %16, %18 : vector<32x32xf32>
    %c0_7 = arith.constant 0 : index
    %c0_8 = arith.constant 0 : index
    %20 = vector.load %arg3[%c0_7, %c0_8] : memref<1x32xf32, #tpu.memory_space<vmem>>, vector<1x32xf32>
    %21 = vector.broadcast %20 : vector<1x32xf32> to vector<32x32xf32>
    %22 = arith.addf %19, %21 : vector<32x32xf32>
    %c0_9 = arith.constant 0 : index
    %c0_10 = arith.constant 0 : index
    %23 = vector.load %arg4[%c0_9, %c0_10] : memref<32x32xf32, #tpu.memory_space<vmem>>, vector<32x32xf32>
    tpu.vector_store %arg4[%c0_9, %c0_10], %22 {strides = array<i32>} : memref<32x32xf32, #tpu.memory_space<vmem>>, vector<32x32xf32>,
    return
  }
  func.func @transform_0(%arg0: i32) -> (i32, i32) {
    %c0_i32 = arith.constant 0 : i32
    %c0_i32_0 = arith.constant 0 : i32
    return %arg0, %c0_i32 : i32, i32
  }
  func.func @transform_1(%arg0: i32) -> (i32, i32) {
    %c0_i32 = arith.constant 0 : i32
    %c0_i32_0 = arith.constant 0 : i32
    %c0_i32_1 = arith.constant 0 : i32
    return %c0_i32, %c0_i32_0 : i32, i32
  }
  func.func @transform_2(%arg0: i32) -> (i32, i32) {
    %c0_i32 = arith.constant 0 : i32
    %c0_i32_0 = arith.constant 0 : i32
    %c0_i32_1 = arith.constant 0 : i32
    return %c0_i32, %c0_i32_0 : i32, i32
  }
  func.func @transform_3(%arg0: i32) -> (i32, i32) {
    %c0_i32 = arith.constant 0 : i32
    %c0_i32_0 = arith.constant 0 : i32
    return %arg0, %c0_i32 : i32, i32
  }
}

module attributes {stable_mosaic.version = 11 : i64} {
  func.func @kernel(%arg0: i32, %arg1: memref<32x32xf32, #tpu.memory_space<vmem>>, %arg2: memref<1x32xf32, #tpu.memory_space<vmem>>, %arg3: memref<32x32xf32, #tpu.memory_space<vmem>>) attributes {dimension_semantics = [#tpu.dimension_semantics<parallel>], iteration_bounds = array<i64: 1>, scalar_prefetch = 0 : i64, scratch_operands = 0 : i64, tpu.core_type = #tpu.core_type<tc>, window_params = [{transform_indices = @transform_0, window_bounds = array<i64: 32, 32>}, {pipeline_mode = #tpu.pipeline_mode<synchronous>, transform_indices = @transform_1, window_bounds = array<i64: 1, 32>}, {transform_indices = @transform_2, window_bounds = array<i64: 32, 32>}]} {
    %c0 = arith.constant 0 : index
    %c0_0 = arith.constant 0 : index
    %0 = vector.load %arg1[%c0, %c0_0] : memref<32x32xf32, #tpu.memory_space<vmem>>, vector<32x32xf32>
    %1 = arith.mulf %0, %0 : vector<32x32xf32>
    %cst = arith.constant dense<0.000000e+00> : vector<32xf32>
    %2 = vector.multi_reduction <add>, %1, %cst [1] : vector<32x32xf32> to vector<32xf32>
    %3 = vector.shape_cast %2 : vector<32xf32> to vector<32x1xf32>
    %cst_1 = arith.constant 3.200000e+01 : f32
    %4 = vector.broadcast %cst_1 : f32 to vector<32x1xf32>
    %5 = arith.divf %3, %4 : vector<32x1xf32>
    %cst_2 = arith.constant 9.99999974E-6 : f32
    %6 = vector.broadcast %cst_2 : f32 to vector<32x1xf32>
    %7 = arith.addf %5, %6 : vector<32x1xf32>
    %8 = math.rsqrt %7 : vector<32x1xf32>
    %9 = vector.broadcast %8 : vector<32x1xf32> to vector<32x32xf32>
    %10 = arith.mulf %0, %9 : vector<32x32xf32>
    %c0_3 = arith.constant 0 : index
    %c0_4 = arith.constant 0 : index
    %11 = vector.load %arg2[%c0_3, %c0_4] : memref<1x32xf32, #tpu.memory_space<vmem>>, vector<1x32xf32>
    %12 = vector.broadcast %11 : vector<1x32xf32> to vector<32x32xf32>
    %13 = arith.mulf %10, %12 : vector<32x32xf32>
    %c0_5 = arith.constant 0 : index
    %c0_6 = arith.constant 0 : index
    %14 = vector.load %arg3[%c0_5, %c0_6] : memref<32x32xf32, #tpu.memory_space<vmem>>, vector<32x32xf32>
    tpu.vector_store %arg3[%c0_5, %c0_6], %13 {strides = array<i32>} : memref<32x32xf32, #tpu.memory_space<vmem>>, vector<32x32xf32>,
    return
  }
  func.func @transform_0(%arg0: i32) -> (i32, i32) {
    %c0_i32 = arith.constant 0 : i32
    %c0_i32_0 = arith.constant 0 : i32
    return %arg0, %c0_i32 : i32, i32
  }
  func.func @transform_1(%arg0: i32) -> (i32, i32) {
    %c0_i32 = arith.constant 0 : i32
    %c0_i32_0 = arith.constant 0 : i32
    %c0_i32_1 = arith.constant 0 : i32
    return %c0_i32, %c0_i32_0 : i32, i32
  }
  func.func @transform_2(%arg0: i32) -> (i32, i32) {
    %c0_i32 = arith.constant 0 : i32
    %c0_i32_0 = arith.constant 0 : i32
    return %arg0, %c0_i32 : i32, i32
  }
}

module attributes {stable_mosaic.version = 11 : i64} {
  func.func @_matmul_kernel(%arg0: i32, %arg1: memref<32x32xbf16, #tpu.memory_space<vmem>>, %arg2: memref<32x128xbf16, #tpu.memory_space<vmem>>, %arg3: memref<32x128xf32, #tpu.memory_space<vmem>>) attributes {dimension_semantics = [#tpu.dimension_semantics<parallel>], iteration_bounds = array<i64: 1>, scalar_prefetch = 0 : i64, scratch_operands = 0 : i64, tpu.core_type = #tpu.core_type<tc>, window_params = [{transform_indices = @transform_0, window_bounds = array<i64: 32, 32>}, {pipeline_mode = #tpu.pipeline_mode<synchronous>, transform_indices = @transform_1, window_bounds = array<i64: 32, 128>}, {transform_indices = @transform_2, window_bounds = array<i64: 32, 128>}]} {
    %c0 = arith.constant 0 : index
    %c0_0 = arith.constant 0 : index
    %0 = vector.load %arg1[%c0, %c0_0] : memref<32x32xbf16, #tpu.memory_space<vmem>>, vector<32x32xbf16>
    %c0_1 = arith.constant 0 : index
    %c0_2 = arith.constant 0 : index
    %1 = vector.load %arg2[%c0_1, %c0_2] : memref<32x128xbf16, #tpu.memory_space<vmem>>, vector<32x128xbf16>
    %cst = arith.constant dense<0.000000e+00> : vector<32x128xf32>
    %2 = tpu.matmul %0, %1, %cst {dimension_numbers = #tpu.dot_dimension_numbers<[1], [0], [0], [1], [0, 0, 1, 1], [], []>} : vector<32x32xbf16>, vector<32x128xbf16>, vector<32x128xf32> -> vector<32x128xf32>
    %c0_3 = arith.constant 0 : index
    %c0_4 = arith.constant 0 : index
    %3 = vector.load %arg3[%c0_3, %c0_4] : memref<32x128xf32, #tpu.memory_space<vmem>>, vector<32x128xf32>
    tpu.vector_store %arg3[%c0_3, %c0_4], %2 {strides = array<i32>} : memref<32x128xf32, #tpu.memory_space<vmem>>, vector<32x128xf32>,
    return
  }
  func.func @transform_0(%arg0: i32) -> (i32, i32) {
    %c0_i32 = arith.constant 0 : i32
    %c0_i32_0 = arith.constant 0 : i32
    return %arg0, %c0_i32 : i32, i32
  }
  func.func @transform_1(%arg0: i32) -> (i32, i32) {
    %c0_i32 = arith.constant 0 : i32
    %c0_i32_0 = arith.constant 0 : i32
    %c0_i32_1 = arith.constant 0 : i32
    return %c0_i32, %c0_i32_0 : i32, i32
  }
  func.func @transform_2(%arg0: i32) -> (i32, i32) {
    %c0_i32 = arith.constant 0 : i32
    %c0_i32_0 = arith.constant 0 : i32
    return %arg0, %c0_i32 : i32, i32
  }
}

module attributes {stable_mosaic.version = 11 : i64} {
  func.func @kernel(%arg0: i32, %arg1: memref<1x16x64xf32, #tpu.memory_space<vmem>>, %arg2: memref<4x64xf32, #tpu.memory_space<vmem>>, %arg3: memref<1x64xf32, #tpu.memory_space<vmem>>, %arg4: memref<1x16x64xf32, #tpu.memory_space<vmem>>) attributes {dimension_semantics = [#tpu.dimension_semantics<parallel>], iteration_bounds = array<i64: 4>, scalar_prefetch = 0 : i64, scratch_operands = 0 : i64, tpu.core_type = #tpu.core_type<tc>, window_params = [{transform_indices = @transform_0, window_bounds = array<i64: 1, 16, 64>}, {pipeline_mode = #tpu.pipeline_mode<synchronous>, transform_indices = @transform_1, window_bounds = array<i64: 4, 64>}, {pipeline_mode = #tpu.pipeline_mode<synchronous>, transform_indices = @transform_2, window_bounds = array<i64: 1, 64>}, {transform_indices = @transform_3, window_bounds = array<i64: 1, 16, 64>}]} {
    %c0 = arith.constant 0 : index
    %c0_0 = arith.constant 0 : index
    %c0_1 = arith.constant 0 : index
    %0 = vector.load %arg1[%c0, %c0_0, %c0_1] : memref<1x16x64xf32, #tpu.memory_space<vmem>>, vector<1x16x64xf32>
    %1 = vector.shape_cast %0 : vector<1x16x64xf32> to vector<16x64xf32>
    %cst = arith.constant 0.000000e+00 : f32
    %2 = vector.broadcast %cst : f32 to vector<3x64xf32>
    %3 = tpu.concatenate %2, %1 in 0 : vector<3x64xf32>, vector<16x64xf32> -> vector<19x64xf32>
    %cst_2 = arith.constant 0.000000e+00 : f32
    %4 = vector.broadcast %cst_2 : f32 to vector<16x64xf32>
    %c0_3 = arith.constant 0 : index
    %c0_4 = arith.constant 0 : index
    %5 = vector.load %arg3[%c0_3, %c0_4] : memref<1x64xf32, #tpu.memory_space<vmem>>, vector<1x64xf32>
    %6 = vector.broadcast %5 : vector<1x64xf32> to vector<16x64xf32>
    %7 = arith.addf %4, %6 : vector<16x64xf32>
    %8 = vector.extract_strided_slice %3 {offsets = [0, 0], sizes = [16, 64], strides = [1, 1]} : vector<19x64xf32> to vector<16x64xf32>
    %c0_5 = arith.constant 0 : index
    %c0_6 = arith.constant 0 : index
    %9 = vector.load %arg2[%c0_5, %c0_6] : memref<4x64xf32, #tpu.memory_space<vmem>>, vector<1x64xf32>
    %10 = vector.broadcast %9 : vector<1x64xf32> to vector<16x64xf32>
    %11 = arith.mulf %8, %10 : vector<16x64xf32>
    %12 = arith.addf %7, %11 : vector<16x64xf32>
    %13 = vector.extract_strided_slice %3 {offsets = [1, 0], sizes = [16, 64], strides = [1, 1]} : vector<19x64xf32> to vector<16x64xf32>
    %c1 = arith.constant 1 : index
    %c0_7 = arith.constant 0 : index
    %14 = vector.load %arg2[%c1, %c0_7] : memref<4x64xf32, #tpu.memory_space<vmem>>, vector<1x64xf32>
    %15 = vector.broadcast %14 : vector<1x64xf32> to vector<16x64xf32>
    %16 = arith.mulf %13, %15 : vector<16x64xf32>
    %17 = arith.addf %12, %16 : vector<16x64xf32>
    %18 = vector.extract_strided_slice %3 {offsets = [2, 0], sizes = [16, 64], strides = [1, 1]} : vector<19x64xf32> to vector<16x64xf32>
    %c2 = arith.constant 2 : index
    %c0_8 = arith.constant 0 : index
    %19 = vector.load %arg2[%c2, %c0_8] : memref<4x64xf32, #tpu.memory_space<vmem>>, vector<1x64xf32>
    %20 = vector.broadcast %19 : vector<1x64xf32> to vector<16x64xf32>
    %21 = arith.mulf %18, %20 : vector<16x64xf32>
    %22 = arith.addf %17, %21 : vector<16x64xf32>
    %23 = vector.extract_strided_slice %3 {offsets = [3, 0], sizes = [16, 64], strides = [1, 1]} : vector<19x64xf32> to vector<16x64xf32>
    %c3 = arith.constant 3 : index
    %c0_9 = arith.constant 0 : index
    %24 = vector.load %arg2[%c3, %c0_9] : memref<4x64xf32, #tpu.memory_space<vmem>>, vector<1x64xf32>
    %25 = vector.broadcast %24 : vector<1x64xf32> to vector<16x64xf32>
    %26 = arith.mulf %23, %25 : vector<16x64xf32>
    %27 = arith.addf %22, %26 : vector<16x64xf32>
    %cst_10 = arith.constant 0.000000e+00 : f32
    %28 = vector.broadcast %cst_10 : f32 to vector<16x64xf32>
    %29 = arith.subf %28, %27 : vector<16x64xf32>
    %30 = math.exp %29 : vector<16x64xf32>
    %cst_11 = arith.constant 1.000000e+00 : f32
    %31 = vector.broadcast %cst_11 : f32 to vector<16x64xf32>
    %32 = arith.addf %31, %30 : vector<16x64xf32>
    %cst_12 = arith.constant 1.000000e+00 : f32
    %33 = vector.broadcast %cst_12 : f32 to vector<16x64xf32>
    %34 = arith.divf %33, %32 : vector<16x64xf32>
    %35 = arith.mulf %27, %34 : vector<16x64xf32>
    %c0_13 = arith.constant 0 : index
    %c0_14 = arith.constant 0 : index
    %c0_15 = arith.constant 0 : index
    %36 = vector.load %arg4[%c0_13, %c0_14, %c0_15] : memref<1x16x64xf32, #tpu.memory_space<vmem>>, vector<1x16x64xf32>
    %37 = vector.shape_cast %36 : vector<1x16x64xf32> to vector<16x64xf32>
    %38 = vector.shape_cast %35 : vector<16x64xf32> to vector<1x16x64xf32>
    tpu.vector_store %arg4[%c0_13, %c0_14, %c0_15], %38 {strides = array<i32>} : memref<1x16x64xf32, #tpu.memory_space<vmem>>, vector<1x16x64xf32>,
    return
  }
  func.func @transform_0(%arg0: i32) -> (i32, i32, i32) {
    %c0_i32 = arith.constant 0 : i32
    %c0_i32_0 = arith.constant 0 : i32
    %c0_i32_1 = arith.constant 0 : i32
    return %arg0, %c0_i32, %c0_i32_0 : i32, i32, i32
  }
  func.func @transform_1(%arg0: i32) -> (i32, i32) {
    %c0_i32 = arith.constant 0 : i32
    %c0_i32_0 = arith.constant 0 : i32
    %c0_i32_1 = arith.constant 0 : i32
    return %c0_i32, %c0_i32_0 : i32, i32
  }
  func.func @transform_2(%arg0: i32) -> (i32, i32) {
    %c0_i32 = arith.constant 0 : i32
    %c0_i32_0 = arith.constant 0 : i32
    %c0_i32_1 = arith.constant 0 : i32
    return %c0_i32, %c0_i32_0 : i32, i32
  }
  func.func @transform_3(%arg0: i32) -> (i32, i32, i32) {
    %c0_i32 = arith.constant 0 : i32
    %c0_i32_0 = arith.constant 0 : i32
    %c0_i32_1 = arith.constant 0 : i32
    return %arg0, %c0_i32, %c0_i32_0 : i32, i32, i32
  }
}

module attributes {stable_mosaic.version = 11 : i64} {
  func.func @_matmul_kernel(%arg0: i32, %arg1: memref<64x64xbf16, #tpu.memory_space<vmem>>, %arg2: memref<64x96xbf16, #tpu.memory_space<vmem>>, %arg3: memref<64x96xf32, #tpu.memory_space<vmem>>) attributes {dimension_semantics = [#tpu.dimension_semantics<parallel>], iteration_bounds = array<i64: 1>, scalar_prefetch = 0 : i64, scratch_operands = 0 : i64, tpu.core_type = #tpu.core_type<tc>, window_params = [{transform_indices = @transform_0, window_bounds = array<i64: 64, 64>}, {pipeline_mode = #tpu.pipeline_mode<synchronous>, transform_indices = @transform_1, window_bounds = array<i64: 64, 96>}, {transform_indices = @transform_2, window_bounds = array<i64: 64, 96>}]} {
    %c0 = arith.constant 0 : index
    %c0_0 = arith.constant 0 : index
    %0 = vector.load %arg1[%c0, %c0_0] : memref<64x64xbf16, #tpu.memory_space<vmem>>, vector<64x64xbf16>
    %c0_1 = arith.constant 0 : index
    %c0_2 = arith.constant 0 : index
    %1 = vector.load %arg2[%c0_1, %c0_2] : memref<64x96xbf16, #tpu.memory_space<vmem>>, vector<64x96xbf16>
    %cst = arith.constant dense<0.000000e+00> : vector<64x96xf32>
    %2 = tpu.matmul %0, %1, %cst {dimension_numbers = #tpu.dot_dimension_numbers<[1], [0], [0], [1], [0, 0, 1, 1], [], []>} : vector<64x64xbf16>, vector<64x96xbf16>, vector<64x96xf32> -> vector<64x96xf32>
    %c0_3 = arith.constant 0 : index
    %c0_4 = arith.constant 0 : index
    %3 = vector.load %arg3[%c0_3, %c0_4] : memref<64x96xf32, #tpu.memory_space<vmem>>, vector<64x96xf32>
    tpu.vector_store %arg3[%c0_3, %c0_4], %2 {strides = array<i32>} : memref<64x96xf32, #tpu.memory_space<vmem>>, vector<64x96xf32>,
    return
  }
  func.func @transform_0(%arg0: i32) -> (i32, i32) {
    %c0_i32 = arith.constant 0 : i32
    %c0_i32_0 = arith.constant 0 : i32
    return %arg0, %c0_i32 : i32, i32
  }
  func.func @transform_1(%arg0: i32) -> (i32, i32) {
    %c0_i32 = arith.constant 0 : i32
    %c0_i32_0 = arith.constant 0 : i32
    %c0_i32_1 = arith.constant 0 : i32
    return %c0_i32, %c0_i32_0 : i32, i32
  }
  func.func @transform_2(%arg0: i32) -> (i32, i32) {
    %c0_i32 = arith.constant 0 : i32
    %c0_i32_0 = arith.constant 0 : i32
    return %arg0, %c0_i32 : i32, i32
  }
}

module attributes {stable_mosaic.version = 11 : i64} {
  func.func @_matmul_kernel(%arg0: i32, %arg1: memref<32x64xbf16, #tpu.memory_space<vmem>>, %arg2: memref<64x32xbf16, #tpu.memory_space<vmem>>, %arg3: memref<32x32xf32, #tpu.memory_space<vmem>>) attributes {dimension_semantics = [#tpu.dimension_semantics<parallel>], iteration_bounds = array<i64: 1>, scalar_prefetch = 0 : i64, scratch_operands = 0 : i64, tpu.core_type = #tpu.core_type<tc>, window_params = [{transform_indices = @transform_0, window_bounds = array<i64: 32, 64>}, {pipeline_mode = #tpu.pipeline_mode<synchronous>, transform_indices = @transform_1, window_bounds = array<i64: 64, 32>}, {transform_indices = @transform_2, window_bounds = array<i64: 32, 32>}]} {
    %c0 = arith.constant 0 : index
    %c0_0 = arith.constant 0 : index
    %0 = vector.load %arg1[%c0, %c0_0] : memref<32x64xbf16, #tpu.memory_space<vmem>>, vector<32x64xbf16>
    %c0_1 = arith.constant 0 : index
    %c0_2 = arith.constant 0 : index
    %1 = vector.load %arg2[%c0_1, %c0_2] : memref<64x32xbf16, #tpu.memory_space<vmem>>, vector<64x32xbf16>
    %cst = arith.constant dense<0.000000e+00> : vector<32x32xf32>
    %2 = tpu.matmul %0, %1, %cst {dimension_numbers = #tpu.dot_dimension_numbers<[1], [0], [0], [1], [0, 0, 1, 1], [], []>} : vector<32x64xbf16>, vector<64x32xbf16>, vector<32x32xf32> -> vector<32x32xf32>
    %c0_3 = arith.constant 0 : index
    %c0_4 = arith.constant 0 : index
    %3 = vector.load %arg3[%c0_3, %c0_4] : memref<32x32xf32, #tpu.memory_space<vmem>>, vector<32x32xf32>
    tpu.vector_store %arg3[%c0_3, %c0_4], %2 {strides = array<i32>} : memref<32x32xf32, #tpu.memory_space<vmem>>, vector<32x32xf32>,
    return
  }
  func.func @transform_0(%arg0: i32) -> (i32, i32) {
    %c0_i32 = arith.constant 0 : i32
    %c0_i32_0 = arith.constant 0 : i32
    return %arg0, %c0_i32 : i32, i32
  }
  func.func @transform_1(%arg0: i32) -> (i32, i32) {
    %c0_i32 = arith.constant 0 : i32
    %c0_i32_0 = arith.constant 0 : i32
    %c0_i32_1 = arith.constant 0 : i32
    return %c0_i32, %c0_i32_0 : i32, i32
  }
  func.func @transform_2(%arg0: i32) -> (i32, i32) {
    %c0_i32 = arith.constant 0 : i32
    %c0_i32_0 = arith.constant 0 : i32
    return %arg0, %c0_i32 : i32, i32
  }
}

module attributes {stable_mosaic.version = 11 : i64} {
  func.func @kernel(%arg0: i32, %arg1: memref<1x16x64xf32, #tpu.memory_space<vmem>>, %arg2: memref<1x16x64xf32, #tpu.memory_space<vmem>>, %arg3: memref<1x16x16xf32, #tpu.memory_space<vmem>>, %arg4: memref<1x16x16xf32, #tpu.memory_space<vmem>>, %arg5: memref<1x16x64xf32, #tpu.memory_space<vmem>>, %arg6: memref<16x64xf32, #tpu.memory_space<vmem>>, %arg7: memref<1x64xf32, #tpu.memory_space<vmem>>, %arg8: memref<1x64xf32, #tpu.memory_space<vmem>>, %arg9: memref<1x16x64xf32, #tpu.memory_space<vmem>>, %arg10: memref<16x64xf32, #tpu.memory_space<vmem>>, %arg11: memref<16x64xf32, #tpu.memory_space<vmem>>, %arg12: memref<16x16xf32, #tpu.memory_space<vmem>>) attributes {dimension_semantics = [#tpu.dimension_semantics<parallel>], iteration_bounds = array<i64: 4>, scalar_prefetch = 0 : i64, scratch_operands = 3 : i64, tpu.core_type = #tpu.core_type<tc>, window_params = [{transform_indices = @transform_0, window_bounds = array<i64: 1, 16, 64>}, {transform_indices = @transform_1, window_bounds = array<i64: 1, 16, 64>}, {transform_indices = @transform_2, window_bounds = array<i64: 1, 16, 16>}, {transform_indices = @transform_3, window_bounds = array<i64: 1, 16, 16>}, {transform_indices = @transform_4, window_bounds = array<i64: 1, 16, 64>}, {pipeline_mode = #tpu.pipeline_mode<synchronous>, transform_indices = @transform_5, window_bounds = array<i64: 16, 64>}, {pipeline_mode = #tpu.pipeline_mode<synchronous>, transform_indices = @transform_6, window_bounds = array<i64: 1, 64>}, {pipeline_mode = #tpu.pipeline_mode<synchronous>, transform_indices = @transform_7, window_bounds = array<i64: 1, 64>}, {transform_indices = @transform_8, window_bounds = array<i64: 1, 16, 64>}]} {
    %c0 = arith.constant 0 : index
    %c0_0 = arith.constant 0 : index
    %c0_1 = arith.constant 0 : index
    %0 = vector.load %arg1[%c0, %c0_0, %c0_1] : memref<1x16x64xf32, #tpu.memory_space<vmem>>, vector<1x16x64xf32>
    %1 = vector.shape_cast %0 : vector<1x16x64xf32> to vector<16x64xf32>
    %c0_2 = arith.constant 0 : index
    %c0_3 = arith.constant 0 : index
    %c0_4 = arith.constant 0 : index
    %2 = vector.load %arg2[%c0_2, %c0_3, %c0_4] : memref<1x16x64xf32, #tpu.memory_space<vmem>>, vector<1x16x64xf32>
    %3 = vector.shape_cast %2 : vector<1x16x64xf32> to vector<16x64xf32>
    %c0_5 = arith.constant 0 : index
    %c0_6 = arith.constant 0 : index
    %4 = vector.load %arg8[%c0_5, %c0_6] : memref<1x64xf32, #tpu.memory_space<vmem>>, vector<1x64xf32>
    %5 = vector.broadcast %4 : vector<1x64xf32> to vector<16x64xf32>
    %6 = arith.addf %3, %5 : vector<16x64xf32>
    %cst = arith.constant 0.000000e+00 : f32
    %7 = vector.broadcast %cst : f32 to vector<16x64xf32>
    %8 = arith.maximumf %6, %7 : vector<16x64xf32>
    %9 = math.absf %6 : vector<16x64xf32>
    %cst_7 = arith.constant 0.000000e+00 : f32
    %10 = vector.broadcast %cst_7 : f32 to vector<16x64xf32>
    %11 = arith.subf %10, %9 : vector<16x64xf32>
    %12 = math.exp %11 : vector<16x64xf32>
    %cst_8 = arith.constant 1.000000e+00 : f32
    %13 = vector.broadcast %cst_8 : f32 to vector<16x64xf32>
    %14 = arith.addf %13, %12 : vector<16x64xf32>
    %15 = math.log %14 : vector<16x64xf32>
    %16 = arith.addf %8, %15 : vector<16x64xf32>
    %c0_9 = arith.constant 0 : index
    %c0_10 = arith.constant 0 : index
    %17 = vector.load %arg10[%c0_9, %c0_10] : memref<16x64xf32, #tpu.memory_space<vmem>>, vector<16x64xf32>
    tpu.vector_store %arg10[%c0_9, %c0_10], %16 {strides = array<i32>} : memref<16x64xf32, #tpu.memory_space<vmem>>, vector<16x64xf32>,
    %18 = arith.mulf %16, %1 : vector<16x64xf32>
    %c0_11 = arith.constant 0 : index
    %c0_12 = arith.constant 0 : index
    %19 = vector.load %arg11[%c0_11, %c0_12] : memref<16x64xf32, #tpu.memory_space<vmem>>, vector<16x64xf32>
    tpu.vector_store %arg11[%c0_11, %c0_12], %18 {strides = array<i32>} : memref<16x64xf32, #tpu.memory_space<vmem>>, vector<16x64xf32>,
    %c0_13 = arith.constant 0 : index
    %c0_14 = arith.constant 0 : index
    %c0_15 = arith.constant 0 : index
    %20 = vector.load %arg3[%c0_13, %c0_14, %c0_15] : memref<1x16x16xf32, #tpu.memory_space<vmem>>, vector<1x16x16xf32>
    %21 = vector.shape_cast %20 : vector<1x16x16xf32> to vector<16x16xf32>
    %22 = tpu.transpose %21, [1, 0] : vector<16x16xf32> -> vector<16x16xf32>
    %c0_16 = arith.constant 0 : index
    %c0_17 = arith.constant 0 : index
    %23 = vector.load %arg12[%c0_16, %c0_17] : memref<16x16xf32, #tpu.memory_space<vmem>>, vector<16x16xf32>
    tpu.vector_store %arg12[%c0_16, %c0_17], %22 {strides = array<i32>} : memref<16x16xf32, #tpu.memory_space<vmem>>, vector<16x16xf32>,
    %c0_18 = arith.constant 0 : index
    %c0_19 = arith.constant 0 : index
    %24 = vector.load %arg6[%c0_18, %c0_19] : memref<16x64xf32, #tpu.memory_space<vmem>>, vector<16x64xf32>
    %cst_20 = arith.constant 0.000000e+00 : f32
    %25 = vector.broadcast %cst_20 : f32 to vector<16x64xf32>
    %c0_i32 = arith.constant 0 : i32
    %26 = arith.index_cast %c0_i32 : i32 to index
    %c0_21 = arith.constant 0 : index
    %27 = vector.load %arg10[%26, %c0_21] : memref<16x64xf32, #tpu.memory_space<vmem>>, vector<1x64xf32>
    %28 = arith.index_cast %c0_i32 : i32 to index
    %c0_22 = arith.constant 0 : index
    %29 = vector.load %arg11[%28, %c0_22] : memref<16x64xf32, #tpu.memory_space<vmem>>, vector<1x64xf32>
    %c0_23 = arith.constant 0 : index
    %30 = arith.index_cast %c0_i32 : i32 to index
    %31 = vector.load %arg12[%c0_23, %30] : memref<16x16xf32, #tpu.memory_space<vmem>>, vector<16x1xf32>
    %c0_24 = arith.constant 0 : index
    %32 = arith.index_cast %c0_i32 : i32 to index
    %c0_25 = arith.constant 0 : index
    %33 = vector.load %arg4[%c0_24, %32, %c0_25] : memref<1x16x16xf32, #tpu.memory_space<vmem>>, vector<1x1x16xf32>
    %34 = vector.shape_cast %33 : vector<1x1x16xf32> to vector<1x16xf32>
    %35 = vector.broadcast %27 : vector<1x64xf32> to vector<16x64xf32>
    %36 = arith.mulf %35, %24 : vector<16x64xf32>
    %37 = math.exp %36 : vector<16x64xf32>
    %38 = arith.mulf %37, %25 : vector<16x64xf32>
    %39 = vector.broadcast %31 : vector<16x1xf32> to vector<16x64xf32>
    %40 = vector.broadcast %29 : vector<1x64xf32> to vector<16x64xf32>
    %41 = arith.mulf %39, %40 : vector<16x64xf32>
    %42 = arith.addf %38, %41 : vector<16x64xf32>
    %cst_26 = arith.constant dense<0.000000e+00> : vector<1x64xf32>
    %43 = tpu.matmul %34, %42, %cst_26 {dimension_numbers = #tpu.dot_dimension_numbers<[1], [0], [0], [1], [0, 0, 1, 1], [], []>} : vector<1x16xf32>, vector<16x64xf32>, vector<1x64xf32> -> vector<1x64xf32>
    %c0_27 = arith.constant 0 : index
    %44 = arith.index_cast %c0_i32 : i32 to index
    %c0_28 = arith.constant 0 : index
    %45 = vector.load %arg9[%c0_27, %44, %c0_28] : memref<1x16x64xf32, #tpu.memory_space<vmem>>, vector<1x1x64xf32>
    %46 = vector.shape_cast %45 : vector<1x1x64xf32> to vector<1x64xf32>
    %47 = vector.shape_cast %43 : vector<1x64xf32> to vector<1x1x64xf32>
    tpu.vector_store %arg9[%c0_27, %44, %c0_28], %47 {strides = array<i32>} : memref<1x16x64xf32, #tpu.memory_space<vmem>>, vector<1x1x64xf32>,
    %c1_i32 = arith.constant 1 : i32
    %48 = arith.index_cast %c1_i32 : i32 to index
    %c0_29 = arith.constant 0 : index
    %49 = vector.load %arg10[%48, %c0_29] : memref<16x64xf32, #tpu.memory_space<vmem>>, vector<1x64xf32>
    %50 = arith.index_cast %c1_i32 : i32 to index
    %c0_30 = arith.constant 0 : index
    %51 = vector.load %arg11[%50, %c0_30] : memref<16x64xf32, #tpu.memory_space<vmem>>, vector<1x64xf32>
    %c0_31 = arith.constant 0 : index
    %52 = arith.index_cast %c1_i32 : i32 to index
    %53 = vector.load %arg12[%c0_31, %52] : memref<16x16xf32, #tpu.memory_space<vmem>>, vector<16x1xf32>
    %c0_32 = arith.constant 0 : index
    %54 = arith.index_cast %c1_i32 : i32 to index
    %c0_33 = arith.constant 0 : index
    %55 = vector.load %arg4[%c0_32, %54, %c0_33] : memref<1x16x16xf32, #tpu.memory_space<vmem>>, vector<1x1x16xf32>
    %56 = vector.shape_cast %55 : vector<1x1x16xf32> to vector<1x16xf32>
    %57 = vector.broadcast %49 : vector<1x64xf32> to vector<16x64xf32>
    %58 = arith.mulf %57, %24 : vector<16x64xf32>
    %59 = math.exp %58 : vector<16x64xf32>
    %60 = arith.mulf %59, %42 : vector<16x64xf32>
    %61 = vector.broadcast %53 : vector<16x1xf32> to vector<16x64xf32>
    %62 = vector.broadcast %51 : vector<1x64xf32> to vector<16x64xf32>
    %63 = arith.mulf %61, %62 : vector<16x64xf32>
    %64 = arith.addf %60, %63 : vector<16x64xf32>
    %cst_34 = arith.constant dense<0.000000e+00> : vector<1x64xf32>
    %65 = tpu.matmul %56, %64, %cst_34 {dimension_numbers = #tpu.dot_dimension_numbers<[1], [0], [0], [1], [0, 0, 1, 1], [], []>} : vector<1x16xf32>, vector<16x64xf32>, vector<1x64xf32> -> vector<1x64xf32>
    %c0_35 = arith.constant 0 : index
    %66 = arith.index_cast %c1_i32 : i32 to index
    %c0_36 = arith.constant 0 : index
    %67 = vector.load %arg9[%c0_35, %66, %c0_36] : memref<1x16x64xf32, #tpu.memory_space<vmem>>, vector<1x1x64xf32>
    %68 = vector.shape_cast %67 : vector<1x1x64xf32> to vector<1x64xf32>
    %69 = vector.shape_cast %65 : vector<1x64xf32> to vector<1x1x64xf32>
    tpu.vector_store %arg9[%c0_35, %66, %c0_36], %69 {strides = array<i32>} : memref<1x16x64xf32, #tpu.memory_space<vmem>>, vector<1x1x64xf32>,
    %c2_i32 = arith.constant 2 : i32
    %70 = arith.index_cast %c2_i32 : i32 to index
    %c0_37 = arith.constant 0 : index
    %71 = vector.load %arg10[%70, %c0_37] : memref<16x64xf32, #tpu.memory_space<vmem>>, vector<1x64xf32>
    %72 = arith.index_cast %c2_i32 : i32 to index
    %c0_38 = arith.constant 0 : index
    %73 = vector.load %arg11[%72, %c0_38] : memref<16x64xf32, #tpu.memory_space<vmem>>, vector<1x64xf32>
    %c0_39 = arith.constant 0 : index
    %74 = arith.index_cast %c2_i32 : i32 to index
    %75 = vector.load %arg12[%c0_39, %74] : memref<16x16xf32, #tpu.memory_space<vmem>>, vector<16x1xf32>
    %c0_40 = arith.constant 0 : index
    %76 = arith.index_cast %c2_i32 : i32 to index
    %c0_41 = arith.constant 0 : index
    %77 = vector.load %arg4[%c0_40, %76, %c0_41] : memref<1x16x16xf32, #tpu.memory_space<vmem>>, vector<1x1x16xf32>
    %78 = vector.shape_cast %77 : vector<1x1x16xf32> to vector<1x16xf32>
    %79 = vector.broadcast %71 : vector<1x64xf32> to vector<16x64xf32>
    %80 = arith.mulf %79, %24 : vector<16x64xf32>
    %81 = math.exp %80 : vector<16x64xf32>
    %82 = arith.mulf %81, %64 : vector<16x64xf32>
    %83 = vector.broadcast %75 : vector<16x1xf32> to vector<16x64xf32>
    %84 = vector.broadcast %73 : vector<1x64xf32> to vector<16x64xf32>
    %85 = arith.mulf %83, %84 : vector<16x64xf32>
    %86 = arith.addf %82, %85 : vector<16x64xf32>
    %cst_42 = arith.constant dense<0.000000e+00> : vector<1x64xf32>
    %87 = tpu.matmul %78, %86, %cst_42 {dimension_numbers = #tpu.dot_dimension_numbers<[1], [0], [0], [1], [0, 0, 1, 1], [], []>} : vector<1x16xf32>, vector<16x64xf32>, vector<1x64xf32> -> vector<1x64xf32>
    %c0_43 = arith.constant 0 : index
    %88 = arith.index_cast %c2_i32 : i32 to index
    %c0_44 = arith.constant 0 : index
    %89 = vector.load %arg9[%c0_43, %88, %c0_44] : memref<1x16x64xf32, #tpu.memory_space<vmem>>, vector<1x1x64xf32>
    %90 = vector.shape_cast %89 : vector<1x1x64xf32> to vector<1x64xf32>
    %91 = vector.shape_cast %87 : vector<1x64xf32> to vector<1x1x64xf32>
    tpu.vector_store %arg9[%c0_43, %88, %c0_44], %91 {strides = array<i32>} : memref<1x16x64xf32, #tpu.memory_space<vmem>>, vector<1x1x64xf32>,
    %c3_i32 = arith.constant 3 : i32
    %92 = arith.index_cast %c3_i32 : i32 to index
    %c0_45 = arith.constant 0 : index
    %93 = vector.load %arg10[%92, %c0_45] : memref<16x64xf32, #tpu.memory_space<vmem>>, vector<1x64xf32>
    %94 = arith.index_cast %c3_i32 : i32 to index
    %c0_46 = arith.constant 0 : index
    %95 = vector.load %arg11[%94, %c0_46] : memref<16x64xf32, #tpu.memory_space<vmem>>, vector<1x64xf32>
    %c0_47 = arith.constant 0 : index
    %96 = arith.index_cast %c3_i32 : i32 to index
    %97 = vector.load %arg12[%c0_47, %96] : memref<16x16xf32, #tpu.memory_space<vmem>>, vector<16x1xf32>
    %c0_48 = arith.constant 0 : index
    %98 = arith.index_cast %c3_i32 : i32 to index
    %c0_49 = arith.constant 0 : index
    %99 = vector.load %arg4[%c0_48, %98, %c0_49] : memref<1x16x16xf32, #tpu.memory_space<vmem>>, vector<1x1x16xf32>
    %100 = vector.shape_cast %99 : vector<1x1x16xf32> to vector<1x16xf32>
    %101 = vector.broadcast %93 : vector<1x64xf32> to vector<16x64xf32>
    %102 = arith.mulf %101, %24 : vector<16x64xf32>
    %103 = math.exp %102 : vector<16x64xf32>
    %104 = arith.mulf %103, %86 : vector<16x64xf32>
    %105 = vector.broadcast %97 : vector<16x1xf32> to vector<16x64xf32>
    %106 = vector.broadcast %95 : vector<1x64xf32> to vector<16x64xf32>
    %107 = arith.mulf %105, %106 : vector<16x64xf32>
    %108 = arith.addf %104, %107 : vector<16x64xf32>
    %cst_50 = arith.constant dense<0.000000e+00> : vector<1x64xf32>
    %109 = tpu.matmul %100, %108, %cst_50 {dimension_numbers = #tpu.dot_dimension_numbers<[1], [0], [0], [1], [0, 0, 1, 1], [], []>} : vector<1x16xf32>, vector<16x64xf32>, vector<1x64xf32> -> vector<1x64xf32>
    %c0_51 = arith.constant 0 : index
    %110 = arith.index_cast %c3_i32 : i32 to index
    %c0_52 = arith.constant 0 : index
    %111 = vector.load %arg9[%c0_51, %110, %c0_52] : memref<1x16x64xf32, #tpu.memory_space<vmem>>, vector<1x1x64xf32>
    %112 = vector.shape_cast %111 : vector<1x1x64xf32> to vector<1x64xf32>
    %113 = vector.shape_cast %109 : vector<1x64xf32> to vector<1x1x64xf32>
    tpu.vector_store %arg9[%c0_51, %110, %c0_52], %113 {strides = array<i32>} : memref<1x16x64xf32, #tpu.memory_space<vmem>>, vector<1x1x64xf32>,
    %c4_i32 = arith.constant 4 : i32
    %114 = arith.index_cast %c4_i32 : i32 to index
    %c0_53 = arith.constant 0 : index
    %115 = vector.load %arg10[%114, %c0_53] : memref<16x64xf32, #tpu.memory_space<vmem>>, vector<1x64xf32>
    %116 = arith.index_cast %c4_i32 : i32 to index
    %c0_54 = arith.constant 0 : index
    %117 = vector.load %arg11[%116, %c0_54] : memref<16x64xf32, #tpu.memory_space<vmem>>, vector<1x64xf32>
    %c0_55 = arith.constant 0 : index
    %118 = arith.index_cast %c4_i32 : i32 to index
    %119 = vector.load %arg12[%c0_55, %118] : memref<16x16xf32, #tpu.memory_space<vmem>>, vector<16x1xf32>
    %c0_56 = arith.constant 0 : index
    %120 = arith.index_cast %c4_i32 : i32 to index
    %c0_57 = arith.constant 0 : index
    %121 = vector.load %arg4[%c0_56, %120, %c0_57] : memref<1x16x16xf32, #tpu.memory_space<vmem>>, vector<1x1x16xf32>
    %122 = vector.shape_cast %121 : vector<1x1x16xf32> to vector<1x16xf32>
    %123 = vector.broadcast %115 : vector<1x64xf32> to vector<16x64xf32>
    %124 = arith.mulf %123, %24 : vector<16x64xf32>
    %125 = math.exp %124 : vector<16x64xf32>
    %126 = arith.mulf %125, %108 : vector<16x64xf32>
    %127 = vector.broadcast %119 : vector<16x1xf32> to vector<16x64xf32>
    %128 = vector.broadcast %117 : vector<1x64xf32> to vector<16x64xf32>
    %129 = arith.mulf %127, %128 : vector<16x64xf32>
    %130 = arith.addf %126, %129 : vector<16x64xf32>
    %cst_58 = arith.constant dense<0.000000e+00> : vector<1x64xf32>
    %131 = tpu.matmul %122, %130, %cst_58 {dimension_numbers = #tpu.dot_dimension_numbers<[1], [0], [0], [1], [0, 0, 1, 1], [], []>} : vector<1x16xf32>, vector<16x64xf32>, vector<1x64xf32> -> vector<1x64xf32>
    %c0_59 = arith.constant 0 : index
    %132 = arith.index_cast %c4_i32 : i32 to index
    %c0_60 = arith.constant 0 : index
    %133 = vector.load %arg9[%c0_59, %132, %c0_60] : memref<1x16x64xf32, #tpu.memory_space<vmem>>, vector<1x1x64xf32>
    %134 = vector.shape_cast %133 : vector<1x1x64xf32> to vector<1x64xf32>
    %135 = vector.shape_cast %131 : vector<1x64xf32> to vector<1x1x64xf32>
    tpu.vector_store %arg9[%c0_59, %132, %c0_60], %135 {strides = array<i32>} : memref<1x16x64xf32, #tpu.memory_space<vmem>>, vector<1x1x64xf32>,
    %c5_i32 = arith.constant 5 : i32
    %136 = arith.index_cast %c5_i32 : i32 to index
    %c0_61 = arith.constant 0 : index
    %137 = vector.load %arg10[%136, %c0_61] : memref<16x64xf32, #tpu.memory_space<vmem>>, vector<1x64xf32>
    %138 = arith.index_cast %c5_i32 : i32 to index
    %c0_62 = arith.constant 0 : index
    %139 = vector.load %arg11[%138, %c0_62] : memref<16x64xf32, #tpu.memory_space<vmem>>, vector<1x64xf32>
    %c0_63 = arith.constant 0 : index
    %140 = arith.index_cast %c5_i32 : i32 to index
    %141 = vector.load %arg12[%c0_63, %140] : memref<16x16xf32, #tpu.memory_space<vmem>>, vector<16x1xf32>
    %c0_64 = arith.constant 0 : index
    %142 = arith.index_cast %c5_i32 : i32 to index
    %c0_65 = arith.constant 0 : index
    %143 = vector.load %arg4[%c0_64, %142, %c0_65] : memref<1x16x16xf32, #tpu.memory_space<vmem>>, vector<1x1x16xf32>
    %144 = vector.shape_cast %143 : vector<1x1x16xf32> to vector<1x16xf32>
    %145 = vector.broadcast %137 : vector<1x64xf32> to vector<16x64xf32>
    %146 = arith.mulf %145, %24 : vector<16x64xf32>
    %147 = math.exp %146 : vector<16x64xf32>
    %148 = arith.mulf %147, %130 : vector<16x64xf32>
    %149 = vector.broadcast %141 : vector<16x1xf32> to vector<16x64xf32>
    %150 = vector.broadcast %139 : vector<1x64xf32> to vector<16x64xf32>
    %151 = arith.mulf %149, %150 : vector<16x64xf32>
    %152 = arith.addf %148, %151 : vector<16x64xf32>
    %cst_66 = arith.constant dense<0.000000e+00> : vector<1x64xf32>
    %153 = tpu.matmul %144, %152, %cst_66 {dimension_numbers = #tpu.dot_dimension_numbers<[1], [0], [0], [1], [0, 0, 1, 1], [], []>} : vector<1x16xf32>, vector<16x64xf32>, vector<1x64xf32> -> vector<1x64xf32>
    %c0_67 = arith.constant 0 : index
    %154 = arith.index_cast %c5_i32 : i32 to index
    %c0_68 = arith.constant 0 : index
    %155 = vector.load %arg9[%c0_67, %154, %c0_68] : memref<1x16x64xf32, #tpu.memory_space<vmem>>, vector<1x1x64xf32>
    %156 = vector.shape_cast %155 : vector<1x1x64xf32> to vector<1x64xf32>
    %157 = vector.shape_cast %153 : vector<1x64xf32> to vector<1x1x64xf32>
    tpu.vector_store %arg9[%c0_67, %154, %c0_68], %157 {strides = array<i32>} : memref<1x16x64xf32, #tpu.memory_space<vmem>>, vector<1x1x64xf32>,
    %c6_i32 = arith.constant 6 : i32
    %158 = arith.index_cast %c6_i32 : i32 to index
    %c0_69 = arith.constant 0 : index
    %159 = vector.load %arg10[%158, %c0_69] : memref<16x64xf32, #tpu.memory_space<vmem>>, vector<1x64xf32>
    %160 = arith.index_cast %c6_i32 : i32 to index
    %c0_70 = arith.constant 0 : index
    %161 = vector.load %arg11[%160, %c0_70] : memref<16x64xf32, #tpu.memory_space<vmem>>, vector<1x64xf32>
    %c0_71 = arith.constant 0 : index
    %162 = arith.index_cast %c6_i32 : i32 to index
    %163 = vector.load %arg12[%c0_71, %162] : memref<16x16xf32, #tpu.memory_space<vmem>>, vector<16x1xf32>
    %c0_72 = arith.constant 0 : index
    %164 = arith.index_cast %c6_i32 : i32 to index
    %c0_73 = arith.constant 0 : index
    %165 = vector.load %arg4[%c0_72, %164, %c0_73] : memref<1x16x16xf32, #tpu.memory_space<vmem>>, vector<1x1x16xf32>
    %166 = vector.shape_cast %165 : vector<1x1x16xf32> to vector<1x16xf32>
    %167 = vector.broadcast %159 : vector<1x64xf32> to vector<16x64xf32>
    %168 = arith.mulf %167, %24 : vector<16x64xf32>
    %169 = math.exp %168 : vector<16x64xf32>
    %170 = arith.mulf %169, %152 : vector<16x64xf32>
    %171 = vector.broadcast %163 : vector<16x1xf32> to vector<16x64xf32>
    %172 = vector.broadcast %161 : vector<1x64xf32> to vector<16x64xf32>
    %173 = arith.mulf %171, %172 : vector<16x64xf32>
    %174 = arith.addf %170, %173 : vector<16x64xf32>
    %cst_74 = arith.constant dense<0.000000e+00> : vector<1x64xf32>
    %175 = tpu.matmul %166, %174, %cst_74 {dimension_numbers = #tpu.dot_dimension_numbers<[1], [0], [0], [1], [0, 0, 1, 1], [], []>} : vector<1x16xf32>, vector<16x64xf32>, vector<1x64xf32> -> vector<1x64xf32>
    %c0_75 = arith.constant 0 : index
    %176 = arith.index_cast %c6_i32 : i32 to index
    %c0_76 = arith.constant 0 : index
    %177 = vector.load %arg9[%c0_75, %176, %c0_76] : memref<1x16x64xf32, #tpu.memory_space<vmem>>, vector<1x1x64xf32>
    %178 = vector.shape_cast %177 : vector<1x1x64xf32> to vector<1x64xf32>
    %179 = vector.shape_cast %175 : vector<1x64xf32> to vector<1x1x64xf32>
    tpu.vector_store %arg9[%c0_75, %176, %c0_76], %179 {strides = array<i32>} : memref<1x16x64xf32, #tpu.memory_space<vmem>>, vector<1x1x64xf32>,
    %c7_i32 = arith.constant 7 : i32
    %180 = arith.index_cast %c7_i32 : i32 to index
    %c0_77 = arith.constant 0 : index
    %181 = vector.load %arg10[%180, %c0_77] : memref<16x64xf32, #tpu.memory_space<vmem>>, vector<1x64xf32>
    %182 = arith.index_cast %c7_i32 : i32 to index
    %c0_78 = arith.constant 0 : index
    %183 = vector.load %arg11[%182, %c0_78] : memref<16x64xf32, #tpu.memory_space<vmem>>, vector<1x64xf32>
    %c0_79 = arith.constant 0 : index
    %184 = arith.index_cast %c7_i32 : i32 to index
    %185 = vector.load %arg12[%c0_79, %184] : memref<16x16xf32, #tpu.memory_space<vmem>>, vector<16x1xf32>
    %c0_80 = arith.constant 0 : index
    %186 = arith.index_cast %c7_i32 : i32 to index
    %c0_81 = arith.constant 0 : index
    %187 = vector.load %arg4[%c0_80, %186, %c0_81] : memref<1x16x16xf32, #tpu.memory_space<vmem>>, vector<1x1x16xf32>
    %188 = vector.shape_cast %187 : vector<1x1x16xf32> to vector<1x16xf32>
    %189 = vector.broadcast %181 : vector<1x64xf32> to vector<16x64xf32>
    %190 = arith.mulf %189, %24 : vector<16x64xf32>
    %191 = math.exp %190 : vector<16x64xf32>
    %192 = arith.mulf %191, %174 : vector<16x64xf32>
    %193 = vector.broadcast %185 : vector<16x1xf32> to vector<16x64xf32>
    %194 = vector.broadcast %183 : vector<1x64xf32> to vector<16x64xf32>
    %195 = arith.mulf %193, %194 : vector<16x64xf32>
    %196 = arith.addf %192, %195 : vector<16x64xf32>
    %cst_82 = arith.constant dense<0.000000e+00> : vector<1x64xf32>
    %197 = tpu.matmul %188, %196, %cst_82 {dimension_numbers = #tpu.dot_dimension_numbers<[1], [0], [0], [1], [0, 0, 1, 1], [], []>} : vector<1x16xf32>, vector<16x64xf32>, vector<1x64xf32> -> vector<1x64xf32>
    %c0_83 = arith.constant 0 : index
    %198 = arith.index_cast %c7_i32 : i32 to index
    %c0_84 = arith.constant 0 : index
    %199 = vector.load %arg9[%c0_83, %198, %c0_84] : memref<1x16x64xf32, #tpu.memory_space<vmem>>, vector<1x1x64xf32>
    %200 = vector.shape_cast %199 : vector<1x1x64xf32> to vector<1x64xf32>
    %201 = vector.shape_cast %197 : vector<1x64xf32> to vector<1x1x64xf32>
    tpu.vector_store %arg9[%c0_83, %198, %c0_84], %201 {strides = array<i32>} : memref<1x16x64xf32, #tpu.memory_space<vmem>>, vector<1x1x64xf32>,
    %c8_i32 = arith.constant 8 : i32
    %202 = arith.index_cast %c8_i32 : i32 to index
    %c0_85 = arith.constant 0 : index
    %203 = vector.load %arg10[%202, %c0_85] : memref<16x64xf32, #tpu.memory_space<vmem>>, vector<1x64xf32>
    %204 = arith.index_cast %c8_i32 : i32 to index
    %c0_86 = arith.constant 0 : index
    %205 = vector.load %arg11[%204, %c0_86] : memref<16x64xf32, #tpu.memory_space<vmem>>, vector<1x64xf32>
    %c0_87 = arith.constant 0 : index
    %206 = arith.index_cast %c8_i32 : i32 to index
    %207 = vector.load %arg12[%c0_87, %206] : memref<16x16xf32, #tpu.memory_space<vmem>>, vector<16x1xf32>
    %c0_88 = arith.constant 0 : index
    %208 = arith.index_cast %c8_i32 : i32 to index
    %c0_89 = arith.constant 0 : index
    %209 = vector.load %arg4[%c0_88, %208, %c0_89] : memref<1x16x16xf32, #tpu.memory_space<vmem>>, vector<1x1x16xf32>
    %210 = vector.shape_cast %209 : vector<1x1x16xf32> to vector<1x16xf32>
    %211 = vector.broadcast %203 : vector<1x64xf32> to vector<16x64xf32>
    %212 = arith.mulf %211, %24 : vector<16x64xf32>
    %213 = math.exp %212 : vector<16x64xf32>
    %214 = arith.mulf %213, %196 : vector<16x64xf32>
    %215 = vector.broadcast %207 : vector<16x1xf32> to vector<16x64xf32>
    %216 = vector.broadcast %205 : vector<1x64xf32> to vector<16x64xf32>
    %217 = arith.mulf %215, %216 : vector<16x64xf32>
    %218 = arith.addf %214, %217 : vector<16x64xf32>
    %cst_90 = arith.constant dense<0.000000e+00> : vector<1x64xf32>
    %219 = tpu.matmul %210, %218, %cst_90 {dimension_numbers = #tpu.dot_dimension_numbers<[1], [0], [0], [1], [0, 0, 1, 1], [], []>} : vector<1x16xf32>, vector<16x64xf32>, vector<1x64xf32> -> vector<1x64xf32>
    %c0_91 = arith.constant 0 : index
    %220 = arith.index_cast %c8_i32 : i32 to index
    %c0_92 = arith.constant 0 : index
    %221 = vector.load %arg9[%c0_91, %220, %c0_92] : memref<1x16x64xf32, #tpu.memory_space<vmem>>, vector<1x1x64xf32>
    %222 = vector.shape_cast %221 : vector<1x1x64xf32> to vector<1x64xf32>
    %223 = vector.shape_cast %219 : vector<1x64xf32> to vector<1x1x64xf32>
    tpu.vector_store %arg9[%c0_91, %220, %c0_92], %223 {strides = array<i32>} : memref<1x16x64xf32, #tpu.memory_space<vmem>>, vector<1x1x64xf32>,
    %c9_i32 = arith.constant 9 : i32
    %224 = arith.index_cast %c9_i32 : i32 to index
    %c0_93 = arith.constant 0 : index
    %225 = vector.load %arg10[%224, %c0_93] : memref<16x64xf32, #tpu.memory_space<vmem>>, vector<1x64xf32>
    %226 = arith.index_cast %c9_i32 : i32 to index
    %c0_94 = arith.constant 0 : index
    %227 = vector.load %arg11[%226, %c0_94] : memref<16x64xf32, #tpu.memory_space<vmem>>, vector<1x64xf32>
    %c0_95 = arith.constant 0 : index
    %228 = arith.index_cast %c9_i32 : i32 to index
    %229 = vector.load %arg12[%c0_95, %228] : memref<16x16xf32, #tpu.memory_space<vmem>>, vector<16x1xf32>
    %c0_96 = arith.constant 0 : index
    %230 = arith.index_cast %c9_i32 : i32 to index
    %c0_97 = arith.constant 0 : index
    %231 = vector.load %arg4[%c0_96, %230, %c0_97] : memref<1x16x16xf32, #tpu.memory_space<vmem>>, vector<1x1x16xf32>
    %232 = vector.shape_cast %231 : vector<1x1x16xf32> to vector<1x16xf32>
    %233 = vector.broadcast %225 : vector<1x64xf32> to vector<16x64xf32>
    %234 = arith.mulf %233, %24 : vector<16x64xf32>
    %235 = math.exp %234 : vector<16x64xf32>
    %236 = arith.mulf %235, %218 : vector<16x64xf32>
    %237 = vector.broadcast %229 : vector<16x1xf32> to vector<16x64xf32>
    %238 = vector.broadcast %227 : vector<1x64xf32> to vector<16x64xf32>
    %239 = arith.mulf %237, %238 : vector<16x64xf32>
    %240 = arith.addf %236, %239 : vector<16x64xf32>
    %cst_98 = arith.constant dense<0.000000e+00> : vector<1x64xf32>
    %241 = tpu.matmul %232, %240, %cst_98 {dimension_numbers = #tpu.dot_dimension_numbers<[1], [0], [0], [1], [0, 0, 1, 1], [], []>} : vector<1x16xf32>, vector<16x64xf32>, vector<1x64xf32> -> vector<1x64xf32>
    %c0_99 = arith.constant 0 : index
    %242 = arith.index_cast %c9_i32 : i32 to index
    %c0_100 = arith.constant 0 : index
    %243 = vector.load %arg9[%c0_99, %242, %c0_100] : memref<1x16x64xf32, #tpu.memory_space<vmem>>, vector<1x1x64xf32>
    %244 = vector.shape_cast %243 : vector<1x1x64xf32> to vector<1x64xf32>
    %245 = vector.shape_cast %241 : vector<1x64xf32> to vector<1x1x64xf32>
    tpu.vector_store %arg9[%c0_99, %242, %c0_100], %245 {strides = array<i32>} : memref<1x16x64xf32, #tpu.memory_space<vmem>>, vector<1x1x64xf32>,
    %c10_i32 = arith.constant 10 : i32
    %246 = arith.index_cast %c10_i32 : i32 to index
    %c0_101 = arith.constant 0 : index
    %247 = vector.load %arg10[%246, %c0_101] : memref<16x64xf32, #tpu.memory_space<vmem>>, vector<1x64xf32>
    %248 = arith.index_cast %c10_i32 : i32 to index
    %c0_102 = arith.constant 0 : index
    %249 = vector.load %arg11[%248, %c0_102] : memref<16x64xf32, #tpu.memory_space<vmem>>, vector<1x64xf32>
    %c0_103 = arith.constant 0 : index
    %250 = arith.index_cast %c10_i32 : i32 to index
    %251 = vector.load %arg12[%c0_103, %250] : memref<16x16xf32, #tpu.memory_space<vmem>>, vector<16x1xf32>
    %c0_104 = arith.constant 0 : index
    %252 = arith.index_cast %c10_i32 : i32 to index
    %c0_105 = arith.constant 0 : index
    %253 = vector.load %arg4[%c0_104, %252, %c0_105] : memref<1x16x16xf32, #tpu.memory_space<vmem>>, vector<1x1x16xf32>
    %254 = vector.shape_cast %253 : vector<1x1x16xf32> to vector<1x16xf32>
    %255 = vector.broadcast %247 : vector<1x64xf32> to vector<16x64xf32>
    %256 = arith.mulf %255, %24 : vector<16x64xf32>
    %257 = math.exp %256 : vector<16x64xf32>
    %258 = arith.mulf %257, %240 : vector<16x64xf32>
    %259 = vector.broadcast %251 : vector<16x1xf32> to vector<16x64xf32>
    %260 = vector.broadcast %249 : vector<1x64xf32> to vector<16x64xf32>
    %261 = arith.mulf %259, %260 : vector<16x64xf32>
    %262 = arith.addf %258, %261 : vector<16x64xf32>
    %cst_106 = arith.constant dense<0.000000e+00> : vector<1x64xf32>
    %263 = tpu.matmul %254, %262, %cst_106 {dimension_numbers = #tpu.dot_dimension_numbers<[1], [0], [0], [1], [0, 0, 1, 1], [], []>} : vector<1x16xf32>, vector<16x64xf32>, vector<1x64xf32> -> vector<1x64xf32>
    %c0_107 = arith.constant 0 : index
    %264 = arith.index_cast %c10_i32 : i32 to index
    %c0_108 = arith.constant 0 : index
    %265 = vector.load %arg9[%c0_107, %264, %c0_108] : memref<1x16x64xf32, #tpu.memory_space<vmem>>, vector<1x1x64xf32>
    %266 = vector.shape_cast %265 : vector<1x1x64xf32> to vector<1x64xf32>
    %267 = vector.shape_cast %263 : vector<1x64xf32> to vector<1x1x64xf32>
    tpu.vector_store %arg9[%c0_107, %264, %c0_108], %267 {strides = array<i32>} : memref<1x16x64xf32, #tpu.memory_space<vmem>>, vector<1x1x64xf32>,
    %c11_i32 = arith.constant 11 : i32
    %268 = arith.index_cast %c11_i32 : i32 to index
    %c0_109 = arith.constant 0 : index
    %269 = vector.load %arg10[%268, %c0_109] : memref<16x64xf32, #tpu.memory_space<vmem>>, vector<1x64xf32>
    %270 = arith.index_cast %c11_i32 : i32 to index
    %c0_110 = arith.constant 0 : index
    %271 = vector.load %arg11[%270, %c0_110] : memref<16x64xf32, #tpu.memory_space<vmem>>, vector<1x64xf32>
    %c0_111 = arith.constant 0 : index
    %272 = arith.index_cast %c11_i32 : i32 to index
    %273 = vector.load %arg12[%c0_111, %272] : memref<16x16xf32, #tpu.memory_space<vmem>>, vector<16x1xf32>
    %c0_112 = arith.constant 0 : index
    %274 = arith.index_cast %c11_i32 : i32 to index
    %c0_113 = arith.constant 0 : index
    %275 = vector.load %arg4[%c0_112, %274, %c0_113] : memref<1x16x16xf32, #tpu.memory_space<vmem>>, vector<1x1x16xf32>
    %276 = vector.shape_cast %275 : vector<1x1x16xf32> to vector<1x16xf32>
    %277 = vector.broadcast %269 : vector<1x64xf32> to vector<16x64xf32>
    %278 = arith.mulf %277, %24 : vector<16x64xf32>
    %279 = math.exp %278 : vector<16x64xf32>
    %280 = arith.mulf %279, %262 : vector<16x64xf32>
    %281 = vector.broadcast %273 : vector<16x1xf32> to vector<16x64xf32>
    %282 = vector.broadcast %271 : vector<1x64xf32> to vector<16x64xf32>
    %283 = arith.mulf %281, %282 : vector<16x64xf32>
    %284 = arith.addf %280, %283 : vector<16x64xf32>
    %cst_114 = arith.constant dense<0.000000e+00> : vector<1x64xf32>
    %285 = tpu.matmul %276, %284, %cst_114 {dimension_numbers = #tpu.dot_dimension_numbers<[1], [0], [0], [1], [0, 0, 1, 1], [], []>} : vector<1x16xf32>, vector<16x64xf32>, vector<1x64xf32> -> vector<1x64xf32>
    %c0_115 = arith.constant 0 : index
    %286 = arith.index_cast %c11_i32 : i32 to index
    %c0_116 = arith.constant 0 : index
    %287 = vector.load %arg9[%c0_115, %286, %c0_116] : memref<1x16x64xf32, #tpu.memory_space<vmem>>, vector<1x1x64xf32>
    %288 = vector.shape_cast %287 : vector<1x1x64xf32> to vector<1x64xf32>
    %289 = vector.shape_cast %285 : vector<1x64xf32> to vector<1x1x64xf32>
    tpu.vector_store %arg9[%c0_115, %286, %c0_116], %289 {strides = array<i32>} : memref<1x16x64xf32, #tpu.memory_space<vmem>>, vector<1x1x64xf32>,
    %c12_i32 = arith.constant 12 : i32
    %290 = arith.index_cast %c12_i32 : i32 to index
    %c0_117 = arith.constant 0 : index
    %291 = vector.load %arg10[%290, %c0_117] : memref<16x64xf32, #tpu.memory_space<vmem>>, vector<1x64xf32>
    %292 = arith.index_cast %c12_i32 : i32 to index
    %c0_118 = arith.constant 0 : index
    %293 = vector.load %arg11[%292, %c0_118] : memref<16x64xf32, #tpu.memory_space<vmem>>, vector<1x64xf32>
    %c0_119 = arith.constant 0 : index
    %294 = arith.index_cast %c12_i32 : i32 to index
    %295 = vector.load %arg12[%c0_119, %294] : memref<16x16xf32, #tpu.memory_space<vmem>>, vector<16x1xf32>
    %c0_120 = arith.constant 0 : index
    %296 = arith.index_cast %c12_i32 : i32 to index
    %c0_121 = arith.constant 0 : index
    %297 = vector.load %arg4[%c0_120, %296, %c0_121] : memref<1x16x16xf32, #tpu.memory_space<vmem>>, vector<1x1x16xf32>
    %298 = vector.shape_cast %297 : vector<1x1x16xf32> to vector<1x16xf32>
    %299 = vector.broadcast %291 : vector<1x64xf32> to vector<16x64xf32>
    %300 = arith.mulf %299, %24 : vector<16x64xf32>
    %301 = math.exp %300 : vector<16x64xf32>
    %302 = arith.mulf %301, %284 : vector<16x64xf32>
    %303 = vector.broadcast %295 : vector<16x1xf32> to vector<16x64xf32>
    %304 = vector.broadcast %293 : vector<1x64xf32> to vector<16x64xf32>
    %305 = arith.mulf %303, %304 : vector<16x64xf32>
    %306 = arith.addf %302, %305 : vector<16x64xf32>
    %cst_122 = arith.constant dense<0.000000e+00> : vector<1x64xf32>
    %307 = tpu.matmul %298, %306, %cst_122 {dimension_numbers = #tpu.dot_dimension_numbers<[1], [0], [0], [1], [0, 0, 1, 1], [], []>} : vector<1x16xf32>, vector<16x64xf32>, vector<1x64xf32> -> vector<1x64xf32>
    %c0_123 = arith.constant 0 : index
    %308 = arith.index_cast %c12_i32 : i32 to index
    %c0_124 = arith.constant 0 : index
    %309 = vector.load %arg9[%c0_123, %308, %c0_124] : memref<1x16x64xf32, #tpu.memory_space<vmem>>, vector<1x1x64xf32>
    %310 = vector.shape_cast %309 : vector<1x1x64xf32> to vector<1x64xf32>
    %311 = vector.shape_cast %307 : vector<1x64xf32> to vector<1x1x64xf32>
    tpu.vector_store %arg9[%c0_123, %308, %c0_124], %311 {strides = array<i32>} : memref<1x16x64xf32, #tpu.memory_space<vmem>>, vector<1x1x64xf32>,
    %c13_i32 = arith.constant 13 : i32
    %312 = arith.index_cast %c13_i32 : i32 to index
    %c0_125 = arith.constant 0 : index
    %313 = vector.load %arg10[%312, %c0_125] : memref<16x64xf32, #tpu.memory_space<vmem>>, vector<1x64xf32>
    %314 = arith.index_cast %c13_i32 : i32 to index
    %c0_126 = arith.constant 0 : index
    %315 = vector.load %arg11[%314, %c0_126] : memref<16x64xf32, #tpu.memory_space<vmem>>, vector<1x64xf32>
    %c0_127 = arith.constant 0 : index
    %316 = arith.index_cast %c13_i32 : i32 to index
    %317 = vector.load %arg12[%c0_127, %316] : memref<16x16xf32, #tpu.memory_space<vmem>>, vector<16x1xf32>
    %c0_128 = arith.constant 0 : index
    %318 = arith.index_cast %c13_i32 : i32 to index
    %c0_129 = arith.constant 0 : index
    %319 = vector.load %arg4[%c0_128, %318, %c0_129] : memref<1x16x16xf32, #tpu.memory_space<vmem>>, vector<1x1x16xf32>
    %320 = vector.shape_cast %319 : vector<1x1x16xf32> to vector<1x16xf32>
    %321 = vector.broadcast %313 : vector<1x64xf32> to vector<16x64xf32>
    %322 = arith.mulf %321, %24 : vector<16x64xf32>
    %323 = math.exp %322 : vector<16x64xf32>
    %324 = arith.mulf %323, %306 : vector<16x64xf32>
    %325 = vector.broadcast %317 : vector<16x1xf32> to vector<16x64xf32>
    %326 = vector.broadcast %315 : vector<1x64xf32> to vector<16x64xf32>
    %327 = arith.mulf %325, %326 : vector<16x64xf32>
    %328 = arith.addf %324, %327 : vector<16x64xf32>
    %cst_130 = arith.constant dense<0.000000e+00> : vector<1x64xf32>
    %329 = tpu.matmul %320, %328, %cst_130 {dimension_numbers = #tpu.dot_dimension_numbers<[1], [0], [0], [1], [0, 0, 1, 1], [], []>} : vector<1x16xf32>, vector<16x64xf32>, vector<1x64xf32> -> vector<1x64xf32>
    %c0_131 = arith.constant 0 : index
    %330 = arith.index_cast %c13_i32 : i32 to index
    %c0_132 = arith.constant 0 : index
    %331 = vector.load %arg9[%c0_131, %330, %c0_132] : memref<1x16x64xf32, #tpu.memory_space<vmem>>, vector<1x1x64xf32>
    %332 = vector.shape_cast %331 : vector<1x1x64xf32> to vector<1x64xf32>
    %333 = vector.shape_cast %329 : vector<1x64xf32> to vector<1x1x64xf32>
    tpu.vector_store %arg9[%c0_131, %330, %c0_132], %333 {strides = array<i32>} : memref<1x16x64xf32, #tpu.memory_space<vmem>>, vector<1x1x64xf32>,
    %c14_i32 = arith.constant 14 : i32
    %334 = arith.index_cast %c14_i32 : i32 to index
    %c0_133 = arith.constant 0 : index
    %335 = vector.load %arg10[%334, %c0_133] : memref<16x64xf32, #tpu.memory_space<vmem>>, vector<1x64xf32>
    %336 = arith.index_cast %c14_i32 : i32 to index
    %c0_134 = arith.constant 0 : index
    %337 = vector.load %arg11[%336, %c0_134] : memref<16x64xf32, #tpu.memory_space<vmem>>, vector<1x64xf32>
    %c0_135 = arith.constant 0 : index
    %338 = arith.index_cast %c14_i32 : i32 to index
    %339 = vector.load %arg12[%c0_135, %338] : memref<16x16xf32, #tpu.memory_space<vmem>>, vector<16x1xf32>
    %c0_136 = arith.constant 0 : index
    %340 = arith.index_cast %c14_i32 : i32 to index
    %c0_137 = arith.constant 0 : index
    %341 = vector.load %arg4[%c0_136, %340, %c0_137] : memref<1x16x16xf32, #tpu.memory_space<vmem>>, vector<1x1x16xf32>
    %342 = vector.shape_cast %341 : vector<1x1x16xf32> to vector<1x16xf32>
    %343 = vector.broadcast %335 : vector<1x64xf32> to vector<16x64xf32>
    %344 = arith.mulf %343, %24 : vector<16x64xf32>
    %345 = math.exp %344 : vector<16x64xf32>
    %346 = arith.mulf %345, %328 : vector<16x64xf32>
    %347 = vector.broadcast %339 : vector<16x1xf32> to vector<16x64xf32>
    %348 = vector.broadcast %337 : vector<1x64xf32> to vector<16x64xf32>
    %349 = arith.mulf %347, %348 : vector<16x64xf32>
    %350 = arith.addf %346, %349 : vector<16x64xf32>
    %cst_138 = arith.constant dense<0.000000e+00> : vector<1x64xf32>
    %351 = tpu.matmul %342, %350, %cst_138 {dimension_numbers = #tpu.dot_dimension_numbers<[1], [0], [0], [1], [0, 0, 1, 1], [], []>} : vector<1x16xf32>, vector<16x64xf32>, vector<1x64xf32> -> vector<1x64xf32>
    %c0_139 = arith.constant 0 : index
    %352 = arith.index_cast %c14_i32 : i32 to index
    %c0_140 = arith.constant 0 : index
    %353 = vector.load %arg9[%c0_139, %352, %c0_140] : memref<1x16x64xf32, #tpu.memory_space<vmem>>, vector<1x1x64xf32>
    %354 = vector.shape_cast %353 : vector<1x1x64xf32> to vector<1x64xf32>
    %355 = vector.shape_cast %351 : vector<1x64xf32> to vector<1x1x64xf32>
    tpu.vector_store %arg9[%c0_139, %352, %c0_140], %355 {strides = array<i32>} : memref<1x16x64xf32, #tpu.memory_space<vmem>>, vector<1x1x64xf32>,
    %c15_i32 = arith.constant 15 : i32
    %356 = arith.index_cast %c15_i32 : i32 to index
    %c0_141 = arith.constant 0 : index
    %357 = vector.load %arg10[%356, %c0_141] : memref<16x64xf32, #tpu.memory_space<vmem>>, vector<1x64xf32>
    %358 = arith.index_cast %c15_i32 : i32 to index
    %c0_142 = arith.constant 0 : index
    %359 = vector.load %arg11[%358, %c0_142] : memref<16x64xf32, #tpu.memory_space<vmem>>, vector<1x64xf32>
    %c0_143 = arith.constant 0 : index
    %360 = arith.index_cast %c15_i32 : i32 to index
    %361 = vector.load %arg12[%c0_143, %360] : memref<16x16xf32, #tpu.memory_space<vmem>>, vector<16x1xf32>
    %c0_144 = arith.constant 0 : index
    %362 = arith.index_cast %c15_i32 : i32 to index
    %c0_145 = arith.constant 0 : index
    %363 = vector.load %arg4[%c0_144, %362, %c0_145] : memref<1x16x16xf32, #tpu.memory_space<vmem>>, vector<1x1x16xf32>
    %364 = vector.shape_cast %363 : vector<1x1x16xf32> to vector<1x16xf32>
    %365 = vector.broadcast %357 : vector<1x64xf32> to vector<16x64xf32>
    %366 = arith.mulf %365, %24 : vector<16x64xf32>
    %367 = math.exp %366 : vector<16x64xf32>
    %368 = arith.mulf %367, %350 : vector<16x64xf32>
    %369 = vector.broadcast %361 : vector<16x1xf32> to vector<16x64xf32>
    %370 = vector.broadcast %359 : vector<1x64xf32> to vector<16x64xf32>
    %371 = arith.mulf %369, %370 : vector<16x64xf32>
    %372 = arith.addf %368, %371 : vector<16x64xf32>
    %cst_146 = arith.constant dense<0.000000e+00> : vector<1x64xf32>
    %373 = tpu.matmul %364, %372, %cst_146 {dimension_numbers = #tpu.dot_dimension_numbers<[1], [0], [0], [1], [0, 0, 1, 1], [], []>} : vector<1x16xf32>, vector<16x64xf32>, vector<1x64xf32> -> vector<1x64xf32>
    %c0_147 = arith.constant 0 : index
    %374 = arith.index_cast %c15_i32 : i32 to index
    %c0_148 = arith.constant 0 : index
    %375 = vector.load %arg9[%c0_147, %374, %c0_148] : memref<1x16x64xf32, #tpu.memory_space<vmem>>, vector<1x1x64xf32>
    %376 = vector.shape_cast %375 : vector<1x1x64xf32> to vector<1x64xf32>
    %377 = vector.shape_cast %373 : vector<1x64xf32> to vector<1x1x64xf32>
    tpu.vector_store %arg9[%c0_147, %374, %c0_148], %377 {strides = array<i32>} : memref<1x16x64xf32, #tpu.memory_space<vmem>>, vector<1x1x64xf32>,
    %c16_i32 = arith.constant 16 : i32
    %c0_149 = arith.constant 0 : index
    %c0_150 = arith.constant 0 : index
    %c0_151 = arith.constant 0 : index
    %378 = vector.load %arg5[%c0_149, %c0_150, %c0_151] : memref<1x16x64xf32, #tpu.memory_space<vmem>>, vector<1x16x64xf32>
    %379 = vector.shape_cast %378 : vector<1x16x64xf32> to vector<16x64xf32>
    %cst_152 = arith.constant 0.000000e+00 : f32
    %380 = vector.broadcast %cst_152 : f32 to vector<16x64xf32>
    %381 = arith.subf %380, %379 : vector<16x64xf32>
    %382 = math.exp %381 : vector<16x64xf32>
    %cst_153 = arith.constant 1.000000e+00 : f32
    %383 = vector.broadcast %cst_153 : f32 to vector<16x64xf32>
    %384 = arith.addf %383, %382 : vector<16x64xf32>
    %cst_154 = arith.constant 1.000000e+00 : f32
    %385 = vector.broadcast %cst_154 : f32 to vector<16x64xf32>
    %386 = arith.divf %385, %384 : vector<16x64xf32>
    %387 = arith.mulf %379, %386 : vector<16x64xf32>
    %c0_155 = arith.constant 0 : index
    %c0_156 = arith.constant 0 : index
    %c0_157 = arith.constant 0 : index
    %388 = vector.load %arg9[%c0_155, %c0_156, %c0_157] : memref<1x16x64xf32, #tpu.memory_space<vmem>>, vector<1x16x64xf32>
    %389 = vector.shape_cast %388 : vector<1x16x64xf32> to vector<16x64xf32>
    %c0_158 = arith.constant 0 : index
    %c0_159 = arith.constant 0 : index
    %390 = vector.load %arg7[%c0_158, %c0_159] : memref<1x64xf32, #tpu.memory_space<vmem>>, vector<1x64xf32>
    %391 = vector.broadcast %390 : vector<1x64xf32> to vector<16x64xf32>
    %392 = arith.mulf %391, %1 : vector<16x64xf32>
    %393 = arith.addf %389, %392 : vector<16x64xf32>
    %394 = arith.mulf %393, %387 : vector<16x64xf32>
    %c0_160 = arith.constant 0 : index
    %c0_161 = arith.constant 0 : index
    %c0_162 = arith.constant 0 : index
    %395 = vector.load %arg9[%c0_160, %c0_161, %c0_162] : memref<1x16x64xf32, #tpu.memory_space<vmem>>, vector<1x16x64xf32>
    %396 = vector.shape_cast %395 : vector<1x16x64xf32> to vector<16x64xf32>
    %397 = vector.shape_cast %394 : vector<16x64xf32> to vector<1x16x64xf32>
    tpu.vector_store %arg9[%c0_160, %c0_161, %c0_162], %397 {strides = array<i32>} : memref<1x16x64xf32, #tpu.memory_space<vmem>>, vector<1x16x64xf32>,
    return
  }
  func.func @transform_0(%arg0: i32) -> (i32, i32, i32) {
    %c0_i32 = arith.constant 0 : i32
    %c0_i32_0 = arith.constant 0 : i32
    %c0_i32_1 = arith.constant 0 : i32
    return %arg0, %c0_i32, %c0_i32_0 : i32, i32, i32
  }
  func.func @transform_1(%arg0: i32) -> (i32, i32, i32) {
    %c0_i32 = arith.constant 0 : i32
    %c0_i32_0 = arith.constant 0 : i32
    %c0_i32_1 = arith.constant 0 : i32
    return %arg0, %c0_i32, %c0_i32_0 : i32, i32, i32
  }
  func.func @transform_2(%arg0: i32) -> (i32, i32, i32) {
    %c0_i32 = arith.constant 0 : i32
    %c0_i32_0 = arith.constant 0 : i32
    %c0_i32_1 = arith.constant 0 : i32
    return %arg0, %c0_i32, %c0_i32_0 : i32, i32, i32
  }
  func.func @transform_3(%arg0: i32) -> (i32, i32, i32) {
    %c0_i32 = arith.constant 0 : i32
    %c0_i32_0 = arith.constant 0 : i32
    %c0_i32_1 = arith.constant 0 : i32
    return %arg0, %c0_i32, %c0_i32_0 : i32, i32, i32
  }
  func.func @transform_4(%arg0: i32) -> (i32, i32, i32) {
    %c0_i32 = arith.constant 0 : i32
    %c0_i32_0 = arith.constant 0 : i32
    %c0_i32_1 = arith.constant 0 : i32
    return %arg0, %c0_i32, %c0_i32_0 : i32, i32, i32
  }
  func.func @transform_5(%arg0: i32) -> (i32, i32) {
    %c0_i32 = arith.constant 0 : i32
    %c0_i32_0 = arith.constant 0 : i32
    %c0_i32_1 = arith.constant 0 : i32
    return %c0_i32, %c0_i32_0 : i32, i32
  }
  func.func @transform_6(%arg0: i32) -> (i32, i32) {
    %c0_i32 = arith.constant 0 : i32
    %c0_i32_0 = arith.constant 0 : i32
    %c0_i32_1 = arith.constant 0 : i32
    return %c0_i32, %c0_i32_0 : i32, i32
  }
  func.func @transform_7(%arg0: i32) -> (i32, i32) {
    %c0_i32 = arith.constant 0 : i32
    %c0_i32_0 = arith.constant 0 : i32
    %c0_i32_1 = arith.constant 0 : i32
    return %c0_i32, %c0_i32_0 : i32, i32
  }
  func.func @transform_8(%arg0: i32) -> (i32, i32, i32) {
    %c0_i32 = arith.constant 0 : i32
    %c0_i32_0 = arith.constant 0 : i32
    %c0_i32_1 = arith.constant 0 : i32
    return %arg0, %c0_i32, %c0_i32_0 : i32, i32, i32
  }
}

module attributes {stable_mosaic.version = 11 : i64} {
  func.func @kernel(%arg0: i32, %arg1: memref<8x128xf32, #tpu.memory_space<vmem>>, %arg2: memref<1x128xf32, #tpu.memory_space<vmem>>, %arg3: memref<1x128xf32, #tpu.memory_space<vmem>>, %arg4: memref<8x128xf32, #tpu.memory_space<vmem>>) attributes {dimension_semantics = [#tpu.dimension_semantics<parallel>], iteration_bounds = array<i64: 1>, scalar_prefetch = 0 : i64, scratch_operands = 0 : i64, tpu.core_type = #tpu.core_type<tc>, window_params = [{transform_indices = @transform_0, window_bounds = array<i64: 8, 128>}, {pipeline_mode = #tpu.pipeline_mode<synchronous>, transform_indices = @transform_1, window_bounds = array<i64: 1, 128>}, {pipeline_mode = #tpu.pipeline_mode<synchronous>, transform_indices = @transform_2, window_bounds = array<i64: 1, 128>}, {transform_indices = @transform_3, window_bounds = array<i64: 8, 128>}]} {
    %c0 = arith.constant 0 : index
    %c0_0 = arith.constant 0 : index
    %0 = vector.load %arg1[%c0, %c0_0] : memref<8x128xf32, #tpu.memory_space<vmem>>, vector<8x128xf32>
    %cst = arith.constant dense<0.000000e+00> : vector<8xf32>
    %1 = vector.multi_reduction <add>, %0, %cst [1] : vector<8x128xf32> to vector<8xf32>
    %2 = vector.shape_cast %1 : vector<8xf32> to vector<8x1xf32>
    %cst_1 = arith.constant 1.280000e+02 : f32
    %3 = vector.broadcast %cst_1 : f32 to vector<8x1xf32>
    %4 = arith.divf %2, %3 : vector<8x1xf32>
    %5 = vector.broadcast %4 : vector<8x1xf32> to vector<8x128xf32>
    %6 = arith.subf %0, %5 : vector<8x128xf32>
    %7 = arith.mulf %6, %6 : vector<8x128xf32>
    %cst_2 = arith.constant dense<0.000000e+00> : vector<8xf32>
    %8 = vector.multi_reduction <add>, %7, %cst_2 [1] : vector<8x128xf32> to vector<8xf32>
    %9 = vector.shape_cast %8 : vector<8xf32> to vector<8x1xf32>
    %cst_3 = arith.constant 1.280000e+02 : f32
    %10 = vector.broadcast %cst_3 : f32 to vector<8x1xf32>
    %11 = arith.divf %9, %10 : vector<8x1xf32>
    %cst_4 = arith.constant 9.99999974E-6 : f32
    %12 = vector.broadcast %cst_4 : f32 to vector<8x1xf32>
    %13 = arith.addf %11, %12 : vector<8x1xf32>
    %14 = math.rsqrt %13 : vector<8x1xf32>
    %15 = vector.broadcast %14 : vector<8x1xf32> to vector<8x128xf32>
    %16 = arith.mulf %6, %15 : vector<8x128xf32>
    %c0_5 = arith.constant 0 : index
    %c0_6 = arith.constant 0 : index
    %17 = vector.load %arg2[%c0_5, %c0_6] : memref<1x128xf32, #tpu.memory_space<vmem>>, vector<1x128xf32>
    %18 = vector.broadcast %17 : vector<1x128xf32> to vector<8x128xf32>
    %19 = arith.mulf %16, %18 : vector<8x128xf32>
    %c0_7 = arith.constant 0 : index
    %c0_8 = arith.constant 0 : index
    %20 = vector.load %arg3[%c0_7, %c0_8] : memref<1x128xf32, #tpu.memory_space<vmem>>, vector<1x128xf32>
    %21 = vector.broadcast %20 : vector<1x128xf32> to vector<8x128xf32>
    %22 = arith.addf %19, %21 : vector<8x128xf32>
    %c0_9 = arith.constant 0 : index
    %c0_10 = arith.constant 0 : index
    %23 = vector.load %arg4[%c0_9, %c0_10] : memref<8x128xf32, #tpu.memory_space<vmem>>, vector<8x128xf32>
    tpu.vector_store %arg4[%c0_9, %c0_10], %22 {strides = array<i32>} : memref<8x128xf32, #tpu.memory_space<vmem>>, vector<8x128xf32>,
    return
  }
  func.func @transform_0(%arg0: i32) -> (i32, i32) {
    %c0_i32 = arith.constant 0 : i32
    %c0_i32_0 = arith.constant 0 : i32
    return %arg0, %c0_i32 : i32, i32
  }
  func.func @transform_1(%arg0: i32) -> (i32, i32) {
    %c0_i32 = arith.constant 0 : i32
    %c0_i32_0 = arith.constant 0 : i32
    %c0_i32_1 = arith.constant 0 : i32
    return %c0_i32, %c0_i32_0 : i32, i32
  }
  func.func @transform_2(%arg0: i32) -> (i32, i32) {
    %c0_i32 = arith.constant 0 : i32
    %c0_i32_0 = arith.constant 0 : i32
    %c0_i32_1 = arith.constant 0 : i32
    return %c0_i32, %c0_i32_0 : i32, i32
  }
  func.func @transform_3(%arg0: i32) -> (i32, i32) {
    %c0_i32 = arith.constant 0 : i32
    %c0_i32_0 = arith.constant 0 : i32
    return %arg0, %c0_i32 : i32, i32
  }
}

module attributes {stable_mosaic.version = 11 : i64} {
  func.func @_matmul_kernel(%arg0: i32, %arg1: memref<8x128xbf16, #tpu.memory_space<vmem>>, %arg2: memref<128x64xbf16, #tpu.memory_space<vmem>>, %arg3: memref<8x64xf32, #tpu.memory_space<vmem>>) attributes {dimension_semantics = [#tpu.dimension_semantics<parallel>], iteration_bounds = array<i64: 1>, scalar_prefetch = 0 : i64, scratch_operands = 0 : i64, tpu.core_type = #tpu.core_type<tc>, window_params = [{transform_indices = @transform_0, window_bounds = array<i64: 8, 128>}, {pipeline_mode = #tpu.pipeline_mode<synchronous>, transform_indices = @transform_1, window_bounds = array<i64: 128, 64>}, {transform_indices = @transform_2, window_bounds = array<i64: 8, 64>}]} {
    %c0 = arith.constant 0 : index
    %c0_0 = arith.constant 0 : index
    %0 = vector.load %arg1[%c0, %c0_0] : memref<8x128xbf16, #tpu.memory_space<vmem>>, vector<8x128xbf16>
    %c0_1 = arith.constant 0 : index
    %c0_2 = arith.constant 0 : index
    %1 = vector.load %arg2[%c0_1, %c0_2] : memref<128x64xbf16, #tpu.memory_space<vmem>>, vector<128x64xbf16>
    %cst = arith.constant dense<0.000000e+00> : vector<8x64xf32>
    %2 = tpu.matmul %0, %1, %cst {dimension_numbers = #tpu.dot_dimension_numbers<[1], [0], [0], [1], [0, 0, 1, 1], [], []>} : vector<8x128xbf16>, vector<128x64xbf16>, vector<8x64xf32> -> vector<8x64xf32>
    %c0_3 = arith.constant 0 : index
    %c0_4 = arith.constant 0 : index
    %3 = vector.load %arg3[%c0_3, %c0_4] : memref<8x64xf32, #tpu.memory_space<vmem>>, vector<8x64xf32>
    tpu.vector_store %arg3[%c0_3, %c0_4], %2 {strides = array<i32>} : memref<8x64xf32, #tpu.memory_space<vmem>>, vector<8x64xf32>,
    return
  }
  func.func @transform_0(%arg0: i32) -> (i32, i32) {
    %c0_i32 = arith.constant 0 : i32
    %c0_i32_0 = arith.constant 0 : i32
    return %arg0, %c0_i32 : i32, i32
  }
  func.func @transform_1(%arg0: i32) -> (i32, i32) {
    %c0_i32 = arith.constant 0 : i32
    %c0_i32_0 = arith.constant 0 : i32
    %c0_i32_1 = arith.constant 0 : i32
    return %c0_i32, %c0_i32_0 : i32, i32
  }
  func.func @transform_2(%arg0: i32) -> (i32, i32) {
    %c0_i32 = arith.constant 0 : i32
    %c0_i32_0 = arith.constant 0 : i32
    return %arg0, %c0_i32 : i32, i32
  }
}

module attributes {stable_mosaic.version = 11 : i64} {
  func.func @kernel(%arg0: i32, %arg1: memref<8x64xf32, #tpu.memory_space<vmem>>, %arg2: memref<1x64xf32, #tpu.memory_space<vmem>>, %arg3: memref<8x64xf32, #tpu.memory_space<vmem>>) attributes {dimension_semantics = [#tpu.dimension_semantics<parallel>], iteration_bounds = array<i64: 1>, scalar_prefetch = 0 : i64, scratch_operands = 0 : i64, tpu.core_type = #tpu.core_type<tc>, window_params = [{transform_indices = @transform_0, window_bounds = array<i64: 8, 64>}, {pipeline_mode = #tpu.pipeline_mode<synchronous>, transform_indices = @transform_1, window_bounds = array<i64: 1, 64>}, {transform_indices = @transform_2, window_bounds = array<i64: 8, 64>}]} {
    %c0 = arith.constant 0 : index
    %c0_0 = arith.constant 0 : index
    %0 = vector.load %arg1[%c0, %c0_0] : memref<8x64xf32, #tpu.memory_space<vmem>>, vector<8x64xf32>
    %1 = arith.mulf %0, %0 : vector<8x64xf32>
    %cst = arith.constant dense<0.000000e+00> : vector<8xf32>
    %2 = vector.multi_reduction <add>, %1, %cst [1] : vector<8x64xf32> to vector<8xf32>
    %3 = vector.shape_cast %2 : vector<8xf32> to vector<8x1xf32>
    %cst_1 = arith.constant 6.400000e+01 : f32
    %4 = vector.broadcast %cst_1 : f32 to vector<8x1xf32>
    %5 = arith.divf %3, %4 : vector<8x1xf32>
    %cst_2 = arith.constant 9.99999974E-6 : f32
    %6 = vector.broadcast %cst_2 : f32 to vector<8x1xf32>
    %7 = arith.addf %5, %6 : vector<8x1xf32>
    %8 = math.rsqrt %7 : vector<8x1xf32>
    %9 = vector.broadcast %8 : vector<8x1xf32> to vector<8x64xf32>
    %10 = arith.mulf %0, %9 : vector<8x64xf32>
    %c0_3 = arith.constant 0 : index
    %c0_4 = arith.constant 0 : index
    %11 = vector.load %arg2[%c0_3, %c0_4] : memref<1x64xf32, #tpu.memory_space<vmem>>, vector<1x64xf32>
    %12 = vector.broadcast %11 : vector<1x64xf32> to vector<8x64xf32>
    %13 = arith.mulf %10, %12 : vector<8x64xf32>
    %c0_5 = arith.constant 0 : index
    %c0_6 = arith.constant 0 : index
    %14 = vector.load %arg3[%c0_5, %c0_6] : memref<8x64xf32, #tpu.memory_space<vmem>>, vector<8x64xf32>
    tpu.vector_store %arg3[%c0_5, %c0_6], %13 {strides = array<i32>} : memref<8x64xf32, #tpu.memory_space<vmem>>, vector<8x64xf32>,
    return
  }
  func.func @transform_0(%arg0: i32) -> (i32, i32) {
    %c0_i32 = arith.constant 0 : i32
    %c0_i32_0 = arith.constant 0 : i32
    return %arg0, %c0_i32 : i32, i32
  }
  func.func @transform_1(%arg0: i32) -> (i32, i32) {
    %c0_i32 = arith.constant 0 : i32
    %c0_i32_0 = arith.constant 0 : i32
    %c0_i32_1 = arith.constant 0 : i32
    return %c0_i32, %c0_i32_0 : i32, i32
  }
  func.func @transform_2(%arg0: i32) -> (i32, i32) {
    %c0_i32 = arith.constant 0 : i32
    %c0_i32_0 = arith.constant 0 : i32
    return %arg0, %c0_i32 : i32, i32
  }
}

module attributes {stable_mosaic.version = 11 : i64} {
  func.func @_matmul_kernel(%arg0: i32, %arg1: memref<8x64xbf16, #tpu.memory_space<vmem>>, %arg2: memref<64x256xbf16, #tpu.memory_space<vmem>>, %arg3: memref<8x256xf32, #tpu.memory_space<vmem>>) attributes {dimension_semantics = [#tpu.dimension_semantics<parallel>], iteration_bounds = array<i64: 1>, scalar_prefetch = 0 : i64, scratch_operands = 0 : i64, tpu.core_type = #tpu.core_type<tc>, window_params = [{transform_indices = @transform_0, window_bounds = array<i64: 8, 64>}, {pipeline_mode = #tpu.pipeline_mode<synchronous>, transform_indices = @transform_1, window_bounds = array<i64: 64, 256>}, {transform_indices = @transform_2, window_bounds = array<i64: 8, 256>}]} {
    %c0 = arith.constant 0 : index
    %c0_0 = arith.constant 0 : index
    %0 = vector.load %arg1[%c0, %c0_0] : memref<8x64xbf16, #tpu.memory_space<vmem>>, vector<8x64xbf16>
    %c0_1 = arith.constant 0 : index
    %c0_2 = arith.constant 0 : index
    %1 = vector.load %arg2[%c0_1, %c0_2] : memref<64x256xbf16, #tpu.memory_space<vmem>>, vector<64x256xbf16>
    %cst = arith.constant dense<0.000000e+00> : vector<8x256xf32>
    %2 = tpu.matmul %0, %1, %cst {dimension_numbers = #tpu.dot_dimension_numbers<[1], [0], [0], [1], [0, 0, 1, 1], [], []>} : vector<8x64xbf16>, vector<64x256xbf16>, vector<8x256xf32> -> vector<8x256xf32>
    %c0_3 = arith.constant 0 : index
    %c0_4 = arith.constant 0 : index
    %3 = vector.load %arg3[%c0_3, %c0_4] : memref<8x256xf32, #tpu.memory_space<vmem>>, vector<8x256xf32>
    tpu.vector_store %arg3[%c0_3, %c0_4], %2 {strides = array<i32>} : memref<8x256xf32, #tpu.memory_space<vmem>>, vector<8x256xf32>,
    return
  }
  func.func @transform_0(%arg0: i32) -> (i32, i32) {
    %c0_i32 = arith.constant 0 : i32
    %c0_i32_0 = arith.constant 0 : i32
    return %arg0, %c0_i32 : i32, i32
  }
  func.func @transform_1(%arg0: i32) -> (i32, i32) {
    %c0_i32 = arith.constant 0 : i32
    %c0_i32_0 = arith.constant 0 : i32
    %c0_i32_1 = arith.constant 0 : i32
    return %c0_i32, %c0_i32_0 : i32, i32
  }
  func.func @transform_2(%arg0: i32) -> (i32, i32) {
    %c0_i32 = arith.constant 0 : i32
    %c0_i32_0 = arith.constant 0 : i32
    return %arg0, %c0_i32 : i32, i32
  }
}

module attributes {stable_mosaic.version = 11 : i64} {
  func.func @kernel(%arg0: i32, %arg1: memref<1x4x128xf32, #tpu.memory_space<vmem>>, %arg2: memref<4x128xf32, #tpu.memory_space<vmem>>, %arg3: memref<1x128xf32, #tpu.memory_space<vmem>>, %arg4: memref<1x4x128xf32, #tpu.memory_space<vmem>>) attributes {dimension_semantics = [#tpu.dimension_semantics<parallel>], iteration_bounds = array<i64: 4>, scalar_prefetch = 0 : i64, scratch_operands = 0 : i64, tpu.core_type = #tpu.core_type<tc>, window_params = [{transform_indices = @transform_0, window_bounds = array<i64: 1, 4, 128>}, {pipeline_mode = #tpu.pipeline_mode<synchronous>, transform_indices = @transform_1, window_bounds = array<i64: 4, 128>}, {pipeline_mode = #tpu.pipeline_mode<synchronous>, transform_indices = @transform_2, window_bounds = array<i64: 1, 128>}, {transform_indices = @transform_3, window_bounds = array<i64: 1, 4, 128>}]} {
    %c0 = arith.constant 0 : index
    %c0_0 = arith.constant 0 : index
    %c0_1 = arith.constant 0 : index
    %0 = vector.load %arg1[%c0, %c0_0, %c0_1] : memref<1x4x128xf32, #tpu.memory_space<vmem>>, vector<1x4x128xf32>
    %1 = vector.shape_cast %0 : vector<1x4x128xf32> to vector<4x128xf32>
    %cst = arith.constant 0.000000e+00 : f32
    %2 = vector.broadcast %cst : f32 to vector<3x128xf32>
    %3 = tpu.concatenate %2, %1 in 0 : vector<3x128xf32>, vector<4x128xf32> -> vector<7x128xf32>
    %cst_2 = arith.constant 0.000000e+00 : f32
    %4 = vector.broadcast %cst_2 : f32 to vector<4x128xf32>
    %c0_3 = arith.constant 0 : index
    %c0_4 = arith.constant 0 : index
    %5 = vector.load %arg3[%c0_3, %c0_4] : memref<1x128xf32, #tpu.memory_space<vmem>>, vector<1x128xf32>
    %6 = vector.broadcast %5 : vector<1x128xf32> to vector<4x128xf32>
    %7 = arith.addf %4, %6 : vector<4x128xf32>
    %8 = vector.extract_strided_slice %3 {offsets = [0, 0], sizes = [4, 128], strides = [1, 1]} : vector<7x128xf32> to vector<4x128xf32>
    %c0_5 = arith.constant 0 : index
    %c0_6 = arith.constant 0 : index
    %9 = vector.load %arg2[%c0_5, %c0_6] : memref<4x128xf32, #tpu.memory_space<vmem>>, vector<1x128xf32>
    %10 = vector.broadcast %9 : vector<1x128xf32> to vector<4x128xf32>
    %11 = arith.mulf %8, %10 : vector<4x128xf32>
    %12 = arith.addf %7, %11 : vector<4x128xf32>
    %13 = vector.extract_strided_slice %3 {offsets = [1, 0], sizes = [4, 128], strides = [1, 1]} : vector<7x128xf32> to vector<4x128xf32>
    %c1 = arith.constant 1 : index
    %c0_7 = arith.constant 0 : index
    %14 = vector.load %arg2[%c1, %c0_7] : memref<4x128xf32, #tpu.memory_space<vmem>>, vector<1x128xf32>
    %15 = vector.broadcast %14 : vector<1x128xf32> to vector<4x128xf32>
    %16 = arith.mulf %13, %15 : vector<4x128xf32>
    %17 = arith.addf %12, %16 : vector<4x128xf32>
    %18 = vector.extract_strided_slice %3 {offsets = [2, 0], sizes = [4, 128], strides = [1, 1]} : vector<7x128xf32> to vector<4x128xf32>
    %c2 = arith.constant 2 : index
    %c0_8 = arith.constant 0 : index
    %19 = vector.load %arg2[%c2, %c0_8] : memref<4x128xf32, #tpu.memory_space<vmem>>, vector<1x128xf32>
    %20 = vector.broadcast %19 : vector<1x128xf32> to vector<4x128xf32>
    %21 = arith.mulf %18, %20 : vector<4x128xf32>
    %22 = arith.addf %17, %21 : vector<4x128xf32>
    %23 = vector.extract_strided_slice %3 {offsets = [3, 0], sizes = [4, 128], strides = [1, 1]} : vector<7x128xf32> to vector<4x128xf32>
    %c3 = arith.constant 3 : index
    %c0_9 = arith.constant 0 : index
    %24 = vector.load %arg2[%c3, %c0_9] : memref<4x128xf32, #tpu.memory_space<vmem>>, vector<1x128xf32>
    %25 = vector.broadcast %24 : vector<1x128xf32> to vector<4x128xf32>
    %26 = arith.mulf %23, %25 : vector<4x128xf32>
    %27 = arith.addf %22, %26 : vector<4x128xf32>
    %cst_10 = arith.constant 0.000000e+00 : f32
    %28 = vector.broadcast %cst_10 : f32 to vector<4x128xf32>
    %29 = arith.subf %28, %27 : vector<4x128xf32>
    %30 = math.exp %29 : vector<4x128xf32>
    %cst_11 = arith.constant 1.000000e+00 : f32
    %31 = vector.broadcast %cst_11 : f32 to vector<4x128xf32>
    %32 = arith.addf %31, %30 : vector<4x128xf32>
    %cst_12 = arith.constant 1.000000e+00 : f32
    %33 = vector.broadcast %cst_12 : f32 to vector<4x128xf32>
    %34 = arith.divf %33, %32 : vector<4x128xf32>
    %35 = arith.mulf %27, %34 : vector<4x128xf32>
    %c0_13 = arith.constant 0 : index
    %c0_14 = arith.constant 0 : index
    %c0_15 = arith.constant 0 : index
    %36 = vector.load %arg4[%c0_13, %c0_14, %c0_15] : memref<1x4x128xf32, #tpu.memory_space<vmem>>, vector<1x4x128xf32>
    %37 = vector.shape_cast %36 : vector<1x4x128xf32> to vector<4x128xf32>
    %38 = vector.shape_cast %35 : vector<4x128xf32> to vector<1x4x128xf32>
    tpu.vector_store %arg4[%c0_13, %c0_14, %c0_15], %38 {strides = array<i32>} : memref<1x4x128xf32, #tpu.memory_space<vmem>>, vector<1x4x128xf32>,
    return
  }
  func.func @transform_0(%arg0: i32) -> (i32, i32, i32) {
    %c0_i32 = arith.constant 0 : i32
    %c0_i32_0 = arith.constant 0 : i32
    %c0_i32_1 = arith.constant 0 : i32
    return %arg0, %c0_i32, %c0_i32_0 : i32, i32, i32
  }
  func.func @transform_1(%arg0: i32) -> (i32, i32) {
    %c0_i32 = arith.constant 0 : i32
    %c0_i32_0 = arith.constant 0 : i32
    %c0_i32_1 = arith.constant 0 : i32
    return %c0_i32, %c0_i32_0 : i32, i32
  }
  func.func @transform_2(%arg0: i32) -> (i32, i32) {
    %c0_i32 = arith.constant 0 : i32
    %c0_i32_0 = arith.constant 0 : i32
    %c0_i32_1 = arith.constant 0 : i32
    return %c0_i32, %c0_i32_0 : i32, i32
  }
  func.func @transform_3(%arg0: i32) -> (i32, i32, i32) {
    %c0_i32 = arith.constant 0 : i32
    %c0_i32_0 = arith.constant 0 : i32
    %c0_i32_1 = arith.constant 0 : i32
    return %arg0, %c0_i32, %c0_i32_0 : i32, i32, i32
  }
}

module attributes {stable_mosaic.version = 11 : i64} {
  func.func @_matmul_kernel(%arg0: i32, %arg1: memref<16x128xbf16, #tpu.memory_space<vmem>>, %arg2: memref<128x160xbf16, #tpu.memory_space<vmem>>, %arg3: memref<16x160xf32, #tpu.memory_space<vmem>>) attributes {dimension_semantics = [#tpu.dimension_semantics<parallel>], iteration_bounds = array<i64: 1>, scalar_prefetch = 0 : i64, scratch_operands = 0 : i64, tpu.core_type = #tpu.core_type<tc>, window_params = [{transform_indices = @transform_0, window_bounds = array<i64: 16, 128>}, {pipeline_mode = #tpu.pipeline_mode<synchronous>, transform_indices = @transform_1, window_bounds = array<i64: 128, 160>}, {transform_indices = @transform_2, window_bounds = array<i64: 16, 160>}]} {
    %c0 = arith.constant 0 : index
    %c0_0 = arith.constant 0 : index
    %0 = vector.load %arg1[%c0, %c0_0] : memref<16x128xbf16, #tpu.memory_space<vmem>>, vector<16x128xbf16>
    %c0_1 = arith.constant 0 : index
    %c0_2 = arith.constant 0 : index
    %1 = vector.load %arg2[%c0_1, %c0_2] : memref<128x160xbf16, #tpu.memory_space<vmem>>, vector<128x160xbf16>
    %cst = arith.constant dense<0.000000e+00> : vector<16x160xf32>
    %2 = tpu.matmul %0, %1, %cst {dimension_numbers = #tpu.dot_dimension_numbers<[1], [0], [0], [1], [0, 0, 1, 1], [], []>} : vector<16x128xbf16>, vector<128x160xbf16>, vector<16x160xf32> -> vector<16x160xf32>
    %c0_3 = arith.constant 0 : index
    %c0_4 = arith.constant 0 : index
    %3 = vector.load %arg3[%c0_3, %c0_4] : memref<16x160xf32, #tpu.memory_space<vmem>>, vector<16x160xf32>
    tpu.vector_store %arg3[%c0_3, %c0_4], %2 {strides = array<i32>} : memref<16x160xf32, #tpu.memory_space<vmem>>, vector<16x160xf32>,
    return
  }
  func.func @transform_0(%arg0: i32) -> (i32, i32) {
    %c0_i32 = arith.constant 0 : i32
    %c0_i32_0 = arith.constant 0 : i32
    return %arg0, %c0_i32 : i32, i32
  }
  func.func @transform_1(%arg0: i32) -> (i32, i32) {
    %c0_i32 = arith.constant 0 : i32
    %c0_i32_0 = arith.constant 0 : i32
    %c0_i32_1 = arith.constant 0 : i32
    return %c0_i32, %c0_i32_0 : i32, i32
  }
  func.func @transform_2(%arg0: i32) -> (i32, i32) {
    %c0_i32 = arith.constant 0 : i32
    %c0_i32_0 = arith.constant 0 : i32
    return %arg0, %c0_i32 : i32, i32
  }
}

module attributes {stable_mosaic.version = 11 : i64} {
  func.func @kernel(%arg0: i32, %arg1: memref<1x4x128xf32, #tpu.memory_space<vmem>>, %arg2: memref<1x4x128xf32, #tpu.memory_space<vmem>>, %arg3: memref<1x4x16xf32, #tpu.memory_space<vmem>>, %arg4: memref<1x4x16xf32, #tpu.memory_space<vmem>>, %arg5: memref<1x4x128xf32, #tpu.memory_space<vmem>>, %arg6: memref<16x128xf32, #tpu.memory_space<vmem>>, %arg7: memref<1x128xf32, #tpu.memory_space<vmem>>, %arg8: memref<1x128xf32, #tpu.memory_space<vmem>>, %arg9: memref<1x4x128xf32, #tpu.memory_space<vmem>>, %arg10: memref<4x128xf32, #tpu.memory_space<vmem>>, %arg11: memref<4x128xf32, #tpu.memory_space<vmem>>, %arg12: memref<16x4xf32, #tpu.memory_space<vmem>>) attributes {dimension_semantics = [#tpu.dimension_semantics<parallel>], iteration_bounds = array<i64: 4>, scalar_prefetch = 0 : i64, scratch_operands = 3 : i64, tpu.core_type = #tpu.core_type<tc>, window_params = [{transform_indices = @transform_0, window_bounds = array<i64: 1, 4, 128>}, {transform_indices = @transform_1, window_bounds = array<i64: 1, 4, 128>}, {transform_indices = @transform_2, window_bounds = array<i64: 1, 4, 16>}, {transform_indices = @transform_3, window_bounds = array<i64: 1, 4, 16>}, {transform_indices = @transform_4, window_bounds = array<i64: 1, 4, 128>}, {pipeline_mode = #tpu.pipeline_mode<synchronous>, transform_indices = @transform_5, window_bounds = array<i64: 16, 128>}, {pipeline_mode = #tpu.pipeline_mode<synchronous>, transform_indices = @transform_6, window_bounds = array<i64: 1, 128>}, {pipeline_mode = #tpu.pipeline_mode<synchronous>, transform_indices = @transform_7, window_bounds = array<i64: 1, 128>}, {transform_indices = @transform_8, window_bounds = array<i64: 1, 4, 128>}]} {
    %c0 = arith.constant 0 : index
    %c0_0 = arith.constant 0 : index
    %c0_1 = arith.constant 0 : index
    %0 = vector.load %arg1[%c0, %c0_0, %c0_1] : memref<1x4x128xf32, #tpu.memory_space<vmem>>, vector<1x4x128xf32>
    %1 = vector.shape_cast %0 : vector<1x4x128xf32> to vector<4x128xf32>
    %c0_2 = arith.constant 0 : index
    %c0_3 = arith.constant 0 : index
    %c0_4 = arith.constant 0 : index
    %2 = vector.load %arg2[%c0_2, %c0_3, %c0_4] : memref<1x4x128xf32, #tpu.memory_space<vmem>>, vector<1x4x128xf32>
    %3 = vector.shape_cast %2 : vector<1x4x128xf32> to vector<4x128xf32>
    %c0_5 = arith.constant 0 : index
    %c0_6 = arith.constant 0 : index
    %4 = vector.load %arg8[%c0_5, %c0_6] : memref<1x128xf32, #tpu.memory_space<vmem>>, vector<1x128xf32>
    %5 = vector.broadcast %4 : vector<1x128xf32> to vector<4x128xf32>
    %6 = arith.addf %3, %5 : vector<4x128xf32>
    %cst = arith.constant 0.000000e+00 : f32
    %7 = vector.broadcast %cst : f32 to vector<4x128xf32>
    %8 = arith.maximumf %6, %7 : vector<4x128xf32>
    %9 = math.absf %6 : vector<4x128xf32>
    %cst_7 = arith.constant 0.000000e+00 : f32
    %10 = vector.broadcast %cst_7 : f32 to vector<4x128xf32>
    %11 = arith.subf %10, %9 : vector<4x128xf32>
    %12 = math.exp %11 : vector<4x128xf32>
    %cst_8 = arith.constant 1.000000e+00 : f32
    %13 = vector.broadcast %cst_8 : f32 to vector<4x128xf32>
    %14 = arith.addf %13, %12 : vector<4x128xf32>
    %15 = math.log %14 : vector<4x128xf32>
    %16 = arith.addf %8, %15 : vector<4x128xf32>
    %c0_9 = arith.constant 0 : index
    %c0_10 = arith.constant 0 : index
    %17 = vector.load %arg10[%c0_9, %c0_10] : memref<4x128xf32, #tpu.memory_space<vmem>>, vector<4x128xf32>
    tpu.vector_store %arg10[%c0_9, %c0_10], %16 {strides = array<i32>} : memref<4x128xf32, #tpu.memory_space<vmem>>, vector<4x128xf32>,
    %18 = arith.mulf %16, %1 : vector<4x128xf32>
    %c0_11 = arith.constant 0 : index
    %c0_12 = arith.constant 0 : index
    %19 = vector.load %arg11[%c0_11, %c0_12] : memref<4x128xf32, #tpu.memory_space<vmem>>, vector<4x128xf32>
    tpu.vector_store %arg11[%c0_11, %c0_12], %18 {strides = array<i32>} : memref<4x128xf32, #tpu.memory_space<vmem>>, vector<4x128xf32>,
    %c0_13 = arith.constant 0 : index
    %c0_14 = arith.constant 0 : index
    %c0_15 = arith.constant 0 : index
    %20 = vector.load %arg3[%c0_13, %c0_14, %c0_15] : memref<1x4x16xf32, #tpu.memory_space<vmem>>, vector<1x4x16xf32>
    %21 = vector.shape_cast %20 : vector<1x4x16xf32> to vector<4x16xf32>
    %22 = tpu.transpose %21, [1, 0] : vector<4x16xf32> -> vector<16x4xf32>
    %c0_16 = arith.constant 0 : index
    %c0_17 = arith.constant 0 : index
    %23 = vector.load %arg12[%c0_16, %c0_17] : memref<16x4xf32, #tpu.memory_space<vmem>>, vector<16x4xf32>
    tpu.vector_store %arg12[%c0_16, %c0_17], %22 {strides = array<i32>} : memref<16x4xf32, #tpu.memory_space<vmem>>, vector<16x4xf32>,
    %c0_18 = arith.constant 0 : index
    %c0_19 = arith.constant 0 : index
    %24 = vector.load %arg6[%c0_18, %c0_19] : memref<16x128xf32, #tpu.memory_space<vmem>>, vector<16x128xf32>
    %cst_20 = arith.constant 0.000000e+00 : f32
    %25 = vector.broadcast %cst_20 : f32 to vector<16x128xf32>
    %c0_i32 = arith.constant 0 : i32
    %26 = arith.index_cast %c0_i32 : i32 to index
    %c0_21 = arith.constant 0 : index
    %27 = vector.load %arg10[%26, %c0_21] : memref<4x128xf32, #tpu.memory_space<vmem>>, vector<1x128xf32>
    %28 = arith.index_cast %c0_i32 : i32 to index
    %c0_22 = arith.constant 0 : index
    %29 = vector.load %arg11[%28, %c0_22] : memref<4x128xf32, #tpu.memory_space<vmem>>, vector<1x128xf32>
    %c0_23 = arith.constant 0 : index
    %30 = arith.index_cast %c0_i32 : i32 to index
    %31 = vector.load %arg12[%c0_23, %30] : memref<16x4xf32, #tpu.memory_space<vmem>>, vector<16x1xf32>
    %c0_24 = arith.constant 0 : index
    %32 = arith.index_cast %c0_i32 : i32 to index
    %c0_25 = arith.constant 0 : index
    %33 = vector.load %arg4[%c0_24, %32, %c0_25] : memref<1x4x16xf32, #tpu.memory_space<vmem>>, vector<1x1x16xf32>
    %34 = vector.shape_cast %33 : vector<1x1x16xf32> to vector<1x16xf32>
    %35 = vector.broadcast %27 : vector<1x128xf32> to vector<16x128xf32>
    %36 = arith.mulf %35, %24 : vector<16x128xf32>
    %37 = math.exp %36 : vector<16x128xf32>
    %38 = arith.mulf %37, %25 : vector<16x128xf32>
    %39 = vector.broadcast %31 : vector<16x1xf32> to vector<16x128xf32>
    %40 = vector.broadcast %29 : vector<1x128xf32> to vector<16x128xf32>
    %41 = arith.mulf %39, %40 : vector<16x128xf32>
    %42 = arith.addf %38, %41 : vector<16x128xf32>
    %cst_26 = arith.constant dense<0.000000e+00> : vector<1x128xf32>
    %43 = tpu.matmul %34, %42, %cst_26 {dimension_numbers = #tpu.dot_dimension_numbers<[1], [0], [0], [1], [0, 0, 1, 1], [], []>} : vector<1x16xf32>, vector<16x128xf32>, vector<1x128xf32> -> vector<1x128xf32>
    %c0_27 = arith.constant 0 : index
    %44 = arith.index_cast %c0_i32 : i32 to index
    %c0_28 = arith.constant 0 : index
    %45 = vector.load %arg9[%c0_27, %44, %c0_28] : memref<1x4x128xf32, #tpu.memory_space<vmem>>, vector<1x1x128xf32>
    %46 = vector.shape_cast %45 : vector<1x1x128xf32> to vector<1x128xf32>
    %47 = vector.shape_cast %43 : vector<1x128xf32> to vector<1x1x128xf32>
    tpu.vector_store %arg9[%c0_27, %44, %c0_28], %47 {strides = array<i32>} : memref<1x4x128xf32, #tpu.memory_space<vmem>>, vector<1x1x128xf32>,
    %c1_i32 = arith.constant 1 : i32
    %48 = arith.index_cast %c1_i32 : i32 to index
    %c0_29 = arith.constant 0 : index
    %49 = vector.load %arg10[%48, %c0_29] : memref<4x128xf32, #tpu.memory_space<vmem>>, vector<1x128xf32>
    %50 = arith.index_cast %c1_i32 : i32 to index
    %c0_30 = arith.constant 0 : index
    %51 = vector.load %arg11[%50, %c0_30] : memref<4x128xf32, #tpu.memory_space<vmem>>, vector<1x128xf32>
    %c0_31 = arith.constant 0 : index
    %52 = arith.index_cast %c1_i32 : i32 to index
    %53 = vector.load %arg12[%c0_31, %52] : memref<16x4xf32, #tpu.memory_space<vmem>>, vector<16x1xf32>
    %c0_32 = arith.constant 0 : index
    %54 = arith.index_cast %c1_i32 : i32 to index
    %c0_33 = arith.constant 0 : index
    %55 = vector.load %arg4[%c0_32, %54, %c0_33] : memref<1x4x16xf32, #tpu.memory_space<vmem>>, vector<1x1x16xf32>
    %56 = vector.shape_cast %55 : vector<1x1x16xf32> to vector<1x16xf32>
    %57 = vector.broadcast %49 : vector<1x128xf32> to vector<16x128xf32>
    %58 = arith.mulf %57, %24 : vector<16x128xf32>
    %59 = math.exp %58 : vector<16x128xf32>
    %60 = arith.mulf %59, %42 : vector<16x128xf32>
    %61 = vector.broadcast %53 : vector<16x1xf32> to vector<16x128xf32>
    %62 = vector.broadcast %51 : vector<1x128xf32> to vector<16x128xf32>
    %63 = arith.mulf %61, %62 : vector<16x128xf32>
    %64 = arith.addf %60, %63 : vector<16x128xf32>
    %cst_34 = arith.constant dense<0.000000e+00> : vector<1x128xf32>
    %65 = tpu.matmul %56, %64, %cst_34 {dimension_numbers = #tpu.dot_dimension_numbers<[1], [0], [0], [1], [0, 0, 1, 1], [], []>} : vector<1x16xf32>, vector<16x128xf32>, vector<1x128xf32> -> vector<1x128xf32>
    %c0_35 = arith.constant 0 : index
    %66 = arith.index_cast %c1_i32 : i32 to index
    %c0_36 = arith.constant 0 : index
    %67 = vector.load %arg9[%c0_35, %66, %c0_36] : memref<1x4x128xf32, #tpu.memory_space<vmem>>, vector<1x1x128xf32>
    %68 = vector.shape_cast %67 : vector<1x1x128xf32> to vector<1x128xf32>
    %69 = vector.shape_cast %65 : vector<1x128xf32> to vector<1x1x128xf32>
    tpu.vector_store %arg9[%c0_35, %66, %c0_36], %69 {strides = array<i32>} : memref<1x4x128xf32, #tpu.memory_space<vmem>>, vector<1x1x128xf32>,
    %c2_i32 = arith.constant 2 : i32
    %70 = arith.index_cast %c2_i32 : i32 to index
    %c0_37 = arith.constant 0 : index
    %71 = vector.load %arg10[%70, %c0_37] : memref<4x128xf32, #tpu.memory_space<vmem>>, vector<1x128xf32>
    %72 = arith.index_cast %c2_i32 : i32 to index
    %c0_38 = arith.constant 0 : index
    %73 = vector.load %arg11[%72, %c0_38] : memref<4x128xf32, #tpu.memory_space<vmem>>, vector<1x128xf32>
    %c0_39 = arith.constant 0 : index
    %74 = arith.index_cast %c2_i32 : i32 to index
    %75 = vector.load %arg12[%c0_39, %74] : memref<16x4xf32, #tpu.memory_space<vmem>>, vector<16x1xf32>
    %c0_40 = arith.constant 0 : index
    %76 = arith.index_cast %c2_i32 : i32 to index
    %c0_41 = arith.constant 0 : index
    %77 = vector.load %arg4[%c0_40, %76, %c0_41] : memref<1x4x16xf32, #tpu.memory_space<vmem>>, vector<1x1x16xf32>
    %78 = vector.shape_cast %77 : vector<1x1x16xf32> to vector<1x16xf32>
    %79 = vector.broadcast %71 : vector<1x128xf32> to vector<16x128xf32>
    %80 = arith.mulf %79, %24 : vector<16x128xf32>
    %81 = math.exp %80 : vector<16x128xf32>
    %82 = arith.mulf %81, %64 : vector<16x128xf32>
    %83 = vector.broadcast %75 : vector<16x1xf32> to vector<16x128xf32>
    %84 = vector.broadcast %73 : vector<1x128xf32> to vector<16x128xf32>
    %85 = arith.mulf %83, %84 : vector<16x128xf32>
    %86 = arith.addf %82, %85 : vector<16x128xf32>
    %cst_42 = arith.constant dense<0.000000e+00> : vector<1x128xf32>
    %87 = tpu.matmul %78, %86, %cst_42 {dimension_numbers = #tpu.dot_dimension_numbers<[1], [0], [0], [1], [0, 0, 1, 1], [], []>} : vector<1x16xf32>, vector<16x128xf32>, vector<1x128xf32> -> vector<1x128xf32>
    %c0_43 = arith.constant 0 : index
    %88 = arith.index_cast %c2_i32 : i32 to index
    %c0_44 = arith.constant 0 : index
    %89 = vector.load %arg9[%c0_43, %88, %c0_44] : memref<1x4x128xf32, #tpu.memory_space<vmem>>, vector<1x1x128xf32>
    %90 = vector.shape_cast %89 : vector<1x1x128xf32> to vector<1x128xf32>
    %91 = vector.shape_cast %87 : vector<1x128xf32> to vector<1x1x128xf32>
    tpu.vector_store %arg9[%c0_43, %88, %c0_44], %91 {strides = array<i32>} : memref<1x4x128xf32, #tpu.memory_space<vmem>>, vector<1x1x128xf32>,
    %c3_i32 = arith.constant 3 : i32
    %92 = arith.index_cast %c3_i32 : i32 to index
    %c0_45 = arith.constant 0 : index
    %93 = vector.load %arg10[%92, %c0_45] : memref<4x128xf32, #tpu.memory_space<vmem>>, vector<1x128xf32>
    %94 = arith.index_cast %c3_i32 : i32 to index
    %c0_46 = arith.constant 0 : index
    %95 = vector.load %arg11[%94, %c0_46] : memref<4x128xf32, #tpu.memory_space<vmem>>, vector<1x128xf32>
    %c0_47 = arith.constant 0 : index
    %96 = arith.index_cast %c3_i32 : i32 to index
    %97 = vector.load %arg12[%c0_47, %96] : memref<16x4xf32, #tpu.memory_space<vmem>>, vector<16x1xf32>
    %c0_48 = arith.constant 0 : index
    %98 = arith.index_cast %c3_i32 : i32 to index
    %c0_49 = arith.constant 0 : index
    %99 = vector.load %arg4[%c0_48, %98, %c0_49] : memref<1x4x16xf32, #tpu.memory_space<vmem>>, vector<1x1x16xf32>
    %100 = vector.shape_cast %99 : vector<1x1x16xf32> to vector<1x16xf32>
    %101 = vector.broadcast %93 : vector<1x128xf32> to vector<16x128xf32>
    %102 = arith.mulf %101, %24 : vector<16x128xf32>
    %103 = math.exp %102 : vector<16x128xf32>
    %104 = arith.mulf %103, %86 : vector<16x128xf32>
    %105 = vector.broadcast %97 : vector<16x1xf32> to vector<16x128xf32>
    %106 = vector.broadcast %95 : vector<1x128xf32> to vector<16x128xf32>
    %107 = arith.mulf %105, %106 : vector<16x128xf32>
    %108 = arith.addf %104, %107 : vector<16x128xf32>
    %cst_50 = arith.constant dense<0.000000e+00> : vector<1x128xf32>
    %109 = tpu.matmul %100, %108, %cst_50 {dimension_numbers = #tpu.dot_dimension_numbers<[1], [0], [0], [1], [0, 0, 1, 1], [], []>} : vector<1x16xf32>, vector<16x128xf32>, vector<1x128xf32> -> vector<1x128xf32>
    %c0_51 = arith.constant 0 : index
    %110 = arith.index_cast %c3_i32 : i32 to index
    %c0_52 = arith.constant 0 : index
    %111 = vector.load %arg9[%c0_51, %110, %c0_52] : memref<1x4x128xf32, #tpu.memory_space<vmem>>, vector<1x1x128xf32>
    %112 = vector.shape_cast %111 : vector<1x1x128xf32> to vector<1x128xf32>
    %113 = vector.shape_cast %109 : vector<1x128xf32> to vector<1x1x128xf32>
    tpu.vector_store %arg9[%c0_51, %110, %c0_52], %113 {strides = array<i32>} : memref<1x4x128xf32, #tpu.memory_space<vmem>>, vector<1x1x128xf32>,
    %c4_i32 = arith.constant 4 : i32
    %c0_53 = arith.constant 0 : index
    %c0_54 = arith.constant 0 : index
    %c0_55 = arith.constant 0 : index
    %114 = vector.load %arg5[%c0_53, %c0_54, %c0_55] : memref<1x4x128xf32, #tpu.memory_space<vmem>>, vector<1x4x128xf32>
    %115 = vector.shape_cast %114 : vector<1x4x128xf32> to vector<4x128xf32>
    %cst_56 = arith.constant 0.000000e+00 : f32
    %116 = vector.broadcast %cst_56 : f32 to vector<4x128xf32>
    %117 = arith.subf %116, %115 : vector<4x128xf32>
    %118 = math.exp %117 : vector<4x128xf32>
    %cst_57 = arith.constant 1.000000e+00 : f32
    %119 = vector.broadcast %cst_57 : f32 to vector<4x128xf32>
    %120 = arith.addf %119, %118 : vector<4x128xf32>
    %cst_58 = arith.constant 1.000000e+00 : f32
    %121 = vector.broadcast %cst_58 : f32 to vector<4x128xf32>
    %122 = arith.divf %121, %120 : vector<4x128xf32>
    %123 = arith.mulf %115, %122 : vector<4x128xf32>
    %c0_59 = arith.constant 0 : index
    %c0_60 = arith.constant 0 : index
    %c0_61 = arith.constant 0 : index
    %124 = vector.load %arg9[%c0_59, %c0_60, %c0_61] : memref<1x4x128xf32, #tpu.memory_space<vmem>>, vector<1x4x128xf32>
    %125 = vector.shape_cast %124 : vector<1x4x128xf32> to vector<4x128xf32>
    %c0_62 = arith.constant 0 : index
    %c0_63 = arith.constant 0 : index
    %126 = vector.load %arg7[%c0_62, %c0_63] : memref<1x128xf32, #tpu.memory_space<vmem>>, vector<1x128xf32>
    %127 = vector.broadcast %126 : vector<1x128xf32> to vector<4x128xf32>
    %128 = arith.mulf %127, %1 : vector<4x128xf32>
    %129 = arith.addf %125, %128 : vector<4x128xf32>
    %130 = arith.mulf %129, %123 : vector<4x128xf32>
    %c0_64 = arith.constant 0 : index
    %c0_65 = arith.constant 0 : index
    %c0_66 = arith.constant 0 : index
    %131 = vector.load %arg9[%c0_64, %c0_65, %c0_66] : memref<1x4x128xf32, #tpu.memory_space<vmem>>, vector<1x4x128xf32>
    %132 = vector.shape_cast %131 : vector<1x4x128xf32> to vector<4x128xf32>
    %133 = vector.shape_cast %130 : vector<4x128xf32> to vector<1x4x128xf32>
    tpu.vector_store %arg9[%c0_64, %c0_65, %c0_66], %133 {strides = array<i32>} : memref<1x4x128xf32, #tpu.memory_space<vmem>>, vector<1x4x128xf32>,
    return
  }
  func.func @transform_0(%arg0: i32) -> (i32, i32, i32) {
    %c0_i32 = arith.constant 0 : i32
    %c0_i32_0 = arith.constant 0 : i32
    %c0_i32_1 = arith.constant 0 : i32
    return %arg0, %c0_i32, %c0_i32_0 : i32, i32, i32
  }
  func.func @transform_1(%arg0: i32) -> (i32, i32, i32) {
    %c0_i32 = arith.constant 0 : i32
    %c0_i32_0 = arith.constant 0 : i32
    %c0_i32_1 = arith.constant 0 : i32
    return %arg0, %c0_i32, %c0_i32_0 : i32, i32, i32
  }
  func.func @transform_2(%arg0: i32) -> (i32, i32, i32) {
    %c0_i32 = arith.constant 0 : i32
    %c0_i32_0 = arith.constant 0 : i32
    %c0_i32_1 = arith.constant 0 : i32
    return %arg0, %c0_i32, %c0_i32_0 : i32, i32, i32
  }
  func.func @transform_3(%arg0: i32) -> (i32, i32, i32) {
    %c0_i32 = arith.constant 0 : i32
    %c0_i32_0 = arith.constant 0 : i32
    %c0_i32_1 = arith.constant 0 : i32
    return %arg0, %c0_i32, %c0_i32_0 : i32, i32, i32
  }
  func.func @transform_4(%arg0: i32) -> (i32, i32, i32) {
    %c0_i32 = arith.constant 0 : i32
    %c0_i32_0 = arith.constant 0 : i32
    %c0_i32_1 = arith.constant 0 : i32
    return %arg0, %c0_i32, %c0_i32_0 : i32, i32, i32
  }
  func.func @transform_5(%arg0: i32) -> (i32, i32) {
    %c0_i32 = arith.constant 0 : i32
    %c0_i32_0 = arith.constant 0 : i32
    %c0_i32_1 = arith.constant 0 : i32
    return %c0_i32, %c0_i32_0 : i32, i32
  }
  func.func @transform_6(%arg0: i32) -> (i32, i32) {
    %c0_i32 = arith.constant 0 : i32
    %c0_i32_0 = arith.constant 0 : i32
    %c0_i32_1 = arith.constant 0 : i32
    return %c0_i32, %c0_i32_0 : i32, i32
  }
  func.func @transform_7(%arg0: i32) -> (i32, i32) {
    %c0_i32 = arith.constant 0 : i32
    %c0_i32_0 = arith.constant 0 : i32
    %c0_i32_1 = arith.constant 0 : i32
    return %c0_i32, %c0_i32_0 : i32, i32
  }
  func.func @transform_8(%arg0: i32) -> (i32, i32, i32) {
    %c0_i32 = arith.constant 0 : i32
    %c0_i32_0 = arith.constant 0 : i32
    %c0_i32_1 = arith.constant 0 : i32
    return %arg0, %c0_i32, %c0_i32_0 : i32, i32, i32
  }
}

module attributes {stable_mosaic.version = 11 : i64} {
  func.func @kernel(%arg0: i32, %arg1: memref<8x64xf32, #tpu.memory_space<vmem>>, %arg2: memref<1x64xf32, #tpu.memory_space<vmem>>, %arg3: memref<1x64xf32, #tpu.memory_space<vmem>>, %arg4: memref<8x64xf32, #tpu.memory_space<vmem>>) attributes {dimension_semantics = [#tpu.dimension_semantics<parallel>], iteration_bounds = array<i64: 1>, scalar_prefetch = 0 : i64, scratch_operands = 0 : i64, tpu.core_type = #tpu.core_type<tc>, window_params = [{transform_indices = @transform_0, window_bounds = array<i64: 8, 64>}, {pipeline_mode = #tpu.pipeline_mode<synchronous>, transform_indices = @transform_1, window_bounds = array<i64: 1, 64>}, {pipeline_mode = #tpu.pipeline_mode<synchronous>, transform_indices = @transform_2, window_bounds = array<i64: 1, 64>}, {transform_indices = @transform_3, window_bounds = array<i64: 8, 64>}]} {
    %c0 = arith.constant 0 : index
    %c0_0 = arith.constant 0 : index
    %0 = vector.load %arg1[%c0, %c0_0] : memref<8x64xf32, #tpu.memory_space<vmem>>, vector<8x64xf32>
    %cst = arith.constant dense<0.000000e+00> : vector<8xf32>
    %1 = vector.multi_reduction <add>, %0, %cst [1] : vector<8x64xf32> to vector<8xf32>
    %2 = vector.shape_cast %1 : vector<8xf32> to vector<8x1xf32>
    %cst_1 = arith.constant 6.400000e+01 : f32
    %3 = vector.broadcast %cst_1 : f32 to vector<8x1xf32>
    %4 = arith.divf %2, %3 : vector<8x1xf32>
    %5 = vector.broadcast %4 : vector<8x1xf32> to vector<8x64xf32>
    %6 = arith.subf %0, %5 : vector<8x64xf32>
    %7 = arith.mulf %6, %6 : vector<8x64xf32>
    %cst_2 = arith.constant dense<0.000000e+00> : vector<8xf32>
    %8 = vector.multi_reduction <add>, %7, %cst_2 [1] : vector<8x64xf32> to vector<8xf32>
    %9 = vector.shape_cast %8 : vector<8xf32> to vector<8x1xf32>
    %cst_3 = arith.constant 6.400000e+01 : f32
    %10 = vector.broadcast %cst_3 : f32 to vector<8x1xf32>
    %11 = arith.divf %9, %10 : vector<8x1xf32>
    %cst_4 = arith.constant 9.99999974E-6 : f32
    %12 = vector.broadcast %cst_4 : f32 to vector<8x1xf32>
    %13 = arith.addf %11, %12 : vector<8x1xf32>
    %14 = math.rsqrt %13 : vector<8x1xf32>
    %15 = vector.broadcast %14 : vector<8x1xf32> to vector<8x64xf32>
    %16 = arith.mulf %6, %15 : vector<8x64xf32>
    %c0_5 = arith.constant 0 : index
    %c0_6 = arith.constant 0 : index
    %17 = vector.load %arg2[%c0_5, %c0_6] : memref<1x64xf32, #tpu.memory_space<vmem>>, vector<1x64xf32>
    %18 = vector.broadcast %17 : vector<1x64xf32> to vector<8x64xf32>
    %19 = arith.mulf %16, %18 : vector<8x64xf32>
    %c0_7 = arith.constant 0 : index
    %c0_8 = arith.constant 0 : index
    %20 = vector.load %arg3[%c0_7, %c0_8] : memref<1x64xf32, #tpu.memory_space<vmem>>, vector<1x64xf32>
    %21 = vector.broadcast %20 : vector<1x64xf32> to vector<8x64xf32>
    %22 = arith.addf %19, %21 : vector<8x64xf32>
    %c0_9 = arith.constant 0 : index
    %c0_10 = arith.constant 0 : index
    %23 = vector.load %arg4[%c0_9, %c0_10] : memref<8x64xf32, #tpu.memory_space<vmem>>, vector<8x64xf32>
    tpu.vector_store %arg4[%c0_9, %c0_10], %22 {strides = array<i32>} : memref<8x64xf32, #tpu.memory_space<vmem>>, vector<8x64xf32>,
    return
  }
  func.func @transform_0(%arg0: i32) -> (i32, i32) {
    %c0_i32 = arith.constant 0 : i32
    %c0_i32_0 = arith.constant 0 : i32
    return %arg0, %c0_i32 : i32, i32
  }
  func.func @transform_1(%arg0: i32) -> (i32, i32) {
    %c0_i32 = arith.constant 0 : i32
    %c0_i32_0 = arith.constant 0 : i32
    %c0_i32_1 = arith.constant 0 : i32
    return %c0_i32, %c0_i32_0 : i32, i32
  }
  func.func @transform_2(%arg0: i32) -> (i32, i32) {
    %c0_i32 = arith.constant 0 : i32
    %c0_i32_0 = arith.constant 0 : i32
    %c0_i32_1 = arith.constant 0 : i32
    return %c0_i32, %c0_i32_0 : i32, i32
  }
  func.func @transform_3(%arg0: i32) -> (i32, i32) {
    %c0_i32 = arith.constant 0 : i32
    %c0_i32_0 = arith.constant 0 : i32
    return %arg0, %c0_i32 : i32, i32
  }
}

module attributes {stable_mosaic.version = 11 : i64} {
  func.func @kernel(%arg0: i32, %arg1: memref<2x4x64xf32, #tpu.memory_space<vmem>>, %arg2: memref<2x64xf32, #tpu.memory_space<vmem>>) attributes {dimension_semantics = [#tpu.dimension_semantics<arbitrary>], iteration_bounds = array<i64: 1>, scalar_prefetch = 0 : i64, scratch_operands = 0 : i64, tpu.core_type = #tpu.core_type<tc>, window_params = [{pipeline_mode = #tpu.pipeline_mode<synchronous>, transform_indices = @transform_0, window_bounds = array<i64: 2, 4, 64>}, {pipeline_mode = #tpu.pipeline_mode<synchronous>, transform_indices = @transform_1, window_bounds = array<i64: 2, 64>}]} {
    %c0 = arith.constant 0 : index
    %c0_0 = arith.constant 0 : index
    %c0_1 = arith.constant 0 : index
    %0 = vector.load %arg1[%c0, %c0_0, %c0_1] : memref<2x4x64xf32, #tpu.memory_space<vmem>>, vector<2x4x64xf32>
    %cst = arith.constant dense<0.000000e+00> : vector<2x64xf32>
    %1 = vector.multi_reduction <add>, %0, %cst [1] : vector<2x4x64xf32> to vector<2x64xf32>
    %cst_2 = arith.constant 4.000000e+00 : f32
    %2 = vector.broadcast %cst_2 : f32 to vector<2x64xf32>
    %3 = arith.divf %1, %2 : vector<2x64xf32>
    %c0_3 = arith.constant 0 : index
    %c0_4 = arith.constant 0 : index
    %4 = vector.load %arg2[%c0_3, %c0_4] : memref<2x64xf32, #tpu.memory_space<vmem>>, vector<2x64xf32>
    tpu.vector_store %arg2[%c0_3, %c0_4], %3 {strides = array<i32>} : memref<2x64xf32, #tpu.memory_space<vmem>>, vector<2x64xf32>,
    return
  }
  func.func @transform_0(%arg0: i32) -> (i32, i32, i32) {
    %c0_i32 = arith.constant 0 : i32
    %c0_i32_0 = arith.constant 0 : i32
    %c0_i32_1 = arith.constant 0 : i32
    %c0_i32_2 = arith.constant 0 : i32
    return %c0_i32, %c0_i32_0, %c0_i32_1 : i32, i32, i32
  }
  func.func @transform_1(%arg0: i32) -> (i32, i32) {
    %c0_i32 = arith.constant 0 : i32
    %c0_i32_0 = arith.constant 0 : i32
    %c0_i32_1 = arith.constant 0 : i32
    return %c0_i32, %c0_i32_0 : i32, i32
  }
}

module attributes {stable_mosaic.version = 11 : i64} {
  func.func @_matmul_bias_kernel(%arg0: i32, %arg1: memref<2x64xbf16, #tpu.memory_space<vmem>>, %arg2: memref<64x10xbf16, #tpu.memory_space<vmem>>, %arg3: memref<1x10xf32, #tpu.memory_space<vmem>>, %arg4: memref<2x10xf32, #tpu.memory_space<vmem>>) attributes {dimension_semantics = [#tpu.dimension_semantics<parallel>], iteration_bounds = array<i64: 1>, scalar_prefetch = 0 : i64, scratch_operands = 0 : i64, tpu.core_type = #tpu.core_type<tc>, window_params = [{transform_indices = @transform_0, window_bounds = array<i64: 2, 64>}, {pipeline_mode = #tpu.pipeline_mode<synchronous>, transform_indices = @transform_1, window_bounds = array<i64: 64, 10>}, {pipeline_mode = #tpu.pipeline_mode<synchronous>, transform_indices = @transform_2, window_bounds = array<i64: 1, 10>}, {transform_indices = @transform_3, window_bounds = array<i64: 2, 10>}]} {
    %c0 = arith.constant 0 : index
    %c0_0 = arith.constant 0 : index
    %0 = vector.load %arg1[%c0, %c0_0] : memref<2x64xbf16, #tpu.memory_space<vmem>>, vector<2x64xbf16>
    %c0_1 = arith.constant 0 : index
    %c0_2 = arith.constant 0 : index
    %1 = vector.load %arg2[%c0_1, %c0_2] : memref<64x10xbf16, #tpu.memory_space<vmem>>, vector<64x10xbf16>
    %cst = arith.constant dense<0.000000e+00> : vector<2x10xf32>
    %2 = tpu.matmul %0, %1, %cst {dimension_numbers = #tpu.dot_dimension_numbers<[1], [0], [0], [1], [0, 0, 1, 1], [], []>} : vector<2x64xbf16>, vector<64x10xbf16>, vector<2x10xf32> -> vector<2x10xf32>
    %c0_3 = arith.constant 0 : index
    %c0_4 = arith.constant 0 : index
    %3 = vector.load %arg3[%c0_3, %c0_4] : memref<1x10xf32, #tpu.memory_space<vmem>>, vector<1x10xf32>
    %4 = vector.broadcast %3 : vector<1x10xf32> to vector<2x10xf32>
    %5 = arith.addf %2, %4 : vector<2x10xf32>
    %c0_5 = arith.constant 0 : index
    %c0_6 = arith.constant 0 : index
    %6 = vector.load %arg4[%c0_5, %c0_6] : memref<2x10xf32, #tpu.memory_space<vmem>>, vector<2x10xf32>
    tpu.vector_store %arg4[%c0_5, %c0_6], %5 {strides = array<i32>} : memref<2x10xf32, #tpu.memory_space<vmem>>, vector<2x10xf32>,
    return
  }
  func.func @transform_0(%arg0: i32) -> (i32, i32) {
    %c0_i32 = arith.constant 0 : i32
    %c0_i32_0 = arith.constant 0 : i32
    return %arg0, %c0_i32 : i32, i32
  }
  func.func @transform_1(%arg0: i32) -> (i32, i32) {
    %c0_i32 = arith.constant 0 : i32
    %c0_i32_0 = arith.constant 0 : i32
    %c0_i32_1 = arith.constant 0 : i32
    return %c0_i32, %c0_i32_0 : i32, i32
  }
  func.func @transform_2(%arg0: i32) -> (i32, i32) {
    %c0_i32 = arith.constant 0 : i32
    %c0_i32_0 = arith.constant 0 : i32
    %c0_i32_1 = arith.constant 0 : i32
    return %c0_i32, %c0_i32_0 : i32, i32
  }
  func.func @transform_3(%arg0: i32) -> (i32, i32) {
    %c0_i32 = arith.constant 0 : i32
    %c0_i32_0 = arith.constant 0 : i32
    return %arg0, %c0_i32 : i32, i32
  }
}

</mosaic_0001>

<llo_original>
// kernel: run.20
$region0: #{run.20}
  #allocation0 [shape = 'u32[]', space=smem, size = 0x4, offset = 0x4, fixed_abs, tag = 'smem constant byte address 0x4 - core index']
  #allocation1 [shape = 'u32[72,128]{1,0:T(1,128)}', space=vmem, size = 0x9000, scoped, tag = 'internal scratch']
  %s0 = inlined_call_operand.vmem [shape: f32[32,32], index: 0, kind: input, shape index: {}]
  %s1 = inlined_call_operand.vmem [shape: f32[1,32], index: 1, kind: input, shape index: {}]
  %s2 = inlined_call_operand.vmem [shape: f32[1,32], index: 2, kind: input, shape index: {}]
  %s3 = inlined_call_operand.vmem [shape: f32[32,32], index: 3, kind: output, shape index: {}]
  %s4 = sld [smem:[#allocation0]]
  $region22: #{run.20} parent=0
    _
  %s6 = ssub.s32 1, %s4
  %s7 = scalar_select 0, %s6, %s4
  // Predicated region
  $region2: #{run.20} parent=0 // pred_check
    _
  $region3: #{run.20} parent=0 // pred_check_branch
    %9 = sbr.rel (0) target = $region5
  $region4: #{run.20} parent=0 // pred_region
    _
  $region5: #{run.20} parent=0 // pred_fallthru
    _
  // Predicated region
  $region6: #{run.20} parent=0 // pred_check
    _
  $region7: #{run.20} parent=0 // pred_check_branch
    %11 = sbr.rel (0) target = $region9
  $region8: #{run.20} parent=0 // pred_region
    _
  $region9: #{run.20} parent=0 // pred_fallthru
    _
  // Predicated region
  $region10: #{run.20} parent=0 // pred_check
    _
  $region11: #{run.20} parent=0 // pred_check_branch
    %13 = sbr.rel (0) target = $region13
  $region12: #{run.20} parent=0 // pred_region
    _
  $region13: #{run.20} parent=0 // pred_fallthru
    _
  %v14 = vld [vmem:[%s0] sm:$0xff]
  %v15 = vld [vmem:[%s0 + $0x8] sm:$0xff]
  %v16 = vld [vmem:[%s0 + $0x10] sm:$0xff]
  %v17 = vld [vmem:[%s0 + $0x18] sm:$0xff]
  %vm18 = vcmask 261120
  %v19 = vsel %vm18, %v14, 0.0
  %20 = vadd.xlane.f32.xlu0 %v19
  %v21 = vpop.xlane.xlu0 %20
  %v22 = vsel %vm18, %v15, 0.0
  %23 = vadd.xlane.f32.xlu0 %v22
  %v24 = vpop.xlane.xlu0 %23
  %v25 = vsel %vm18, %v16, 0.0
  %26 = vadd.xlane.f32.xlu0 %v25
  %v27 = vpop.xlane.xlu0 %26
  %v28 = vsel %vm18, %v17, 0.0
  %29 = vadd.xlane.f32.xlu0 %v28
  %v30 = vpop.xlane.xlu0 %29
  %v31 = vrcp.pop 32.0
  %v32 = vmul.f32 32.0, %v31
  %v33 = vsub.f32 1.0, %v32
  %v34 = vmul.f32 %v31, %v33
  %v35 = vadd.f32 %v31, %v34
  %vm36 = vweird.f32 %v31
  %v37 = vsel %vm36, %v31, %v35
  %v38 = vmul.f32 %v21, %v37
  %v39 = vmul.f32 %v24, %v37
  %v40 = vmul.f32 %v27, %v37
  %v41 = vmul.f32 %v30, %v37
  %v42 = vsub.f32 %v14, %v38
  %v43 = vsub.f32 %v15, %v39
  %v44 = vsub.f32 %v16, %v40
  %v45 = vsub.f32 %v17, %v41
  %v46 = vmul.f32 %v42, %v42
  %v47 = vmul.f32 %v43, %v43
  %v48 = vmul.f32 %v44, %v44
  %v49 = vmul.f32 %v45, %v45
  %v50 = vsel %vm18, %v46, 0.0
  %51 = vadd.xlane.f32.xlu0 %v50
  %v52 = vpop.xlane.xlu0 %51
  %v53 = vsel %vm18, %v47, 0.0
  %54 = vadd.xlane.f32.xlu0 %v53
  %v55 = vpop.xlane.xlu0 %54
  %v56 = vsel %vm18, %v48, 0.0
  %57 = vadd.xlane.f32.xlu0 %v56
  %v58 = vpop.xlane.xlu0 %57
  %v59 = vsel %vm18, %v49, 0.0
  %60 = vadd.xlane.f32.xlu0 %v59
  %v61 = vpop.xlane.xlu0 %60
  %v62 = vmul.f32 %v52, %v37
  %v63 = vmul.f32 %v55, %v37
  %v64 = vmul.f32 %v58, %v37
  %v65 = vmul.f32 %v61, %v37
  %v66 = vadd.f32 %v62, 1e-05
  %v67 = vadd.f32 %v63, 1e-05
  %v68 = vadd.f32 %v64, 1e-05
  %v69 = vadd.f32 %v65, 1e-05
  %v70 = vrsqrt.pop %v66
  %v71 = vmul.f32 %v70, %v66
  %v72 = vmul.f32 %v71, %v70
  %v73 = vmul.f32 0.5, %v72
  %v74 = vsub.f32 1.5, %v73
  %v75 = vmul.f32 %v70, %v74
  %vm76 = vweird.f32 %v66
  %vm77 = vweird.f32 %v70
  %vm78 = vmor %vm76, %vm77
  %v79 = vsel %vm78, %v70, %v75
  %v80 = vrsqrt.pop %v67
  %v81 = vmul.f32 %v80, %v67
  %v82 = vmul.f32 %v81, %v80
  %v83 = vmul.f32 0.5, %v82
  %v84 = vsub.f32 1.5, %v83
  %v85 = vmul.f32 %v80, %v84
  %vm86 = vweird.f32 %v67
  %vm87 = vweird.f32 %v80
  %vm88 = vmor %vm86, %vm87
  %v89 = vsel %vm88, %v80, %v85
  %v90 = vrsqrt.pop %v68
  %v91 = vmul.f32 %v90, %v68
  %v92 = vmul.f32 %v91, %v90
  %v93 = vmul.f32 0.5, %v92
  %v94 = vsub.f32 1.5, %v93
  %v95 = vmul.f32 %v90, %v94
  %vm96 = vweird.f32 %v68
  %vm97 = vweird.f32 %v90
  %vm98 = vmor %vm96, %vm97
  %v99 = vsel %vm98, %v90, %v95
  %v100 = vrsqrt.pop %v69
  %v101 = vmul.f32 %v100, %v69
  %v102 = vmul.f32 %v101, %v100
  %v103 = vmul.f32 0.5, %v102
  %v104 = vsub.f32 1.5, %v103
  %v105 = vmul.f32 %v100, %v104
  %vm106 = vweird.f32 %v69
  %vm107 = vweird.f32 %v100
  %vm108 = vmor %vm106, %vm107
  %v109 = vsel %vm108, %v100, %v105
  %v110 = vmul.f32 %v42, %v79
  %v111 = vmul.f32 %v43, %v89
  %v112 = vmul.f32 %v44, %v99
  %v113 = vmul.f32 %v45, %v109
  %v114 = vld [vmem:[%s1] sm:$0x1]
  %v116 = vperm.slane %v114, 0
  %v118 = vmul.f32 %v110, %v116
  %v119 = vmul.f32 %v111, %v116
  %v120 = vmul.f32 %v112, %v116
  %v121 = vmul.f32 %v113, %v116
  %v122 = vld [vmem:[%s2] sm:$0x1]
  %v124 = vperm.slane %v122, 0
  %v126 = vadd.f32 %v118, %v124
  %v127 = vadd.f32 %v119, %v124
  %v128 = vadd.f32 %v120, %v124
  %v129 = vadd.f32 %v121, %v124
  %130 = vst.msk [vmem:[%s3] sm:$0xff] %vm18, %v126
  %131 = vst.msk [vmem:[%s3 + $0x8] sm:$0xff] %vm18, %v127
  %132 = vst.msk [vmem:[%s3 + $0x10] sm:$0xff] %vm18, %v128
  %133 = vst.msk [vmem:[%s3 + $0x18] sm:$0xff] %vm18, %v129
  // Predicated region
  $region14: #{run.20} parent=0 // pred_check
    _
  $region15: #{run.20} parent=0 // pred_check_branch
    %135 = sbr.rel (0) target = $region17
  $region16: #{run.20} parent=0 // pred_region
    _
  $region17: #{run.20} parent=0 // pred_fallthru
    _
  // Predicated region
  $region18: #{run.20} parent=0 // pred_check
    _
  $region19: #{run.20} parent=0 // pred_check_branch
    %137 = sbr.rel (0) target = $region21
  $region20: #{run.20} parent=0 // pred_region
    _
  $region21: #{run.20} parent=0 // pred_fallthru
    _

// kernel: run.19
$region0: #{run.19}
  #allocation0 [shape = 'u32[]', space=smem, size = 0x4, offset = 0x4, fixed_abs, tag = 'smem constant byte address 0x4 - core index']
  #allocation1 [shape = 'u32[72,128]{1,0:T(1,128)}', space=vmem, size = 0x9000, scoped, tag = 'internal scratch']
  %s0 = inlined_call_operand.vmem [shape: bf16[32,48], index: 0, kind: input, shape index: {}]
  %s1 = inlined_call_operand.vmem [shape: bf16[48,32], index: 1, kind: input, shape index: {}]
  %s2 = inlined_call_operand.vmem [shape: f32[1,32], index: 2, kind: input, shape index: {}]
  %s3 = inlined_call_operand.vmem [shape: f32[32,32], index: 3, kind: output, shape index: {}]
  %s4 = sld [smem:[#allocation0]]
  $region22: #{run.19} parent=0
    _
  %s6 = ssub.s32 1, %s4
  %s7 = scalar_select 0, %s6, %s4
  // Predicated region
  $region2: #{run.19} parent=0 // pred_check
    _
  $region3: #{run.19} parent=0 // pred_check_branch
    %9 = sbr.rel (0) target = $region5
  $region4: #{run.19} parent=0 // pred_region
    _
  $region5: #{run.19} parent=0 // pred_fallthru
    _
  // Predicated region
  $region6: #{run.19} parent=0 // pred_check
    _
  $region7: #{run.19} parent=0 // pred_check_branch
    %11 = sbr.rel (0) target = $region9
  $region8: #{run.19} parent=0 // pred_region
    _
  $region9: #{run.19} parent=0 // pred_fallthru
    _
  // Predicated region
  $region10: #{run.19} parent=0 // pred_check
    _
  $region11: #{run.19} parent=0 // pred_check_branch
    %13 = sbr.rel (0) target = $region13
  $region12: #{run.19} parent=0 // pred_region
    _
  $region13: #{run.19} parent=0 // pred_fallthru
    _
  %v15 = vld [vmem:[%s0] sm:$0xf]
  %v16 = vld [vmem:[%s0 + $0x4] sm:$0xf]
  %v17 = vld [vmem:[%s0 + $0x8] sm:$0xf]
  %v18 = vld [vmem:[%s0 + $0xc] sm:$0xf]
  %v19 = vld [vmem:[%s1] sm:$0xf]
  %v20 = vld [vmem:[%s1 + $0x4] sm:$0xf]
  %v21 = vld [vmem:[%s1 + $0x8] sm:$0xf]
  %v22 = vld [vmem:[%s1 + $0xc] sm:$0xf]
  %v23 = vld [vmem:[%s1 + $0x10] sm:$0xf]
  %v24 = vld [vmem:[%s1 + $0x14] sm:$0xf]
  %v25 = vld [vmem:[%s2] sm:$0x1]
  %v27 = vperm.slane %v25, 0
  %v33 = vunpack.c.l.b16 %v15
  %v34 = vunpack.c.l.b16 %v16
  %v35 = vunpack.c.l.b16 %v17
  %v36 = vunpack.c.l.b16 %v18
  %v37 = vpack.c.b16 %v34, %v33
  %v38 = vpack.c.b16 %v36, %v35
  %v45 = vunpack.c.l.b16 %v19
  %v46 = vunpack.c.l.b16 %v20
  %v47 = vunpack.c.l.b16 %v21
  %v48 = vunpack.c.l.b16 %v22
  %v49 = vunpack.c.l.b16 %v23
  %v50 = vunpack.c.l.b16 %v24
  %v51 = vpack.c.b16 %v46, %v45
  %v52 = vpack.c.b16 %v48, %v47
  %v53 = vpack.c.b16 %v50, %v49
  %vm57 = vcmask 392192
  %v59 = vsel %vm57, %v37, 0
  %v62 = vsel %vm57, %v38, 0
  %64 = vmatpush.bf16.msra.mxu0 0
  %65 = vmatpush.bf16.msra.mxu0 0
  %66 = vmatpush.bf16.msra.mxu0 0
  %67 = vmatpush.bf16.msra.mxu0 0
  %68 = vmatpush.bf16.msra.mxu0 0
  %69 = vmatpush.bf16.msra.mxu0 %v53
  %70 = vmatpush.bf16.msra.mxu0 %v52
  %71 = vmatpush.bf16.msra.mxu0 %v51
  %72 = vmatmul.bf16.gmra.mxu0 %v59
  %v73 = vpop.f32.mrf.mxu0
  %v74 = vadd.f32 %v27, %v73
  %v75 = vpop.f32.mrf.mxu0
  %v76 = vadd.f32 %v27, %v75
  %77 = vmatmul.bf16.gmra.mxu0 %v62
  %v78 = vpop.f32.mrf.mxu0
  %v79 = vadd.f32 %v27, %v78
  %v80 = vpop.f32.mrf.mxu0
  %v81 = vadd.f32 %v27, %v80
  %82 = vdwg.mxu0
  %vm83 = vcmask 261120
  %84 = vst.msk [vmem:[%s3] sm:$0xff] %vm83, %v74
  %85 = vst.msk [vmem:[%s3 + $0x8] sm:$0xff] %vm83, %v76
  %86 = vst.msk [vmem:[%s3 + $0x10] sm:$0xff] %vm83, %v79
  %87 = vst.msk [vmem:[%s3 + $0x18] sm:$0xff] %vm83, %v81
  // Predicated region
  $region14: #{run.19} parent=0 // pred_check
    _
  $region15: #{run.19} parent=0 // pred_check_branch
    %89 = sbr.rel (0) target = $region17
  $region16: #{run.19} parent=0 // pred_region
    _
  $region17: #{run.19} parent=0 // pred_fallthru
    _
  // Predicated region
  $region18: #{run.19} parent=0 // pred_check
    _
  $region19: #{run.19} parent=0 // pred_check_branch
    %91 = sbr.rel (0) target = $region21
  $region20: #{run.19} parent=0 // pred_region
    _
  $region21: #{run.19} parent=0 // pred_fallthru
    _

// kernel: run.22
$region0: #{run.22}
  #allocation0 [shape = 'u32[]', space=smem, size = 0x4, offset = 0x4, fixed_abs, tag = 'smem constant byte address 0x4 - core index']
  #allocation1 [shape = 'u32[72,128]{1,0:T(1,128)}', space=vmem, size = 0x9000, scoped, tag = 'internal scratch']
  %s0 = inlined_call_operand.vmem [shape: bf16[32,32], index: 0, kind: input, shape index: {}]
  %s1 = inlined_call_operand.vmem [shape: bf16[32,128], index: 1, kind: input, shape index: {}]
  %s2 = inlined_call_operand.vmem [shape: f32[32,128], index: 2, kind: output, shape index: {}]
  %s3 = sld [smem:[#allocation0]]
  $region18: #{run.22} parent=0
    _
  %s5 = ssub.s32 1, %s3
  %s6 = scalar_select 0, %s5, %s3
  // Predicated region
  $region2: #{run.22} parent=0 // pred_check
    _
  $region3: #{run.22} parent=0 // pred_check_branch
    %8 = sbr.rel (0) target = $region5
  $region4: #{run.22} parent=0 // pred_region
    _
  $region5: #{run.22} parent=0 // pred_fallthru
    _
  // Predicated region
  $region6: #{run.22} parent=0 // pred_check
    _
  $region7: #{run.22} parent=0 // pred_check_branch
    %10 = sbr.rel (0) target = $region9
  $region8: #{run.22} parent=0 // pred_region
    _
  $region9: #{run.22} parent=0 // pred_fallthru
    _
  %v12 = vld [vmem:[%s0] sm:$0xf]
  %v13 = vld [vmem:[%s0 + $0x4] sm:$0xf]
  %v14 = vld [vmem:[%s0 + $0x8] sm:$0xf]
  %v15 = vld [vmem:[%s0 + $0xc] sm:$0xf]
  %v16 = vld [vmem:[%s1] sm:$0xf]
  %v17 = vld [vmem:[%s1 + $0x4] sm:$0xf]
  %v18 = vld [vmem:[%s1 + $0x8] sm:$0xf]
  %v19 = vld [vmem:[%s1 + $0xc] sm:$0xf]
  %v24 = vunpack.c.l.b16 %v12
  %v25 = vunpack.c.l.b16 %v13
  %v26 = vunpack.c.l.b16 %v14
  %v27 = vunpack.c.l.b16 %v15
  %v28 = vpack.c.b16 %v25, %v24
  %v29 = vpack.c.b16 %v27, %v26
  %v34 = vunpack.c.l.b16 %v16
  %v35 = vunpack.c.l.b16 %v17
  %v36 = vunpack.c.l.b16 %v18
  %v37 = vunpack.c.l.b16 %v19
  %v38 = vpack.c.b16 %v35, %v34
  %v39 = vpack.c.b16 %v37, %v36
  %vm42 = vcmask 261120
  %v44 = vsel %vm42, %v28, 0
  %v47 = vsel %vm42, %v29, 0
  %49 = vmatpush.bf16.msra.mxu0 0
  %50 = vmatpush.bf16.msra.mxu0 0
  %51 = vmatpush.bf16.msra.mxu0 0
  %52 = vmatpush.bf16.msra.mxu0 0
  %53 = vmatpush.bf16.msra.mxu0 0
  %54 = vmatpush.bf16.msra.mxu0 0
  %55 = vmatpush.bf16.msra.mxu0 %v39
  %56 = vmatpush.bf16.msra.mxu0 %v38
  %57 = vmatmul.bf16.gmra.mxu0 %v44
  %v58 = vpop.f32.mrf.mxu0
  %v59 = vadd.f32 0.0, %v58
  %v60 = vpop.f32.mrf.mxu0
  %v61 = vadd.f32 0.0, %v60
  %62 = vmatmul.bf16.gmra.mxu0 %v47
  %v63 = vpop.f32.mrf.mxu0
  %v64 = vadd.f32 0.0, %v63
  %v65 = vpop.f32.mrf.mxu0
  %v66 = vadd.f32 0.0, %v65
  %67 = vdwg.mxu0
  %68 = vst [vmem:[%s2] sm:$0xff] %v59
  %69 = vst [vmem:[%s2 + $0x8] sm:$0xff] %v61
  %70 = vst [vmem:[%s2 + $0x10] sm:$0xff] %v64
  %71 = vst [vmem:[%s2 + $0x18] sm:$0xff] %v66
  // Predicated region
  $region10: #{run.22} parent=0 // pred_check
    _
  $region11: #{run.22} parent=0 // pred_check_branch
    %73 = sbr.rel (0) target = $region13
  $region12: #{run.22} parent=0 // pred_region
    _
  $region13: #{run.22} parent=0 // pred_fallthru
    _
  // Predicated region
  $region14: #{run.22} parent=0 // pred_check
    _
  $region15: #{run.22} parent=0 // pred_check_branch
    %75 = sbr.rel (0) target = $region17
  $region16: #{run.22} parent=0 // pred_region
    _
  $region17: #{run.22} parent=0 // pred_fallthru
    _

// kernel: run.21
$region0: #{run.21}
  #allocation0 [shape = 'u32[]', space=smem, size = 0x4, offset = 0x4, fixed_abs, tag = 'smem constant byte address 0x4 - core index']
  #allocation1 [shape = 'u32[72,128]{1,0:T(1,128)}', space=vmem, size = 0x9000, scoped, tag = 'internal scratch']
  %s0 = inlined_call_operand.vmem [shape: f32[32,32], index: 0, kind: input, shape index: {}]
  %s1 = inlined_call_operand.vmem [shape: f32[1,32], index: 1, kind: input, shape index: {}]
  %s2 = inlined_call_operand.vmem [shape: f32[32,32], index: 2, kind: output, shape index: {}]
  %s3 = sld [smem:[#allocation0]]
  $region18: #{run.21} parent=0
    _
  %s5 = ssub.s32 1, %s3
  %s6 = scalar_select 0, %s5, %s3
  // Predicated region
  $region2: #{run.21} parent=0 // pred_check
    _
  $region3: #{run.21} parent=0 // pred_check_branch
    %8 = sbr.rel (0) target = $region5
  $region4: #{run.21} parent=0 // pred_region
    _
  $region5: #{run.21} parent=0 // pred_fallthru
    _
  // Predicated region
  $region6: #{run.21} parent=0 // pred_check
    _
  $region7: #{run.21} parent=0 // pred_check_branch
    %10 = sbr.rel (0) target = $region9
  $region8: #{run.21} parent=0 // pred_region
    _
  $region9: #{run.21} parent=0 // pred_fallthru
    _
  %v11 = vld [vmem:[%s0] sm:$0xff]
  %v12 = vld [vmem:[%s0 + $0x8] sm:$0xff]
  %v13 = vld [vmem:[%s0 + $0x10] sm:$0xff]
  %v14 = vld [vmem:[%s0 + $0x18] sm:$0xff]
  %v15 = vmul.f32 %v11, %v11
  %v16 = vmul.f32 %v12, %v12
  %v17 = vmul.f32 %v13, %v13
  %v18 = vmul.f32 %v14, %v14
  %vm19 = vcmask 261120
  %v20 = vsel %vm19, %v15, 0.0
  %21 = vadd.xlane.f32.xlu0 %v20
  %v22 = vpop.xlane.xlu0 %21
  %v23 = vsel %vm19, %v16, 0.0
  %24 = vadd.xlane.f32.xlu0 %v23
  %v25 = vpop.xlane.xlu0 %24
  %v26 = vsel %vm19, %v17, 0.0
  %27 = vadd.xlane.f32.xlu0 %v26
  %v28 = vpop.xlane.xlu0 %27
  %v29 = vsel %vm19, %v18, 0.0
  %30 = vadd.xlane.f32.xlu0 %v29
  %v31 = vpop.xlane.xlu0 %30
  %v32 = vrcp.pop 32.0
  %v33 = vmul.f32 32.0, %v32
  %v34 = vsub.f32 1.0, %v33
  %v35 = vmul.f32 %v32, %v34
  %v36 = vadd.f32 %v32, %v35
  %vm37 = vweird.f32 %v32
  %v38 = vsel %vm37, %v32, %v36
  %v39 = vmul.f32 %v22, %v38
  %v40 = vmul.f32 %v25, %v38
  %v41 = vmul.f32 %v28, %v38
  %v42 = vmul.f32 %v31, %v38
  %v43 = vadd.f32 %v39, 1e-05
  %v44 = vadd.f32 %v40, 1e-05
  %v45 = vadd.f32 %v41, 1e-05
  %v46 = vadd.f32 %v42, 1e-05
  %v47 = vrsqrt.pop %v43
  %v48 = vmul.f32 %v47, %v43
  %v49 = vmul.f32 %v48, %v47
  %v50 = vmul.f32 0.5, %v49
  %v51 = vsub.f32 1.5, %v50
  %v52 = vmul.f32 %v47, %v51
  %vm53 = vweird.f32 %v43
  %vm54 = vweird.f32 %v47
  %vm55 = vmor %vm53, %vm54
  %v56 = vsel %vm55, %v47, %v52
  %v57 = vrsqrt.pop %v44
  %v58 = vmul.f32 %v57, %v44
  %v59 = vmul.f32 %v58, %v57
  %v60 = vmul.f32 0.5, %v59
  %v61 = vsub.f32 1.5, %v60
  %v62 = vmul.f32 %v57, %v61
  %vm63 = vweird.f32 %v44
  %vm64 = vweird.f32 %v57
  %vm65 = vmor %vm63, %vm64
  %v66 = vsel %vm65, %v57, %v62
  %v67 = vrsqrt.pop %v45
  %v68 = vmul.f32 %v67, %v45
  %v69 = vmul.f32 %v68, %v67
  %v70 = vmul.f32 0.5, %v69
  %v71 = vsub.f32 1.5, %v70
  %v72 = vmul.f32 %v67, %v71
  %vm73 = vweird.f32 %v45
  %vm74 = vweird.f32 %v67
  %vm75 = vmor %vm73, %vm74
  %v76 = vsel %vm75, %v67, %v72
  %v77 = vrsqrt.pop %v46
  %v78 = vmul.f32 %v77, %v46
  %v79 = vmul.f32 %v78, %v77
  %v80 = vmul.f32 0.5, %v79
  %v81 = vsub.f32 1.5, %v80
  %v82 = vmul.f32 %v77, %v81
  %vm83 = vweird.f32 %v46
  %vm84 = vweird.f32 %v77
  %vm85 = vmor %vm83, %vm84
  %v86 = vsel %vm85, %v77, %v82
  %v87 = vmul.f32 %v11, %v56
  %v88 = vmul.f32 %v12, %v66
  %v89 = vmul.f32 %v13, %v76
  %v90 = vmul.f32 %v14, %v86
  %v91 = vld [vmem:[%s1] sm:$0x1]
  %v93 = vperm.slane %v91, 0
  %v95 = vmul.f32 %v87, %v93
  %v96 = vmul.f32 %v88, %v93
  %v97 = vmul.f32 %v89, %v93
  %v98 = vmul.f32 %v90, %v93
  %99 = vst.msk [vmem:[%s2] sm:$0xff] %vm19, %v95
  %100 = vst.msk [vmem:[%s2 + $0x8] sm:$0xff] %vm19, %v96
  %101 = vst.msk [vmem:[%s2 + $0x10] sm:$0xff] %vm19, %v97
  %102 = vst.msk [vmem:[%s2 + $0x18] sm:$0xff] %vm19, %v98
  // Predicated region
  $region10: #{run.21} parent=0 // pred_check
    _
  $region11: #{run.21} parent=0 // pred_check_branch
    %104 = sbr.rel (0) target = $region13
  $region12: #{run.21} parent=0 // pred_region
    _
  $region13: #{run.21} parent=0 // pred_fallthru
    _
  // Predicated region
  $region14: #{run.21} parent=0 // pred_check
    _
  $region15: #{run.21} parent=0 // pred_check_branch
    %106 = sbr.rel (0) target = $region17
  $region16: #{run.21} parent=0 // pred_region
    _
  $region17: #{run.21} parent=0 // pred_fallthru
    _

// kernel: run.24
$region0: #{run.24}
  #allocation0 [shape = 'u32[]', space=smem, size = 0x4, offset = 0x4, fixed_abs, tag = 'smem constant byte address 0x4 - core index']
  #allocation1 [shape = 'u32[72,128]{1,0:T(1,128)}', space=vmem, size = 0x9000, scoped, tag = 'internal scratch']
  %s0 = inlined_call_operand.vmem [shape: bf16[64,64], index: 0, kind: input, shape index: {}]
  %s1 = inlined_call_operand.vmem [shape: bf16[64,96], index: 1, kind: input, shape index: {}]
  %s2 = inlined_call_operand.vmem [shape: f32[64,96], index: 2, kind: output, shape index: {}]
  %s3 = sld [smem:[#allocation0]]
  $region18: #{run.24} parent=0
    _
  %s5 = ssub.s32 1, %s3
  %s6 = scalar_select 0, %s5, %s3
  // Predicated region
  $region2: #{run.24} parent=0 // pred_check
    _
  $region3: #{run.24} parent=0 // pred_check_branch
    %8 = sbr.rel (0) target = $region5
  $region4: #{run.24} parent=0 // pred_region
    _
  $region5: #{run.24} parent=0 // pred_fallthru
    _
  // Predicated region
  $region6: #{run.24} parent=0 // pred_check
    _
  $region7: #{run.24} parent=0 // pred_check_branch
    %10 = sbr.rel (0) target = $region9
  $region8: #{run.24} parent=0 // pred_region
    _
  $region9: #{run.24} parent=0 // pred_fallthru
    _
  %v12 = vld [vmem:[%s0] sm:$0xf]
  %v13 = vld [vmem:[%s0 + $0x4] sm:$0xf]
  %v14 = vld [vmem:[%s0 + $0x8] sm:$0xf]
  %v15 = vld [vmem:[%s0 + $0xc] sm:$0xf]
  %v16 = vld [vmem:[%s0 + $0x10] sm:$0xf]
  %v17 = vld [vmem:[%s0 + $0x14] sm:$0xf]
  %v18 = vld [vmem:[%s0 + $0x18] sm:$0xf]
  %v19 = vld [vmem:[%s0 + $0x1c] sm:$0xf]
  %v20 = vld [vmem:[%s1] sm:$0xf]
  %v21 = vld [vmem:[%s1 + $0x4] sm:$0xf]
  %v22 = vld [vmem:[%s1 + $0x8] sm:$0xf]
  %v23 = vld [vmem:[%s1 + $0xc] sm:$0xf]
  %v24 = vld [vmem:[%s1 + $0x10] sm:$0xf]
  %v25 = vld [vmem:[%s1 + $0x14] sm:$0xf]
  %v26 = vld [vmem:[%s1 + $0x18] sm:$0xf]
  %v27 = vld [vmem:[%s1 + $0x1c] sm:$0xf]
  %v36 = vunpack.c.l.b16 %v12
  %v37 = vunpack.c.l.b16 %v13
  %v38 = vunpack.c.l.b16 %v14
  %v39 = vunpack.c.l.b16 %v15
  %v40 = vunpack.c.l.b16 %v16
  %v41 = vunpack.c.l.b16 %v17
  %v42 = vunpack.c.l.b16 %v18
  %v43 = vunpack.c.l.b16 %v19
  %v44 = vpack.c.b16 %v37, %v36
  %v45 = vpack.c.b16 %v39, %v38
  %v46 = vpack.c.b16 %v41, %v40
  %v47 = vpack.c.b16 %v43, %v42
  %v56 = vunpack.c.l.b16 %v20
  %v57 = vunpack.c.l.b16 %v21
  %v58 = vunpack.c.l.b16 %v22
  %v59 = vunpack.c.l.b16 %v23
  %v60 = vunpack.c.l.b16 %v24
  %v61 = vunpack.c.l.b16 %v25
  %v62 = vunpack.c.l.b16 %v26
  %v63 = vunpack.c.l.b16 %v27
  %v64 = vpack.c.b16 %v57, %v56
  %v65 = vpack.c.b16 %v59, %v58
  %v66 = vpack.c.b16 %v61, %v60
  %v67 = vpack.c.b16 %v63, %v62
  %vm72 = vcmask 523264
  %v74 = vsel %vm72, %v44, 0
  %v77 = vsel %vm72, %v45, 0
  %v80 = vsel %vm72, %v46, 0
  %v83 = vsel %vm72, %v47, 0
  %85 = vmatpush.bf16.msra.mxu0 0
  %86 = vmatpush.bf16.msra.mxu0 0
  %87 = vmatpush.bf16.msra.mxu0 0
  %88 = vmatpush.bf16.msra.mxu0 0
  %89 = vmatpush.bf16.msra.mxu0 %v67
  %90 = vmatpush.bf16.msra.mxu0 %v66
  %91 = vmatpush.bf16.msra.mxu0 %v65
  %92 = vmatpush.bf16.msra.mxu0 %v64
  %93 = vmatmul.bf16.gmra.mxu0 %v74
  %v94 = vpop.f32.mrf.mxu0
  %v95 = vadd.f32 0.0, %v94
  %v96 = vpop.f32.mrf.mxu0
  %v97 = vadd.f32 0.0, %v96
  %98 = vmatmul.bf16.gmra.mxu0 %v77
  %v99 = vpop.f32.mrf.mxu0
  %v100 = vadd.f32 0.0, %v99
  %v101 = vpop.f32.mrf.mxu0
  %v102 = vadd.f32 0.0, %v101
  %103 = vmatmul.bf16.gmra.mxu0 %v80
  %v104 = vpop.f32.mrf.mxu0
  %v105 = vadd.f32 0.0, %v104
  %v106 = vpop.f32.mrf.mxu0
  %v107 = vadd.f32 0.0, %v106
  %108 = vmatmul.bf16.gmra.mxu0 %v83
  %v109 = vpop.f32.mrf.mxu0
  %v110 = vadd.f32 0.0, %v109
  %v111 = vpop.f32.mrf.mxu0
  %v112 = vadd.f32 0.0, %v111
  %113 = vdwg.mxu0
  %vm114 = vcmask 785408
  %115 = vst.msk [vmem:[%s2] sm:$0xff] %vm114, %v95
  %116 = vst.msk [vmem:[%s2 + $0x8] sm:$0xff] %vm114, %v97
  %117 = vst.msk [vmem:[%s2 + $0x10] sm:$0xff] %vm114, %v100
  %118 = vst.msk [vmem:[%s2 + $0x18] sm:$0xff] %vm114, %v102
  %119 = vst.msk [vmem:[%s2 + $0x20] sm:$0xff] %vm114, %v105
  %120 = vst.msk [vmem:[%s2 + $0x28] sm:$0xff] %vm114, %v107
  %121 = vst.msk [vmem:[%s2 + $0x30] sm:$0xff] %vm114, %v110
  %122 = vst.msk [vmem:[%s2 + $0x38] sm:$0xff] %vm114, %v112
  // Predicated region
  $region10: #{run.24} parent=0 // pred_check
    _
  $region11: #{run.24} parent=0 // pred_check_branch
    %124 = sbr.rel (0) target = $region13
  $region12: #{run.24} parent=0 // pred_region
    _
  $region13: #{run.24} parent=0 // pred_fallthru
    _
  // Predicated region
  $region14: #{run.24} parent=0 // pred_check
    _
  $region15: #{run.24} parent=0 // pred_check_branch
    %126 = sbr.rel (0) target = $region17
  $region16: #{run.24} parent=0 // pred_region
    _
  $region17: #{run.24} parent=0 // pred_fallthru
    _

// kernel: run.23
$region0: #{run.23}
  #allocation0 [shape = 'u32[]', space=smem, size = 0x4, offset = 0x4, fixed_abs, tag = 'smem constant byte address 0x4 - core index']
  #allocation1 [shape = 'u32[72,128]{1,0:T(1,128)}', space=vmem, size = 0x9000, scoped, tag = 'internal scratch']
  %s0 = inlined_call_operand.vmem [shape: f32[4,16,64], index: 0, kind: input, shape index: {}]
  %s1 = inlined_call_operand.vmem [shape: f32[4,64], index: 1, kind: input, shape index: {}]
  %s2 = inlined_call_operand.vmem [shape: f32[1,64], index: 2, kind: input, shape index: {}]
  %s3 = inlined_call_operand.vmem [shape: f32[4,16,64], index: 3, kind: output, shape index: {}]
  %s4 = sld [smem:[#allocation0]]
  $region45: #{run.23} parent=0
    _
  %s6 = ssub.s32 1, %s4
  %s7 = scalar_select 0, %s6, %s4
  loop: start=0, step=1, limit=6
  $region2: #{run.23} parent=0 // loop_pre_header
    _
  $region3: #{run.23} parent=0 // loop_header
    %s9 = sphi 0, %s13
    %p10 = scmp.ge.s32.totalorder %s9, 6
    %s19 = sphi 0, %s21
    %s22 = sphi 0, %s19
    %s23 = sphi 0, %s22
    %s39 = sphi 0, %s23
    %s43 = sphi 0, %s43
    %s45 = sphi 0, %s43
    %s46 = sphi 0, %s45
    %s60 = sphi 0, %s46
    %s64 = sphi 0, %s64
    %s66 = sphi 0, %s64
    %s67 = sphi 0, %s66
    %s81 = sphi 0, %s67
    %s87 = sphi 0, %s89
    %s90 = sphi 0, %s87
    %s91 = sphi 0, %s90
    %s107 = sphi 0, %s91
  $region4: #{run.23} parent=0 // loop_header_branch
    %12 = sbr.rel (%p10) target = $region8
  $region5: #{run.23} parent=0 // loop_body
    %s14 = ssub.s32 %s9, 1
    %s15 = ssub.s32 %s9, 2
    %s16 = sadd.s32 %s9, 1
    %s17 = ssub.s32 %s9, %s16
    %p18 = scmp.eq.s32.totalorder %s17, 0
    %s20 = sadd.s32 %s19, 1
    %s21 = scalar_select %p18, %s19, %s20
    %p24 = pneg %p18
    %p25 = scmp.eq.s32.totalorder %s9, 3
    %p26 = por %p24, %p25
    %p27 = scmp.ne.s32.totalorder %s19, %s22
    %p28 = scmp.eq.s32.totalorder %s9, 0
    %p29 = por %p27, %p28
    %p30 = scmp.ne.s32.totalorder %s19, %s22
    %p31 = scmp.eq.s32.totalorder %s14, 3
    %p32 = por %p30, %p31
    %p33 = scmp.ne.s32.totalorder %s22, %s23
    %p34 = scmp.eq.s32.totalorder %s14, 0
    %p35 = por %p33, %p34
    %p36 = scmp.ne.s32.totalorder %s22, %s23
    %p37 = scmp.eq.s32.totalorder %s15, 3
    %p38 = por %p36, %p37
    %p40 = scmp.ne.s32.totalorder %s23, %s39
    %p41 = scmp.eq.s32.totalorder %s15, 0
    %p42 = por %p40, %p41
    %s44 = sadd.s32 %s43, 1
    %p47 = scmp.eq.s32.totalorder %s9, 3
    %p48 = scmp.ne.s32.totalorder %s43, %s45
    %p49 = scmp.eq.s32.totalorder %s9, 0
    %p50 = por %p48, %p49
    %p51 = scmp.ne.s32.totalorder %s43, %s45
    %p52 = scmp.eq.s32.totalorder %s14, 3
    %p53 = por %p51, %p52
    %p54 = scmp.ne.s32.totalorder %s45, %s46
    %p55 = scmp.eq.s32.totalorder %s14, 0
    %p56 = por %p54, %p55
    %p57 = scmp.ne.s32.totalorder %s45, %s46
    %p58 = scmp.eq.s32.totalorder %s15, 3
    %p59 = por %p57, %p58
    %p61 = scmp.ne.s32.totalorder %s46, %s60
    %p62 = scmp.eq.s32.totalorder %s15, 0
    %p63 = por %p61, %p62
    %s65 = sadd.s32 %s64, 1
    %p68 = scmp.eq.s32.totalorder %s9, 3
    %p69 = scmp.ne.s32.totalorder %s64, %s66
    %p70 = scmp.eq.s32.totalorder %s9, 0
    %p71 = por %p69, %p70
    %p72 = scmp.ne.s32.totalorder %s64, %s66
    %p73 = scmp.eq.s32.totalorder %s14, 3
    %p74 = por %p72, %p73
    %p75 = scmp.ne.s32.totalorder %s66, %s67
    %p76 = scmp.eq.s32.totalorder %s14, 0
    %p77 = por %p75, %p76
    %p78 = scmp.ne.s32.totalorder %s66, %s67
    %p79 = scmp.eq.s32.totalorder %s15, 3
    %p80 = por %p78, %p79
    %p82 = scmp.ne.s32.totalorder %s67, %s81
    %p83 = scmp.eq.s32.totalorder %s15, 0
    %p84 = por %p82, %p83
    %s85 = ssub.s32 %s9, %s16
    %p86 = scmp.eq.s32.totalorder %s85, 0
    %s88 = sadd.s32 %s87, 1
    %s89 = scalar_select %p86, %s87, %s88
    %p92 = pneg %p86
    %p93 = scmp.eq.s32.totalorder %s9, 3
    %p94 = por %p92, %p93
    %p95 = scmp.ne.s32.totalorder %s87, %s90
    %p96 = scmp.eq.s32.totalorder %s9, 0
    %p97 = por %p95, %p96
    %p98 = scmp.ne.s32.totalorder %s87, %s90
    %p99 = scmp.eq.s32.totalorder %s14, 3
    %p100 = por %p98, %p99
    %p101 = scmp.ne.s32.totalorder %s90, %s91
    %p102 = scmp.eq.s32.totalorder %s14, 0
    %p103 = por %p101, %p102
    %p104 = scmp.ne.s32.totalorder %s90, %s91
    %p105 = scmp.eq.s32.totalorder %s15, 3
    %p106 = por %p104, %p105
    %p108 = scmp.ne.s32.totalorder %s91, %s107
    %p109 = scmp.eq.s32.totalorder %s15, 0
    %p110 = por %p108, %p109
    %p111 = scmp.le.s32.totalorder 1, %s9
    %p112 = scmp.lt.s32.totalorder %s9, 5
    %p113 = pnand %p111, %p112
    %p114 = pneg %p113
    // Predicated region
    $region9: #{run.23} parent=5 // pred_check
      _
    $region10: #{run.23} parent=5 // pred_check_branch
      %116 = sbr.rel (%p113) target = $region12
    $region11: #{run.23} parent=5 // pred_region
      %s117 = ssub.s32 %s9, 1
      // Predicated region
      $region13: #{run.23} parent=11 // pred_check
        %p118 = pneg %p56
      $region14: #{run.23} parent=11 // pred_check_branch
        %120 = sbr.rel (%p118) target = $region16
      $region15: #{run.23} parent=11 // pred_region
        _
      $region16: #{run.23} parent=11 // pred_fallthru
        _
      // Predicated region
      $region17: #{run.23} parent=11 // pred_check
        %p121 = pneg %p77
      $region18: #{run.23} parent=11 // pred_check_branch
        %123 = sbr.rel (%p121) target = $region20
      $region19: #{run.23} parent=11 // pred_region
        _
      $region20: #{run.23} parent=11 // pred_fallthru
        _
    $region12: #{run.23} parent=5 // pred_fallthru
      _
    %p124 = scmp.lt.s32.totalorder %s9, 4
    // Predicated region
    $region21: #{run.23} parent=5 // pred_check
      %p125 = pneg %p124
    $region22: #{run.23} parent=5 // pred_check_branch
      %127 = sbr.rel (%p125) target = $region24
    $region23: #{run.23} parent=5 // pred_region
      // Predicated region
      $region25: #{run.23} parent=23 // pred_check
        %p128 = pneg %p29
      $region26: #{run.23} parent=23 // pred_check_branch
        %130 = sbr.rel (%p128) target = $region28
      $region27: #{run.23} parent=23 // pred_region
        %p131 = scmp.lt.s32.totalorder %s9, 3
        %s132 = scalar_select %p131, %s9, 3
        %s133 = smul.addr %s132, 2
        %s134 = smul.addr %s133, 8
        %s135 = scalar_lea.vmem %s0, %s134
      $region28: #{run.23} parent=23 // pred_fallthru
        _
    $region24: #{run.23} parent=5 // pred_fallthru
      _
    %p136 = scmp.le.s32.totalorder 1, %s9
    %p137 = scmp.lt.s32.totalorder %s9, 5
    %p138 = pnand %p136, %p137
    %p139 = pneg %p138
    // Predicated region
    $region29: #{run.23} parent=5 // pred_check
      _
    $region30: #{run.23} parent=5 // pred_check_branch
      %141 = sbr.rel (%p138) target = $region32
    $region31: #{run.23} parent=5 // pred_region
      %s142 = ssub.s32 %s9, 1
      %p143 = scmp.lt.s32.totalorder %s14, 3
      %s144 = scalar_select %p143, %s14, 3
      %s145 = smul.addr %s144, 2
      %s146 = smul.addr %s145, 8
      %s147 = scalar_lea.vmem %s0, %s146
      %p148 = pneg %p35
      %p149 = pneg %p32
      %p150 = pneg %p56
      %p151 = pneg %p53
      %p152 = pneg %p77
      %p153 = pneg %p74
      %p154 = pneg %p103
      %p155 = pneg %p100
      %p156 = scmp.lt.s32.totalorder %s14, 3
      %s157 = scalar_select %p156, %s14, 3
      %s158 = smul.addr %s157, 2
      %s159 = smul.addr %s158, 8
      %s160 = scalar_lea.vmem %s3, %s159
      %p161 = scmp.lt.s32.totalorder %s14, 3
      %s162 = scalar_select %p161, %s14, 3
      %s163 = smul.addr %s162, 2
      %s164 = smul.addr %s163, 8
      %s165 = scalar_lea.vmem %s0, %s164
      %p166 = scmp.lt.s32.totalorder %s14, 3
      %s167 = scalar_select %p166, %s14, 3
      %s168 = smul.addr %s167, 2
      %s169 = smul.addr %s168, 8
      %s170 = scalar_lea.vmem %s3, %s169
      %v171 = vld [vmem:[%s165] sm:$0xff]
      %v172 = vld [vmem:[%s165 + $0x8] sm:$0xff]
      %vm175 = vcmask 1042432
      %v176 = vrot.slane %v171, 5
      %v177 = vrot.slane %v172, 5
      %v178 = vsel %vm175, %v176, %v177
      %v182 = vsel %vm175, 0.0, %v176
      %v183 = vld [vmem:[%s2] sm:$0x1]
      %v185 = vperm.slane %v183, 0
      %v187 = vadd.f32 %v185, 0.0
      %v188 = vld [vmem:[%s1] sm:$0x1]
      %v189 = vperm.slane %v188, 0
      %v190 = vmul.f32 %v182, %v189
      %v191 = vmul.f32 %v178, %v189
      %v192 = vadd.f32 %v187, %v190
      %v193 = vadd.f32 %v187, %v191
      %v194 = vld [vmem:[%s1 + $0x1] sm:$0x1]
      %v195 = vperm.slane %v194, 0
      %v196 = vmul.f32 %v182, %v195
      %v197 = vmul.f32 %v178, %v195
      %v198 = vmul.f32 %v177, %v195
      %vm202 = vcmask 1046528
      %v203 = vrot.slane %v196, 1
      %v204 = vrot.slane %v197, 1
      %v205 = vsel %vm202, %v203, %v204
      %v206 = vrot.slane %v198, 1
      %v207 = vsel %vm202, %v204, %v206
      %v210 = vadd.f32 %v192, %v205
      %v211 = vadd.f32 %v193, %v207
      %v212 = vld [vmem:[%s1 + $0x2] sm:$0x1]
      %v213 = vperm.slane %v212, 0
      %v214 = vmul.f32 %v182, %v213
      %v215 = vmul.f32 %v178, %v213
      %v216 = vmul.f32 %v177, %v213
      %vm220 = vcmask 1045504
      %v221 = vrot.slane %v214, 2
      %v222 = vrot.slane %v215, 2
      %v223 = vsel %vm220, %v221, %v222
      %v224 = vrot.slane %v216, 2
      %v225 = vsel %vm220, %v222, %v224
      %v228 = vadd.f32 %v210, %v223
      %v229 = vadd.f32 %v211, %v225
      %v230 = vld [vmem:[%s1 + $0x3] sm:$0x1]
      %v231 = vperm.slane %v230, 0
      %v232 = vmul.f32 %v182, %v231
      %v233 = vmul.f32 %v178, %v231
      %v234 = vmul.f32 %v177, %v231
      %vm238 = vcmask 1044480
      %v239 = vrot.slane %v232, 3
      %v240 = vrot.slane %v233, 3
      %v241 = vsel %vm238, %v239, %v240
      %v242 = vrot.slane %v234, 3
      %v243 = vsel %vm238, %v240, %v242
      %v246 = vadd.f32 %v228, %v241
      %v247 = vadd.f32 %v229, %v243
      %v248 = vsub.f32 0.0, %v246
      %v249 = vsub.f32 0.0, %v247
      %v250 = vmul.f32 %v248, 1.442695
      %v251 = vpow.pop %v250
      %v252 = vmul.f32 %v249, 1.442695
      %v253 = vpow.pop %v252
      %v254 = vadd.f32 %v251, 1.0
      %v255 = vadd.f32 %v253, 1.0
      %v256 = vrcp.pop %v254
      %v257 = vmul.f32 %v254, %v256
      %v258 = vsub.f32 1.0, %v257
      %v259 = vmul.f32 %v256, %v258
      %v260 = vadd.f32 %v256, %v259
      %vm261 = vweird.f32 %v254
      %vm262 = vweird.f32 %v256
      %vm263 = vmor %vm261, %vm262
      %v264 = vsel %vm263, %v256, %v260
      %v265 = vand.u32 2147483647, %v254
      %vm266 = vcmp.eq.f32.partialorder %v265, 8.507059e+37
      %v267 = vand.u32 %v254, 2147483648
      %v268 = vor.u32 1.1754944e-38, %v267
      %v269 = vsel %vm266, %v268, %v264
      %v270 = vmul.f32 1.0, %v269
      %v271 = vrcp.pop %v255
      %v272 = vmul.f32 %v255, %v271
      %v273 = vsub.f32 1.0, %v272
      %v274 = vmul.f32 %v271, %v273
      %v275 = vadd.f32 %v271, %v274
      %vm276 = vweird.f32 %v255
      %vm277 = vweird.f32 %v271
      %vm278 = vmor %vm276, %vm277
      %v279 = vsel %vm278, %v271, %v275
      %v280 = vand.u32 2147483647, %v255
      %vm281 = vcmp.eq.f32.partialorder %v280, 8.507059e+37
      %v282 = vand.u32 %v255, 2147483648
      %v283 = vor.u32 1.1754944e-38, %v282
      %v284 = vsel %vm281, %v283, %v279
      %v285 = vmul.f32 1.0, %v284
      %v286 = vmul.f32 %v246, %v270
      %v287 = vmul.f32 %v247, %v285
      %vm288 = vcmask 523264
      %289 = vst.msk [vmem:[%s170] sm:$0xff] %vm288, %v286
      %290 = vst.msk [vmem:[%s170 + $0x8] sm:$0xff] %vm288, %v287
      %p291 = scmp.lt.s32.totalorder %s14, 3
      %s292 = scalar_select %p291, %s14, 3
      %s293 = smul.addr %s292, 2
      %s294 = smul.addr %s293, 8
      %s295 = scalar_lea.vmem %s3, %s294
      // Predicated region
      $region33: #{run.23} parent=31 // pred_check
        %p296 = pneg %p100
      $region34: #{run.23} parent=31 // pred_check_branch
        %298 = sbr.rel (%p296) target = $region36
      $region35: #{run.23} parent=31 // pred_region
        _
      $region36: #{run.23} parent=31 // pred_fallthru
        _
    $region32: #{run.23} parent=5 // pred_fallthru
      _
    %p299 = scmp.le.s32.totalorder 2, %s9
    // Predicated region
    $region37: #{run.23} parent=5 // pred_check
      %p300 = pneg %p299
    $region38: #{run.23} parent=5 // pred_check_branch
      %302 = sbr.rel (%p300) target = $region40
    $region39: #{run.23} parent=5 // pred_region
      %s303 = ssub.s32 %s9, 2
      // Predicated region
      $region41: #{run.23} parent=39 // pred_check
        %p304 = pneg %p106
      $region42: #{run.23} parent=39 // pred_check_branch
        %306 = sbr.rel (%p304) target = $region44
      $region43: #{run.23} parent=39 // pred_region
        %p307 = scmp.lt.s32.totalorder %s15, 3
        %s308 = scalar_select %p307, %s15, 3
        %s309 = smul.addr %s308, 2
        %s310 = smul.addr %s309, 8
        %s311 = scalar_lea.vmem %s3, %s310
      $region44: #{run.23} parent=39 // pred_fallthru
        _
    $region40: #{run.23} parent=5 // pred_fallthru
      _
  $region6: #{run.23} parent=0 // loop_footer
    %s13 = sadd.s32 1, %s9
  $region7: #{run.23} parent=0 // loop_footer_branch
    %8 = sbr.rel target = $region3
  $region8: #{run.23} parent=0 // loop_exit
    _

// kernel: run.26
$region0: #{run.26}
  #allocation0 [shape = 'u32[]', space=smem, size = 0x4, offset = 0x4, fixed_abs, tag = 'smem constant byte address 0x4 - core index']
  #allocation1 [shape = 'u32[72,128]{1,0:T(1,128)}', space=vmem, size = 0x9000, scoped, tag = 'internal scratch']
  %s0 = inlined_call_operand.vmem [shape: bf16[32,64], index: 0, kind: input, shape index: {}]
  %s1 = inlined_call_operand.vmem [shape: bf16[64,32], index: 1, kind: input, shape index: {}]
  %s2 = inlined_call_operand.vmem [shape: f32[32,32], index: 2, kind: output, shape index: {}]
  %s3 = sld [smem:[#allocation0]]
  $region18: #{run.26} parent=0
    _
  %s5 = ssub.s32 1, %s3
  %s6 = scalar_select 0, %s5, %s3
  // Predicated region
  $region2: #{run.26} parent=0 // pred_check
    _
  $region3: #{run.26} parent=0 // pred_check_branch
    %8 = sbr.rel (0) target = $region5
  $region4: #{run.26} parent=0 // pred_region
    _
  $region5: #{run.26} parent=0 // pred_fallthru
    _
  // Predicated region
  $region6: #{run.26} parent=0 // pred_check
    _
  $region7: #{run.26} parent=0 // pred_check_branch
    %10 = sbr.rel (0) target = $region9
  $region8: #{run.26} parent=0 // pred_region
    _
  $region9: #{run.26} parent=0 // pred_fallthru
    _
  %v12 = vld [vmem:[%s0] sm:$0xf]
  %v13 = vld [vmem:[%s0 + $0x4] sm:$0xf]
  %v14 = vld [vmem:[%s0 + $0x8] sm:$0xf]
  %v15 = vld [vmem:[%s0 + $0xc] sm:$0xf]
  %v16 = vld [vmem:[%s1] sm:$0xf]
  %v17 = vld [vmem:[%s1 + $0x4] sm:$0xf]
  %v18 = vld [vmem:[%s1 + $0x8] sm:$0xf]
  %v19 = vld [vmem:[%s1 + $0xc] sm:$0xf]
  %v20 = vld [vmem:[%s1 + $0x10] sm:$0xf]
  %v21 = vld [vmem:[%s1 + $0x14] sm:$0xf]
  %v22 = vld [vmem:[%s1 + $0x18] sm:$0xf]
  %v23 = vld [vmem:[%s1 + $0x1c] sm:$0xf]
  %v28 = vunpack.c.l.b16 %v12
  %v29 = vunpack.c.l.b16 %v13
  %v30 = vunpack.c.l.b16 %v14
  %v31 = vunpack.c.l.b16 %v15
  %v32 = vpack.c.b16 %v29, %v28
  %v33 = vpack.c.b16 %v31, %v30
  %v42 = vunpack.c.l.b16 %v16
  %v43 = vunpack.c.l.b16 %v17
  %v44 = vunpack.c.l.b16 %v18
  %v45 = vunpack.c.l.b16 %v19
  %v46 = vunpack.c.l.b16 %v20
  %v47 = vunpack.c.l.b16 %v21
  %v48 = vunpack.c.l.b16 %v22
  %v49 = vunpack.c.l.b16 %v23
  %v50 = vpack.c.b16 %v43, %v42
  %v51 = vpack.c.b16 %v45, %v44
  %v52 = vpack.c.b16 %v47, %v46
  %v53 = vpack.c.b16 %v49, %v48
  %vm58 = vcmask 523264
  %v60 = vsel %vm58, %v32, 0
  %v63 = vsel %vm58, %v33, 0
  %65 = vmatpush.bf16.msra.mxu0 0
  %66 = vmatpush.bf16.msra.mxu0 0
  %67 = vmatpush.bf16.msra.mxu0 0
  %68 = vmatpush.bf16.msra.mxu0 0
  %69 = vmatpush.bf16.msra.mxu0 %v53
  %70 = vmatpush.bf16.msra.mxu0 %v52
  %71 = vmatpush.bf16.msra.mxu0 %v51
  %72 = vmatpush.bf16.msra.mxu0 %v50
  %73 = vmatmul.bf16.gmra.mxu0 %v60
  %v74 = vpop.f32.mrf.mxu0
  %v75 = vadd.f32 0.0, %v74
  %v76 = vpop.f32.mrf.mxu0
  %v77 = vadd.f32 0.0, %v76
  %78 = vmatmul.bf16.gmra.mxu0 %v63
  %v79 = vpop.f32.mrf.mxu0
  %v80 = vadd.f32 0.0, %v79
  %v81 = vpop.f32.mrf.mxu0
  %v82 = vadd.f32 0.0, %v81
  %83 = vdwg.mxu0
  %vm84 = vcmask 261120
  %85 = vst.msk [vmem:[%s2] sm:$0xff] %vm84, %v75
  %86 = vst.msk [vmem:[%s2 + $0x8] sm:$0xff] %vm84, %v77
  %87 = vst.msk [vmem:[%s2 + $0x10] sm:$0xff] %vm84, %v80
  %88 = vst.msk [vmem:[%s2 + $0x18] sm:$0xff] %vm84, %v82
  // Predicated region
  $region10: #{run.26} parent=0 // pred_check
    _
  $region11: #{run.26} parent=0 // pred_check_branch
    %90 = sbr.rel (0) target = $region13
  $region12: #{run.26} parent=0 // pred_region
    _
  $region13: #{run.26} parent=0 // pred_fallthru
    _
  // Predicated region
  $region14: #{run.26} parent=0 // pred_check
    _
  $region15: #{run.26} parent=0 // pred_check_branch
    %92 = sbr.rel (0) target = $region17
  $region16: #{run.26} parent=0 // pred_region
    _
  $region17: #{run.26} parent=0 // pred_fallthru
    _

// kernel: run.27
$region0: #{run.27}
  #allocation0 [shape = 'u32[]', space=smem, size = 0x4, offset = 0x4, fixed_abs, tag = 'smem constant byte address 0x4 - core index']
  #allocation1 [shape = 'u32[72,128]{1,0:T(1,128)}', space=vmem, size = 0x9000, scoped, tag = 'internal scratch']
  %s0 = inlined_call_operand.vmem [shape: f32[8,128], index: 0, kind: input, shape index: {}]
  %s1 = inlined_call_operand.vmem [shape: f32[1,128], index: 1, kind: input, shape index: {}]
  %s2 = inlined_call_operand.vmem [shape: f32[1,128], index: 2, kind: input, shape index: {}]
  %s3 = inlined_call_operand.vmem [shape: f32[8,128], index: 3, kind: output, shape index: {}]
  %s4 = sld [smem:[#allocation0]]
  $region22: #{run.27} parent=0
    _
  %s6 = ssub.s32 1, %s4
  %s7 = scalar_select 0, %s6, %s4
  // Predicated region
  $region2: #{run.27} parent=0 // pred_check
    _
  $region3: #{run.27} parent=0 // pred_check_branch
    %9 = sbr.rel (0) target = $region5
  $region4: #{run.27} parent=0 // pred_region
    _
  $region5: #{run.27} parent=0 // pred_fallthru
    _
  // Predicated region
  $region6: #{run.27} parent=0 // pred_check
    _
  $region7: #{run.27} parent=0 // pred_check_branch
    %11 = sbr.rel (0) target = $region9
  $region8: #{run.27} parent=0 // pred_region
    _
  $region9: #{run.27} parent=0 // pred_fallthru
    _
  // Predicated region
  $region10: #{run.27} parent=0 // pred_check
    _
  $region11: #{run.27} parent=0 // pred_check_branch
    %13 = sbr.rel (0) target = $region13
  $region12: #{run.27} parent=0 // pred_region
    _
  $region13: #{run.27} parent=0 // pred_fallthru
    _
  %v14 = vld [vmem:[%s0] sm:$0xff]
  %15 = vadd.xlane.f32.xlu0 %v14
  %v16 = vpop.xlane.xlu0 %15
  %v17 = vrcp.pop 128.0
  %v18 = vmul.f32 128.0, %v17
  %v19 = vsub.f32 1.0, %v18
  %v20 = vmul.f32 %v17, %v19
  %v21 = vadd.f32 %v17, %v20
  %vm22 = vweird.f32 %v17
  %v23 = vsel %vm22, %v17, %v21
  %v24 = vmul.f32 %v16, %v23
  %v25 = vsub.f32 %v14, %v24
  %v26 = vmul.f32 %v25, %v25
  %27 = vadd.xlane.f32.xlu0 %v26
  %v28 = vpop.xlane.xlu0 %27
  %v29 = vmul.f32 %v28, %v23
  %v30 = vadd.f32 %v29, 1e-05
  %v31 = vrsqrt.pop %v30
  %v32 = vmul.f32 %v31, %v30
  %v33 = vmul.f32 %v32, %v31
  %v34 = vmul.f32 0.5, %v33
  %v35 = vsub.f32 1.5, %v34
  %v36 = vmul.f32 %v31, %v35
  %vm37 = vweird.f32 %v30
  %vm38 = vweird.f32 %v31
  %vm39 = vmor %vm37, %vm38
  %v40 = vsel %vm39, %v31, %v36
  %v41 = vmul.f32 %v25, %v40
  %v42 = vld [vmem:[%s1] sm:$0x1]
  %v44 = vperm.slane %v42, 0
  %v46 = vmul.f32 %v41, %v44
  %v47 = vld [vmem:[%s2] sm:$0x1]
  %v49 = vperm.slane %v47, 0
  %v51 = vadd.f32 %v46, %v49
  %52 = vst [vmem:[%s3] sm:$0xff] %v51
  // Predicated region
  $region14: #{run.27} parent=0 // pred_check
    _
  $region15: #{run.27} parent=0 // pred_check_branch
    %54 = sbr.rel (0) target = $region17
  $region16: #{run.27} parent=0 // pred_region
    _
  $region17: #{run.27} parent=0 // pred_fallthru
    _
  // Predicated region
  $region18: #{run.27} parent=0 // pred_check
    _
  $region19: #{run.27} parent=0 // pred_check_branch
    %56 = sbr.rel (0) target = $region21
  $region20: #{run.27} parent=0 // pred_region
    _
  $region21: #{run.27} parent=0 // pred_fallthru
    _

// kernel: run.29
$region0: #{run.29}
  #allocation0 [shape = 'u32[]', space=smem, size = 0x4, offset = 0x4, fixed_abs, tag = 'smem constant byte address 0x4 - core index']
  #allocation1 [shape = 'u32[72,128]{1,0:T(1,128)}', space=vmem, size = 0x9000, scoped, tag = 'internal scratch']
  %s0 = inlined_call_operand.vmem [shape: f32[8,64], index: 0, kind: input, shape index: {}]
  %s1 = inlined_call_operand.vmem [shape: f32[1,64], index: 1, kind: input, shape index: {}]
  %s2 = inlined_call_operand.vmem [shape: f32[8,64], index: 2, kind: output, shape index: {}]
  %s3 = sld [smem:[#allocation0]]
  $region18: #{run.29} parent=0
    _
  %s5 = ssub.s32 1, %s3
  %s6 = scalar_select 0, %s5, %s3
  // Predicated region
  $region2: #{run.29} parent=0 // pred_check
    _
  $region3: #{run.29} parent=0 // pred_check_branch
    %8 = sbr.rel (0) target = $region5
  $region4: #{run.29} parent=0 // pred_region
    _
  $region5: #{run.29} parent=0 // pred_fallthru
    _
  // Predicated region
  $region6: #{run.29} parent=0 // pred_check
    _
  $region7: #{run.29} parent=0 // pred_check_branch
    %10 = sbr.rel (0) target = $region9
  $region8: #{run.29} parent=0 // pred_region
    _
  $region9: #{run.29} parent=0 // pred_fallthru
    _
  %v11 = vld [vmem:[%s0] sm:$0xff]
  %v12 = vmul.f32 %v11, %v11
  %vm13 = vcmask 523264
  %v14 = vsel %vm13, %v12, 0.0
  %15 = vadd.xlane.f32.xlu0 %v14
  %v16 = vpop.xlane.xlu0 %15
  %v17 = vrcp.pop 64.0
  %v18 = vmul.f32 64.0, %v17
  %v19 = vsub.f32 1.0, %v18
  %v20 = vmul.f32 %v17, %v19
  %v21 = vadd.f32 %v17, %v20
  %vm22 = vweird.f32 %v17
  %v23 = vsel %vm22, %v17, %v21
  %v24 = vmul.f32 %v16, %v23
  %v25 = vadd.f32 %v24, 1e-05
  %v26 = vrsqrt.pop %v25
  %v27 = vmul.f32 %v26, %v25
  %v28 = vmul.f32 %v27, %v26
  %v29 = vmul.f32 0.5, %v28
  %v30 = vsub.f32 1.5, %v29
  %v31 = vmul.f32 %v26, %v30
  %vm32 = vweird.f32 %v25
  %vm33 = vweird.f32 %v26
  %vm34 = vmor %vm32, %vm33
  %v35 = vsel %vm34, %v26, %v31
  %v36 = vmul.f32 %v11, %v35
  %v37 = vld [vmem:[%s1] sm:$0x1]
  %v39 = vperm.slane %v37, 0
  %v41 = vmul.f32 %v36, %v39
  %42 = vst.msk [vmem:[%s2] sm:$0xff] %vm13, %v41
  // Predicated region
  $region10: #{run.29} parent=0 // pred_check
    _
  $region11: #{run.29} parent=0 // pred_check_branch
    %44 = sbr.rel (0) target = $region13
  $region12: #{run.29} parent=0 // pred_region
    _
  $region13: #{run.29} parent=0 // pred_fallthru
    _
  // Predicated region
  $region14: #{run.29} parent=0 // pred_check
    _
  $region15: #{run.29} parent=0 // pred_check_branch
    %46 = sbr.rel (0) target = $region17
  $region16: #{run.29} parent=0 // pred_region
    _
  $region17: #{run.29} parent=0 // pred_fallthru
    _

// kernel: run.28
$region0: #{run.28}
  #allocation0 [shape = 'u32[]', space=smem, size = 0x4, offset = 0x4, fixed_abs, tag = 'smem constant byte address 0x4 - core index']
  #allocation1 [shape = 'u32[72,128]{1,0:T(1,128)}', space=vmem, size = 0x9000, scoped, tag = 'internal scratch']
  %s0 = inlined_call_operand.vmem [shape: bf16[8,128], index: 0, kind: input, shape index: {}]
  %s1 = inlined_call_operand.vmem [shape: bf16[128,64], index: 1, kind: input, shape index: {}]
  %s2 = inlined_call_operand.vmem [shape: f32[8,64], index: 2, kind: output, shape index: {}]
  %s3 = sld [smem:[#allocation0]]
  $region18: #{run.28} parent=0
    _
  %s5 = ssub.s32 1, %s3
  %s6 = scalar_select 0, %s5, %s3
  // Predicated region
  $region2: #{run.28} parent=0 // pred_check
    _
  $region3: #{run.28} parent=0 // pred_check_branch
    %8 = sbr.rel (0) target = $region5
  $region4: #{run.28} parent=0 // pred_region
    _
  $region5: #{run.28} parent=0 // pred_fallthru
    _
  // Predicated region
  $region6: #{run.28} parent=0 // pred_check
    _
  $region7: #{run.28} parent=0 // pred_check_branch
    %10 = sbr.rel (0) target = $region9
  $region8: #{run.28} parent=0 // pred_region
    _
  $region9: #{run.28} parent=0 // pred_fallthru
    _
  %v11 = vld [vmem:[%s0] sm:$0xf]
  %v12 = vld [vmem:[%s1] sm:$0xf]
  %v13 = vld [vmem:[%s1 + $0x4] sm:$0xf]
  %v14 = vld [vmem:[%s1 + $0x8] sm:$0xf]
  %v15 = vld [vmem:[%s1 + $0xc] sm:$0xf]
  %v16 = vld [vmem:[%s1 + $0x10] sm:$0xf]
  %v17 = vld [vmem:[%s1 + $0x14] sm:$0xf]
  %v18 = vld [vmem:[%s1 + $0x18] sm:$0xf]
  %v19 = vld [vmem:[%s1 + $0x1c] sm:$0xf]
  %v20 = vld [vmem:[%s1 + $0x20] sm:$0xf]
  %v21 = vld [vmem:[%s1 + $0x24] sm:$0xf]
  %v22 = vld [vmem:[%s1 + $0x28] sm:$0xf]
  %v23 = vld [vmem:[%s1 + $0x2c] sm:$0xf]
  %v24 = vld [vmem:[%s1 + $0x30] sm:$0xf]
  %v25 = vld [vmem:[%s1 + $0x34] sm:$0xf]
  %v26 = vld [vmem:[%s1 + $0x38] sm:$0xf]
  %v27 = vld [vmem:[%s1 + $0x3c] sm:$0xf]
  %v44 = vunpack.c.l.b16 %v12
  %v45 = vunpack.c.l.b16 %v13
  %v46 = vunpack.c.l.b16 %v14
  %v47 = vunpack.c.l.b16 %v15
  %v48 = vunpack.c.l.b16 %v16
  %v49 = vunpack.c.l.b16 %v17
  %v50 = vunpack.c.l.b16 %v18
  %v51 = vunpack.c.l.b16 %v19
  %v52 = vunpack.c.l.b16 %v20
  %v53 = vunpack.c.l.b16 %v21
  %v54 = vunpack.c.l.b16 %v22
  %v55 = vunpack.c.l.b16 %v23
  %v56 = vunpack.c.l.b16 %v24
  %v57 = vunpack.c.l.b16 %v25
  %v58 = vunpack.c.l.b16 %v26
  %v59 = vunpack.c.l.b16 %v27
  %v60 = vpack.c.b16 %v45, %v44
  %v61 = vpack.c.b16 %v47, %v46
  %v62 = vpack.c.b16 %v49, %v48
  %v63 = vpack.c.b16 %v51, %v50
  %v64 = vpack.c.b16 %v53, %v52
  %v65 = vpack.c.b16 %v55, %v54
  %v66 = vpack.c.b16 %v57, %v56
  %v67 = vpack.c.b16 %v59, %v58
  %76 = vmatpush.bf16.msra.mxu0 %v67
  %77 = vmatpush.bf16.msra.mxu0 %v66
  %78 = vmatpush.bf16.msra.mxu0 %v65
  %79 = vmatpush.bf16.msra.mxu0 %v64
  %80 = vmatpush.bf16.msra.mxu0 %v63
  %81 = vmatpush.bf16.msra.mxu0 %v62
  %82 = vmatpush.bf16.msra.mxu0 %v61
  %83 = vmatpush.bf16.msra.mxu0 %v60
  %84 = vmatmul.bf16.gmra.mxu0 %v11
  %v85 = vpop.f32.mrf.mxu0
  %v86 = vadd.f32 0.0, %v85
  %v87 = vpop.f32.mrf.mxu0
  %88 = vdwg.mxu0
  %vm89 = vcmask 523264
  %90 = vst.msk [vmem:[%s2] sm:$0xff] %vm89, %v86
  // Predicated region
  $region10: #{run.28} parent=0 // pred_check
    _
  $region11: #{run.28} parent=0 // pred_check_branch
    %92 = sbr.rel (0) target = $region13
  $region12: #{run.28} parent=0 // pred_region
    _
  $region13: #{run.28} parent=0 // pred_fallthru
    _
  // Predicated region
  $region14: #{run.28} parent=0 // pred_check
    _
  $region15: #{run.28} parent=0 // pred_check_branch
    %94 = sbr.rel (0) target = $region17
  $region16: #{run.28} parent=0 // pred_region
    _
  $region17: #{run.28} parent=0 // pred_fallthru
    _

// kernel: run.30
$region0: #{run.30}
  #allocation0 [shape = 'u32[]', space=smem, size = 0x4, offset = 0x4, fixed_abs, tag = 'smem constant byte address 0x4 - core index']
  #allocation1 [shape = 'u32[72,128]{1,0:T(1,128)}', space=vmem, size = 0x9000, scoped, tag = 'internal scratch']
  %s0 = inlined_call_operand.vmem [shape: bf16[8,64], index: 0, kind: input, shape index: {}]
  %s1 = inlined_call_operand.vmem [shape: bf16[64,256], index: 1, kind: input, shape index: {}]
  %s2 = inlined_call_operand.vmem [shape: f32[8,256], index: 2, kind: output, shape index: {}]
  %s3 = sld [smem:[#allocation0]]
  $region18: #{run.30} parent=0
    _
  %s5 = ssub.s32 1, %s3
  %s6 = scalar_select 0, %s5, %s3
  // Predicated region
  $region2: #{run.30} parent=0 // pred_check
    _
  $region3: #{run.30} parent=0 // pred_check_branch
    %8 = sbr.rel (0) target = $region5
  $region4: #{run.30} parent=0 // pred_region
    _
  $region5: #{run.30} parent=0 // pred_fallthru
    _
  // Predicated region
  $region6: #{run.30} parent=0 // pred_check
    _
  $region7: #{run.30} parent=0 // pred_check_branch
    %10 = sbr.rel (0) target = $region9
  $region8: #{run.30} parent=0 // pred_region
    _
  $region9: #{run.30} parent=0 // pred_fallthru
    _
  %v12 = vld [vmem:[%s0] sm:$0xf]
  %v13 = vld [vmem:[%s1] sm:$0xff]
  %v14 = vld [vmem:[%s1 + $0x8] sm:$0xff]
  %v15 = vld [vmem:[%s1 + $0x10] sm:$0xff]
  %v16 = vld [vmem:[%s1 + $0x18] sm:$0xff]
  %v17 = vld [vmem:[%s1 + $0x20] sm:$0xff]
  %v18 = vld [vmem:[%s1 + $0x28] sm:$0xff]
  %v19 = vld [vmem:[%s1 + $0x30] sm:$0xff]
  %v20 = vld [vmem:[%s1 + $0x38] sm:$0xff]
  %v29 = vunpack.c.l.b16 %v13
  %v30 = vunpack.c.h.b16 %v13
  %v31 = vunpack.c.l.b16 %v14
  %v32 = vunpack.c.h.b16 %v14
  %v33 = vunpack.c.l.b16 %v15
  %v34 = vunpack.c.h.b16 %v15
  %v35 = vunpack.c.l.b16 %v16
  %v36 = vunpack.c.h.b16 %v16
  %v37 = vunpack.c.l.b16 %v17
  %v38 = vunpack.c.h.b16 %v17
  %v39 = vunpack.c.l.b16 %v18
  %v40 = vunpack.c.h.b16 %v18
  %v41 = vunpack.c.l.b16 %v19
  %v42 = vunpack.c.h.b16 %v19
  %v43 = vunpack.c.l.b16 %v20
  %v44 = vunpack.c.h.b16 %v20
  %v45 = vpack.c.b16 %v31, %v29
  %v46 = vpack.c.b16 %v32, %v30
  %v47 = vpack.c.b16 %v35, %v33
  %v48 = vpack.c.b16 %v36, %v34
  %v49 = vpack.c.b16 %v39, %v37
  %v50 = vpack.c.b16 %v40, %v38
  %v51 = vpack.c.b16 %v43, %v41
  %v52 = vpack.c.b16 %v44, %v42
  %vm61 = vcmask 523264
  %v63 = vsel %vm61, %v12, 0
  %65 = vmatpush.bf16.msra.mxu0 0
  %66 = vmatpush.bf16.msra.mxu0 0
  %67 = vmatpush.bf16.msra.mxu0 0
  %68 = vmatpush.bf16.msra.mxu0 0
  %69 = vmatpush.bf16.msra.mxu0 %v51
  %70 = vmatpush.bf16.msra.mxu0 %v49
  %71 = vmatpush.bf16.msra.mxu0 %v47
  %72 = vmatpush.bf16.msra.mxu0 %v45
  %73 = vmatmul.bf16.gmra.mxu0 %v63
  %v74 = vpop.f32.mrf.mxu0
  %v75 = vadd.f32 0.0, %v74
  %v76 = vpop.f32.mrf.mxu0
  %77 = vdwg.mxu0
  %78 = vmatpush.bf16.msra.mxu0 0
  %79 = vmatpush.bf16.msra.mxu0 0
  %80 = vmatpush.bf16.msra.mxu0 0
  %81 = vmatpush.bf16.msra.mxu0 0
  %82 = vmatpush.bf16.msra.mxu0 %v52
  %83 = vmatpush.bf16.msra.mxu0 %v50
  %84 = vmatpush.bf16.msra.mxu0 %v48
  %85 = vmatpush.bf16.msra.mxu0 %v46
  %86 = vmatmul.bf16.gmra.mxu0 %v63
  %v87 = vpop.f32.mrf.mxu0
  %v88 = vadd.f32 0.0, %v87
  %v89 = vpop.f32.mrf.mxu0
  %90 = vdwg.mxu0
  %91 = vst [vmem:[%s2] sm:$0xff] %v75
  %92 = vst [vmem:[%s2 + $0x8] sm:$0xff] %v88
  // Predicated region
  $region10: #{run.30} parent=0 // pred_check
    _
  $region11: #{run.30} parent=0 // pred_check_branch
    %94 = sbr.rel (0) target = $region13
  $region12: #{run.30} parent=0 // pred_region
    _
  $region13: #{run.30} parent=0 // pred_fallthru
    _
  // Predicated region
  $region14: #{run.30} parent=0 // pred_check
    _
  $region15: #{run.30} parent=0 // pred_check_branch
    %96 = sbr.rel (0) target = $region17
  $region16: #{run.30} parent=0 // pred_region
    _
  $region17: #{run.30} parent=0 // pred_fallthru
    _

// kernel: run.31
$region0: #{run.31}
  #allocation0 [shape = 'u32[]', space=smem, size = 0x4, offset = 0x4, fixed_abs, tag = 'smem constant byte address 0x4 - core index']
  #allocation1 [shape = 'u32[72,128]{1,0:T(1,128)}', space=vmem, size = 0x9000, scoped, tag = 'internal scratch']
  %s0 = inlined_call_operand.vmem [shape: f32[4,4,128], index: 0, kind: input, shape index: {}]
  %s1 = inlined_call_operand.vmem [shape: f32[4,128], index: 1, kind: input, shape index: {}]
  %s2 = inlined_call_operand.vmem [shape: f32[1,128], index: 2, kind: input, shape index: {}]
  %s3 = inlined_call_operand.vmem [shape: f32[4,4,128], index: 3, kind: output, shape index: {}]
  %s4 = sld [smem:[#allocation0]]
  $region45: #{run.31} parent=0
    _
  %s6 = ssub.s32 1, %s4
  %s7 = scalar_select 0, %s6, %s4
  loop: start=0, step=1, limit=6
  $region2: #{run.31} parent=0 // loop_pre_header
    _
  $region3: #{run.31} parent=0 // loop_header
    %s9 = sphi 0, %s13
    %p10 = scmp.ge.s32.totalorder %s9, 6
    %s19 = sphi 0, %s21
    %s22 = sphi 0, %s19
    %s23 = sphi 0, %s22
    %s39 = sphi 0, %s23
    %s43 = sphi 0, %s43
    %s45 = sphi 0, %s43
    %s46 = sphi 0, %s45
    %s60 = sphi 0, %s46
    %s64 = sphi 0, %s64
    %s66 = sphi 0, %s64
    %s67 = sphi 0, %s66
    %s81 = sphi 0, %s67
    %s87 = sphi 0, %s89
    %s90 = sphi 0, %s87
    %s91 = sphi 0, %s90
    %s107 = sphi 0, %s91
  $region4: #{run.31} parent=0 // loop_header_branch
    %12 = sbr.rel (%p10) target = $region8
  $region5: #{run.31} parent=0 // loop_body
    %s14 = ssub.s32 %s9, 1
    %s15 = ssub.s32 %s9, 2
    %s16 = sadd.s32 %s9, 1
    %s17 = ssub.s32 %s9, %s16
    %p18 = scmp.eq.s32.totalorder %s17, 0
    %s20 = sadd.s32 %s19, 1
    %s21 = scalar_select %p18, %s19, %s20
    %p24 = pneg %p18
    %p25 = scmp.eq.s32.totalorder %s9, 3
    %p26 = por %p24, %p25
    %p27 = scmp.ne.s32.totalorder %s19, %s22
    %p28 = scmp.eq.s32.totalorder %s9, 0
    %p29 = por %p27, %p28
    %p30 = scmp.ne.s32.totalorder %s19, %s22
    %p31 = scmp.eq.s32.totalorder %s14, 3
    %p32 = por %p30, %p31
    %p33 = scmp.ne.s32.totalorder %s22, %s23
    %p34 = scmp.eq.s32.totalorder %s14, 0
    %p35 = por %p33, %p34
    %p36 = scmp.ne.s32.totalorder %s22, %s23
    %p37 = scmp.eq.s32.totalorder %s15, 3
    %p38 = por %p36, %p37
    %p40 = scmp.ne.s32.totalorder %s23, %s39
    %p41 = scmp.eq.s32.totalorder %s15, 0
    %p42 = por %p40, %p41
    %s44 = sadd.s32 %s43, 1
    %p47 = scmp.eq.s32.totalorder %s9, 3
    %p48 = scmp.ne.s32.totalorder %s43, %s45
    %p49 = scmp.eq.s32.totalorder %s9, 0
    %p50 = por %p48, %p49
    %p51 = scmp.ne.s32.totalorder %s43, %s45
    %p52 = scmp.eq.s32.totalorder %s14, 3
    %p53 = por %p51, %p52
    %p54 = scmp.ne.s32.totalorder %s45, %s46
    %p55 = scmp.eq.s32.totalorder %s14, 0
    %p56 = por %p54, %p55
    %p57 = scmp.ne.s32.totalorder %s45, %s46
    %p58 = scmp.eq.s32.totalorder %s15, 3
    %p59 = por %p57, %p58
    %p61 = scmp.ne.s32.totalorder %s46, %s60
    %p62 = scmp.eq.s32.totalorder %s15, 0
    %p63 = por %p61, %p62
    %s65 = sadd.s32 %s64, 1
    %p68 = scmp.eq.s32.totalorder %s9, 3
    %p69 = scmp.ne.s32.totalorder %s64, %s66
    %p70 = scmp.eq.s32.totalorder %s9, 0
    %p71 = por %p69, %p70
    %p72 = scmp.ne.s32.totalorder %s64, %s66
    %p73 = scmp.eq.s32.totalorder %s14, 3
    %p74 = por %p72, %p73
    %p75 = scmp.ne.s32.totalorder %s66, %s67
    %p76 = scmp.eq.s32.totalorder %s14, 0
    %p77 = por %p75, %p76
    %p78 = scmp.ne.s32.totalorder %s66, %s67
    %p79 = scmp.eq.s32.totalorder %s15, 3
    %p80 = por %p78, %p79
    %p82 = scmp.ne.s32.totalorder %s67, %s81
    %p83 = scmp.eq.s32.totalorder %s15, 0
    %p84 = por %p82, %p83
    %s85 = ssub.s32 %s9, %s16
    %p86 = scmp.eq.s32.totalorder %s85, 0
    %s88 = sadd.s32 %s87, 1
    %s89 = scalar_select %p86, %s87, %s88
    %p92 = pneg %p86
    %p93 = scmp.eq.s32.totalorder %s9, 3
    %p94 = por %p92, %p93
    %p95 = scmp.ne.s32.totalorder %s87, %s90
    %p96 = scmp.eq.s32.totalorder %s9, 0
    %p97 = por %p95, %p96
    %p98 = scmp.ne.s32.totalorder %s87, %s90
    %p99 = scmp.eq.s32.totalorder %s14, 3
    %p100 = por %p98, %p99
    %p101 = scmp.ne.s32.totalorder %s90, %s91
    %p102 = scmp.eq.s32.totalorder %s14, 0
    %p103 = por %p101, %p102
    %p104 = scmp.ne.s32.totalorder %s90, %s91
    %p105 = scmp.eq.s32.totalorder %s15, 3
    %p106 = por %p104, %p105
    %p108 = scmp.ne.s32.totalorder %s91, %s107
    %p109 = scmp.eq.s32.totalorder %s15, 0
    %p110 = por %p108, %p109
    %p111 = scmp.le.s32.totalorder 1, %s9
    %p112 = scmp.lt.s32.totalorder %s9, 5
    %p113 = pnand %p111, %p112
    %p114 = pneg %p113
    // Predicated region
    $region9: #{run.31} parent=5 // pred_check
      _
    $region10: #{run.31} parent=5 // pred_check_branch
      %116 = sbr.rel (%p113) target = $region12
    $region11: #{run.31} parent=5 // pred_region
      %s117 = ssub.s32 %s9, 1
      // Predicated region
      $region13: #{run.31} parent=11 // pred_check
        %p118 = pneg %p56
      $region14: #{run.31} parent=11 // pred_check_branch
        %120 = sbr.rel (%p118) target = $region16
      $region15: #{run.31} parent=11 // pred_region
        _
      $region16: #{run.31} parent=11 // pred_fallthru
        _
      // Predicated region
      $region17: #{run.31} parent=11 // pred_check
        %p121 = pneg %p77
      $region18: #{run.31} parent=11 // pred_check_branch
        %123 = sbr.rel (%p121) target = $region20
      $region19: #{run.31} parent=11 // pred_region
        _
      $region20: #{run.31} parent=11 // pred_fallthru
        _
    $region12: #{run.31} parent=5 // pred_fallthru
      _
    %p124 = scmp.lt.s32.totalorder %s9, 4
    // Predicated region
    $region21: #{run.31} parent=5 // pred_check
      %p125 = pneg %p124
    $region22: #{run.31} parent=5 // pred_check_branch
      %127 = sbr.rel (%p125) target = $region24
    $region23: #{run.31} parent=5 // pred_region
      // Predicated region
      $region25: #{run.31} parent=23 // pred_check
        %p128 = pneg %p29
      $region26: #{run.31} parent=23 // pred_check_branch
        %130 = sbr.rel (%p128) target = $region28
      $region27: #{run.31} parent=23 // pred_region
        %p131 = scmp.lt.s32.totalorder %s9, 3
        %s132 = scalar_select %p131, %s9, 3
        %s133 = smul.addr %s132, 4
        %s134 = scalar_lea.vmem %s0, %s133
      $region28: #{run.31} parent=23 // pred_fallthru
        _
    $region24: #{run.31} parent=5 // pred_fallthru
      _
    %p135 = scmp.le.s32.totalorder 1, %s9
    %p136 = scmp.lt.s32.totalorder %s9, 5
    %p137 = pnand %p135, %p136
    %p138 = pneg %p137
    // Predicated region
    $region29: #{run.31} parent=5 // pred_check
      _
    $region30: #{run.31} parent=5 // pred_check_branch
      %140 = sbr.rel (%p137) target = $region32
    $region31: #{run.31} parent=5 // pred_region
      %s141 = ssub.s32 %s9, 1
      %p142 = scmp.lt.s32.totalorder %s14, 3
      %s143 = scalar_select %p142, %s14, 3
      %s144 = smul.addr %s143, 4
      %s145 = scalar_lea.vmem %s0, %s144
      %p146 = pneg %p35
      %p147 = pneg %p32
      %p148 = pneg %p56
      %p149 = pneg %p53
      %p150 = pneg %p77
      %p151 = pneg %p74
      %p152 = pneg %p103
      %p153 = pneg %p100
      %p154 = scmp.lt.s32.totalorder %s14, 3
      %s155 = scalar_select %p154, %s14, 3
      %s156 = smul.addr %s155, 4
      %s157 = scalar_lea.vmem %s3, %s156
      %p158 = scmp.lt.s32.totalorder %s14, 3
      %s159 = scalar_select %p158, %s14, 3
      %s160 = smul.addr %s159, 4
      %s161 = scalar_lea.vmem %s0, %s160
      %p162 = scmp.lt.s32.totalorder %s14, 3
      %s163 = scalar_select %p162, %s14, 3
      %s164 = smul.addr %s163, 4
      %s165 = scalar_lea.vmem %s3, %s164
      %v166 = vld [vmem:[%s161] sm:$0xf]
      %v168 = vrot.slane %v166, 5
      %vm170 = vcmask 1042432
      %v171 = vsel %vm170, 0.0, %v168
      %v172 = vld [vmem:[%s2] sm:$0x1]
      %v174 = vperm.slane %v172, 0
      %v176 = vadd.f32 %v174, 0.0
      %v177 = vld [vmem:[%s1] sm:$0x1]
      %v178 = vperm.slane %v177, 0
      %v179 = vmul.f32 %v171, %v178
      %v180 = vadd.f32 %v176, %v179
      %v181 = vld [vmem:[%s1 + $0x1] sm:$0x1]
      %v182 = vperm.slane %v181, 0
      %v183 = vmul.f32 %v171, %v182
      %v185 = vrot.slane %v183, 1
      %v187 = vadd.f32 %v180, %v185
      %v188 = vld [vmem:[%s1 + $0x2] sm:$0x1]
      %v189 = vperm.slane %v188, 0
      %v190 = vmul.f32 %v171, %v189
      %v192 = vrot.slane %v190, 2
      %v194 = vadd.f32 %v187, %v192
      %v195 = vld [vmem:[%s1 + $0x3] sm:$0x1]
      %v196 = vperm.slane %v195, 0
      %v197 = vmul.f32 %v171, %v196
      %v199 = vrot.slane %v197, 3
      %v201 = vadd.f32 %v194, %v199
      %v202 = vsub.f32 0.0, %v201
      %v203 = vmul.f32 %v202, 1.442695
      %v204 = vpow.pop %v203
      %v205 = vadd.f32 %v204, 1.0
      %v206 = vrcp.pop %v205
      %v207 = vmul.f32 %v205, %v206
      %v208 = vsub.f32 1.0, %v207
      %v209 = vmul.f32 %v206, %v208
      %v210 = vadd.f32 %v206, %v209
      %vm211 = vweird.f32 %v205
      %vm212 = vweird.f32 %v206
      %vm213 = vmor %vm211, %vm212
      %v214 = vsel %vm213, %v206, %v210
      %v215 = vand.u32 2147483647, %v205
      %vm216 = vcmp.eq.f32.partialorder %v215, 8.507059e+37
      %v217 = vand.u32 %v205, 2147483648
      %v218 = vor.u32 1.1754944e-38, %v217
      %v219 = vsel %vm216, %v218, %v214
      %v220 = vmul.f32 1.0, %v219
      %v221 = vmul.f32 %v201, %v220
      %222 = vst [vmem:[%s165] sm:$0xf] %v221
      %p223 = scmp.lt.s32.totalorder %s14, 3
      %s224 = scalar_select %p223, %s14, 3
      %s225 = smul.addr %s224, 4
      %s226 = scalar_lea.vmem %s3, %s225
      // Predicated region
      $region33: #{run.31} parent=31 // pred_check
        %p227 = pneg %p100
      $region34: #{run.31} parent=31 // pred_check_branch
        %229 = sbr.rel (%p227) target = $region36
      $region35: #{run.31} parent=31 // pred_region
        _
      $region36: #{run.31} parent=31 // pred_fallthru
        _
    $region32: #{run.31} parent=5 // pred_fallthru
      _
    %p230 = scmp.le.s32.totalorder 2, %s9
    // Predicated region
    $region37: #{run.31} parent=5 // pred_check
      %p231 = pneg %p230
    $region38: #{run.31} parent=5 // pred_check_branch
      %233 = sbr.rel (%p231) target = $region40
    $region39: #{run.31} parent=5 // pred_region
      %s234 = ssub.s32 %s9, 2
      // Predicated region
      $region41: #{run.31} parent=39 // pred_check
        %p235 = pneg %p106
      $region42: #{run.31} parent=39 // pred_check_branch
        %237 = sbr.rel (%p235) target = $region44
      $region43: #{run.31} parent=39 // pred_region
        %p238 = scmp.lt.s32.totalorder %s15, 3
        %s239 = scalar_select %p238, %s15, 3
        %s240 = smul.addr %s239, 4
        %s241 = scalar_lea.vmem %s3, %s240
      $region44: #{run.31} parent=39 // pred_fallthru
        _
    $region40: #{run.31} parent=5 // pred_fallthru
      _
  $region6: #{run.31} parent=0 // loop_footer
    %s13 = sadd.s32 1, %s9
  $region7: #{run.31} parent=0 // loop_footer_branch
    %8 = sbr.rel target = $region3
  $region8: #{run.31} parent=0 // loop_exit
    _

// kernel: run.25
$region0: #{run.25}
  #allocation0 [shape = 'u32[]', space=smem, size = 0x4, offset = 0x4, fixed_abs, tag = 'smem constant byte address 0x4 - core index']
  #allocation1 [shape = 'u32[72,128]{1,0:T(1,128)}', space=vmem, size = 0x9000, scoped, tag = 'internal scratch']
  #allocation2 [shape = 'f32[16,64]{1,0:T(8,128)}', space=vmem, size = 0x2000, scoped, tag = 'scratch operand']
  #allocation3 [shape = 'f32[16,64]{1,0:T(8,128)}', space=vmem, size = 0x2000, scoped, tag = 'scratch operand']
  #allocation4 [shape = 'f32[16,16]{1,0:T(8,128)}', space=vmem, size = 0x2000, scoped, tag = 'scratch operand']
  %s0 = inlined_call_operand.vmem [shape: f32[4,16,64], index: 0, kind: input, shape index: {}]
  %s1 = inlined_call_operand.vmem [shape: f32[4,16,64], index: 1, kind: input, shape index: {}]
  %s2 = inlined_call_operand.vmem [shape: f32[4,16,16], index: 2, kind: input, shape index: {}]
  %s3 = inlined_call_operand.vmem [shape: f32[4,16,16], index: 3, kind: input, shape index: {}]
  %s4 = inlined_call_operand.vmem [shape: f32[4,16,64], index: 4, kind: input, shape index: {}]
  %s5 = inlined_call_operand.vmem [shape: f32[16,64], index: 5, kind: input, shape index: {}]
  %s6 = inlined_call_operand.vmem [shape: f32[1,64], index: 6, kind: input, shape index: {}]
  %s7 = inlined_call_operand.vmem [shape: f32[1,64], index: 7, kind: input, shape index: {}]
  %s8 = inlined_call_operand.vmem [shape: f32[4,16,64], index: 8, kind: output, shape index: {}]
  %s9 = sld [smem:[#allocation0]]
  $region65: #{run.25} parent=0
    _
  %s11 = ssub.s32 1, %s9
  %s12 = scalar_select 0, %s11, %s9
  loop: start=0, step=1, limit=6
  $region2: #{run.25} parent=0 // loop_pre_header
    _
  $region3: #{run.25} parent=0 // loop_header
    %s14 = sphi 0, %s18
    %p15 = scmp.ge.s32.totalorder %s14, 6
    %s24 = sphi 0, %s26
    %s27 = sphi 0, %s24
    %s28 = sphi 0, %s27
    %s44 = sphi 0, %s28
    %s50 = sphi 0, %s52
    %s53 = sphi 0, %s50
    %s54 = sphi 0, %s53
    %s70 = sphi 0, %s54
    %s76 = sphi 0, %s78
    %s79 = sphi 0, %s76
    %s80 = sphi 0, %s79
    %s96 = sphi 0, %s80
    %s102 = sphi 0, %s104
    %s105 = sphi 0, %s102
    %s106 = sphi 0, %s105
    %s122 = sphi 0, %s106
    %s128 = sphi 0, %s130
    %s131 = sphi 0, %s128
    %s132 = sphi 0, %s131
    %s148 = sphi 0, %s132
    %s152 = sphi 0, %s152
    %s154 = sphi 0, %s152
    %s155 = sphi 0, %s154
    %s169 = sphi 0, %s155
    %s173 = sphi 0, %s173
    %s175 = sphi 0, %s173
    %s176 = sphi 0, %s175
    %s190 = sphi 0, %s176
    %s194 = sphi 0, %s194
    %s196 = sphi 0, %s194
    %s197 = sphi 0, %s196
    %s211 = sphi 0, %s197
    %s217 = sphi 0, %s219
    %s220 = sphi 0, %s217
    %s221 = sphi 0, %s220
    %s237 = sphi 0, %s221
  $region4: #{run.25} parent=0 // loop_header_branch
    %17 = sbr.rel (%p15) target = $region8
  $region5: #{run.25} parent=0 // loop_body
    %s19 = ssub.s32 %s14, 1
    %s20 = ssub.s32 %s14, 2
    %s21 = sadd.s32 %s14, 1
    %s22 = ssub.s32 %s14, %s21
    %p23 = scmp.eq.s32.totalorder %s22, 0
    %s25 = sadd.s32 %s24, 1
    %s26 = scalar_select %p23, %s24, %s25
    %p29 = pneg %p23
    %p30 = scmp.eq.s32.totalorder %s14, 3
    %p31 = por %p29, %p30
    %p32 = scmp.ne.s32.totalorder %s24, %s27
    %p33 = scmp.eq.s32.totalorder %s14, 0
    %p34 = por %p32, %p33
    %p35 = scmp.ne.s32.totalorder %s24, %s27
    %p36 = scmp.eq.s32.totalorder %s19, 3
    %p37 = por %p35, %p36
    %p38 = scmp.ne.s32.totalorder %s27, %s28
    %p39 = scmp.eq.s32.totalorder %s19, 0
    %p40 = por %p38, %p39
    %p41 = scmp.ne.s32.totalorder %s27, %s28
    %p42 = scmp.eq.s32.totalorder %s20, 3
    %p43 = por %p41, %p42
    %p45 = scmp.ne.s32.totalorder %s28, %s44
    %p46 = scmp.eq.s32.totalorder %s20, 0
    %p47 = por %p45, %p46
    %s48 = ssub.s32 %s14, %s21
    %p49 = scmp.eq.s32.totalorder %s48, 0
    %s51 = sadd.s32 %s50, 1
    %s52 = scalar_select %p49, %s50, %s51
    %p55 = pneg %p49
    %p56 = scmp.eq.s32.totalorder %s14, 3
    %p57 = por %p55, %p56
    %p58 = scmp.ne.s32.totalorder %s50, %s53
    %p59 = scmp.eq.s32.totalorder %s14, 0
    %p60 = por %p58, %p59
    %p61 = scmp.ne.s32.totalorder %s50, %s53
    %p62 = scmp.eq.s32.totalorder %s19, 3
    %p63 = por %p61, %p62
    %p64 = scmp.ne.s32.totalorder %s53, %s54
    %p65 = scmp.eq.s32.totalorder %s19, 0
    %p66 = por %p64, %p65
    %p67 = scmp.ne.s32.totalorder %s53, %s54
    %p68 = scmp.eq.s32.totalorder %s20, 3
    %p69 = por %p67, %p68
    %p71 = scmp.ne.s32.totalorder %s54, %s70
    %p72 = scmp.eq.s32.totalorder %s20, 0
    %p73 = por %p71, %p72
    %s74 = ssub.s32 %s14, %s21
    %p75 = scmp.eq.s32.totalorder %s74, 0
    %s77 = sadd.s32 %s76, 1
    %s78 = scalar_select %p75, %s76, %s77
    %p81 = pneg %p75
    %p82 = scmp.eq.s32.totalorder %s14, 3
    %p83 = por %p81, %p82
    %p84 = scmp.ne.s32.totalorder %s76, %s79
    %p85 = scmp.eq.s32.totalorder %s14, 0
    %p86 = por %p84, %p85
    %p87 = scmp.ne.s32.totalorder %s76, %s79
    %p88 = scmp.eq.s32.totalorder %s19, 3
    %p89 = por %p87, %p88
    %p90 = scmp.ne.s32.totalorder %s79, %s80
    %p91 = scmp.eq.s32.totalorder %s19, 0
    %p92 = por %p90, %p91
    %p93 = scmp.ne.s32.totalorder %s79, %s80
    %p94 = scmp.eq.s32.totalorder %s20, 3
    %p95 = por %p93, %p94
    %p97 = scmp.ne.s32.totalorder %s80, %s96
    %p98 = scmp.eq.s32.totalorder %s20, 0
    %p99 = por %p97, %p98
    %s100 = ssub.s32 %s14, %s21
    %p101 = scmp.eq.s32.totalorder %s100, 0
    %s103 = sadd.s32 %s102, 1
    %s104 = scalar_select %p101, %s102, %s103
    %p107 = pneg %p101
    %p108 = scmp.eq.s32.totalorder %s14, 3
    %p109 = por %p107, %p108
    %p110 = scmp.ne.s32.totalorder %s102, %s105
    %p111 = scmp.eq.s32.totalorder %s14, 0
    %p112 = por %p110, %p111
    %p113 = scmp.ne.s32.totalorder %s102, %s105
    %p114 = scmp.eq.s32.totalorder %s19, 3
    %p115 = por %p113, %p114
    %p116 = scmp.ne.s32.totalorder %s105, %s106
    %p117 = scmp.eq.s32.totalorder %s19, 0
    %p118 = por %p116, %p117
    %p119 = scmp.ne.s32.totalorder %s105, %s106
    %p120 = scmp.eq.s32.totalorder %s20, 3
    %p121 = por %p119, %p120
    %p123 = scmp.ne.s32.totalorder %s106, %s122
    %p124 = scmp.eq.s32.totalorder %s20, 0
    %p125 = por %p123, %p124
    %s126 = ssub.s32 %s14, %s21
    %p127 = scmp.eq.s32.totalorder %s126, 0
    %s129 = sadd.s32 %s128, 1
    %s130 = scalar_select %p127, %s128, %s129
    %p133 = pneg %p127
    %p134 = scmp.eq.s32.totalorder %s14, 3
    %p135 = por %p133, %p134
    %p136 = scmp.ne.s32.totalorder %s128, %s131
    %p137 = scmp.eq.s32.totalorder %s14, 0
    %p138 = por %p136, %p137
    %p139 = scmp.ne.s32.totalorder %s128, %s131
    %p140 = scmp.eq.s32.totalorder %s19, 3
    %p141 = por %p139, %p140
    %p142 = scmp.ne.s32.totalorder %s131, %s132
    %p143 = scmp.eq.s32.totalorder %s19, 0
    %p144 = por %p142, %p143
    %p145 = scmp.ne.s32.totalorder %s131, %s132
    %p146 = scmp.eq.s32.totalorder %s20, 3
    %p147 = por %p145, %p146
    %p149 = scmp.ne.s32.totalorder %s132, %s148
    %p150 = scmp.eq.s32.totalorder %s20, 0
    %p151 = por %p149, %p150
    %s153 = sadd.s32 %s152, 1
    %p156 = scmp.eq.s32.totalorder %s14, 3
    %p157 = scmp.ne.s32.totalorder %s152, %s154
    %p158 = scmp.eq.s32.totalorder %s14, 0
    %p159 = por %p157, %p158
    %p160 = scmp.ne.s32.totalorder %s152, %s154
    %p161 = scmp.eq.s32.totalorder %s19, 3
    %p162 = por %p160, %p161
    %p163 = scmp.ne.s32.totalorder %s154, %s155
    %p164 = scmp.eq.s32.totalorder %s19, 0
    %p165 = por %p163, %p164
    %p166 = scmp.ne.s32.totalorder %s154, %s155
    %p167 = scmp.eq.s32.totalorder %s20, 3
    %p168 = por %p166, %p167
    %p170 = scmp.ne.s32.totalorder %s155, %s169
    %p171 = scmp.eq.s32.totalorder %s20, 0
    %p172 = por %p170, %p171
    %s174 = sadd.s32 %s173, 1
    %p177 = scmp.eq.s32.totalorder %s14, 3
    %p178 = scmp.ne.s32.totalorder %s173, %s175
    %p179 = scmp.eq.s32.totalorder %s14, 0
    %p180 = por %p178, %p179
    %p181 = scmp.ne.s32.totalorder %s173, %s175
    %p182 = scmp.eq.s32.totalorder %s19, 3
    %p183 = por %p181, %p182
    %p184 = scmp.ne.s32.totalorder %s175, %s176
    %p185 = scmp.eq.s32.totalorder %s19, 0
    %p186 = por %p184, %p185
    %p187 = scmp.ne.s32.totalorder %s175, %s176
    %p188 = scmp.eq.s32.totalorder %s20, 3
    %p189 = por %p187, %p188
    %p191 = scmp.ne.s32.totalorder %s176, %s190
    %p192 = scmp.eq.s32.totalorder %s20, 0
    %p193 = por %p191, %p192
    %s195 = sadd.s32 %s194, 1
    %p198 = scmp.eq.s32.totalorder %s14, 3
    %p199 = scmp.ne.s32.totalorder %s194, %s196
    %p200 = scmp.eq.s32.totalorder %s14, 0
    %p201 = por %p199, %p200
    %p202 = scmp.ne.s32.totalorder %s194, %s196
    %p203 = scmp.eq.s32.totalorder %s19, 3
    %p204 = por %p202, %p203
    %p205 = scmp.ne.s32.totalorder %s196, %s197
    %p206 = scmp.eq.s32.totalorder %s19, 0
    %p207 = por %p205, %p206
    %p208 = scmp.ne.s32.totalorder %s196, %s197
    %p209 = scmp.eq.s32.totalorder %s20, 3
    %p210 = por %p208, %p209
    %p212 = scmp.ne.s32.totalorder %s197, %s211
    %p213 = scmp.eq.s32.totalorder %s20, 0
    %p214 = por %p212, %p213
    %s215 = ssub.s32 %s14, %s21
    %p216 = scmp.eq.s32.totalorder %s215, 0
    %s218 = sadd.s32 %s217, 1
    %s219 = scalar_select %p216, %s217, %s218
    %p222 = pneg %p216
    %p223 = scmp.eq.s32.totalorder %s14, 3
    %p224 = por %p222, %p223
    %p225 = scmp.ne.s32.totalorder %s217, %s220
    %p226 = scmp.eq.s32.totalorder %s14, 0
    %p227 = por %p225, %p226
    %p228 = scmp.ne.s32.totalorder %s217, %s220
    %p229 = scmp.eq.s32.totalorder %s19, 3
    %p230 = por %p228, %p229
    %p231 = scmp.ne.s32.totalorder %s220, %s221
    %p232 = scmp.eq.s32.totalorder %s19, 0
    %p233 = por %p231, %p232
    %p234 = scmp.ne.s32.totalorder %s220, %s221
    %p235 = scmp.eq.s32.totalorder %s20, 3
    %p236 = por %p234, %p235
    %p238 = scmp.ne.s32.totalorder %s221, %s237
    %p239 = scmp.eq.s32.totalorder %s20, 0
    %p240 = por %p238, %p239
    %p241 = scmp.le.s32.totalorder 1, %s14
    %p242 = scmp.lt.s32.totalorder %s14, 5
    %p243 = pnand %p241, %p242
    %p244 = pneg %p243
    // Predicated region
    $region9: #{run.25} parent=5 // pred_check
      _
    $region10: #{run.25} parent=5 // pred_check_branch
      %246 = sbr.rel (%p243) target = $region12
    $region11: #{run.25} parent=5 // pred_region
      %s247 = ssub.s32 %s14, 1
      // Predicated region
      $region13: #{run.25} parent=11 // pred_check
        %p248 = pneg %p165
      $region14: #{run.25} parent=11 // pred_check_branch
        %250 = sbr.rel (%p248) target = $region16
      $region15: #{run.25} parent=11 // pred_region
        _
      $region16: #{run.25} parent=11 // pred_fallthru
        _
      // Predicated region
      $region17: #{run.25} parent=11 // pred_check
        %p251 = pneg %p186
      $region18: #{run.25} parent=11 // pred_check_branch
        %253 = sbr.rel (%p251) target = $region20
      $region19: #{run.25} parent=11 // pred_region
        _
      $region20: #{run.25} parent=11 // pred_fallthru
        _
      // Predicated region
      $region21: #{run.25} parent=11 // pred_check
        %p254 = pneg %p207
      $region22: #{run.25} parent=11 // pred_check_branch
        %256 = sbr.rel (%p254) target = $region24
      $region23: #{run.25} parent=11 // pred_region
        _
      $region24: #{run.25} parent=11 // pred_fallthru
        _
    $region12: #{run.25} parent=5 // pred_fallthru
      _
    %p257 = scmp.lt.s32.totalorder %s14, 4
    // Predicated region
    $region25: #{run.25} parent=5 // pred_check
      %p258 = pneg %p257
    $region26: #{run.25} parent=5 // pred_check_branch
      %260 = sbr.rel (%p258) target = $region28
    $region27: #{run.25} parent=5 // pred_region
      // Predicated region
      $region29: #{run.25} parent=27 // pred_check
        %p261 = pneg %p34
      $region30: #{run.25} parent=27 // pred_check_branch
        %263 = sbr.rel (%p261) target = $region32
      $region31: #{run.25} parent=27 // pred_region
        %p264 = scmp.lt.s32.totalorder %s14, 3
        %s265 = scalar_select %p264, %s14, 3
        %s266 = smul.addr %s265, 2
        %s267 = smul.addr %s266, 8
        %s268 = scalar_lea.vmem %s0, %s267
      $region32: #{run.25} parent=27 // pred_fallthru
        _
      // Predicated region
      $region33: #{run.25} parent=27 // pred_check
        %p269 = pneg %p60
      $region34: #{run.25} parent=27 // pred_check_branch
        %271 = sbr.rel (%p269) target = $region36
      $region35: #{run.25} parent=27 // pred_region
        %p272 = scmp.lt.s32.totalorder %s14, 3
        %s273 = scalar_select %p272, %s14, 3
        %s274 = smul.addr %s273, 2
        %s275 = smul.addr %s274, 8
        %s276 = scalar_lea.vmem %s1, %s275
      $region36: #{run.25} parent=27 // pred_fallthru
        _
      // Predicated region
      $region37: #{run.25} parent=27 // pred_check
        %p277 = pneg %p86
      $region38: #{run.25} parent=27 // pred_check_branch
        %279 = sbr.rel (%p277) target = $region40
      $region39: #{run.25} parent=27 // pred_region
        %p280 = scmp.lt.s32.totalorder %s14, 3
        %s281 = scalar_select %p280, %s14, 3
        %s282 = smul.addr %s281, 2
        %s283 = smul.addr %s282, 8
        %s284 = scalar_lea.vmem %s2, %s283
      $region40: #{run.25} parent=27 // pred_fallthru
        _
      // Predicated region
      $region41: #{run.25} parent=27 // pred_check
        %p285 = pneg %p112
      $region42: #{run.25} parent=27 // pred_check_branch
        %287 = sbr.rel (%p285) target = $region44
      $region43: #{run.25} parent=27 // pred_region
        %p288 = scmp.lt.s32.totalorder %s14, 3
        %s289 = scalar_select %p288, %s14, 3
        %s290 = smul.addr %s289, 2
        %s291 = smul.addr %s290, 8
        %s292 = scalar_lea.vmem %s3, %s291
      $region44: #{run.25} parent=27 // pred_fallthru
        _
      // Predicated region
      $region45: #{run.25} parent=27 // pred_check
        %p293 = pneg %p138
      $region46: #{run.25} parent=27 // pred_check_branch
        %295 = sbr.rel (%p293) target = $region48
      $region47: #{run.25} parent=27 // pred_region
        %p296 = scmp.lt.s32.totalorder %s14, 3
        %s297 = scalar_select %p296, %s14, 3
        %s298 = smul.addr %s297, 2
        %s299 = smul.addr %s298, 8
        %s300 = scalar_lea.vmem %s4, %s299
      $region48: #{run.25} parent=27 // pred_fallthru
        _
    $region28: #{run.25} parent=5 // pred_fallthru
      _
    %p301 = scmp.le.s32.totalorder 1, %s14
    %p302 = scmp.lt.s32.totalorder %s14, 5
    %p303 = pnand %p301, %p302
    %p304 = pneg %p303
    // Predicated region
    $region49: #{run.25} parent=5 // pred_check
      _
    $region50: #{run.25} parent=5 // pred_check_branch
      %306 = sbr.rel (%p303) target = $region52
    $region51: #{run.25} parent=5 // pred_region
      %s307 = ssub.s32 %s14, 1
      %p308 = scmp.lt.s32.totalorder %s19, 3
      %s309 = scalar_select %p308, %s19, 3
      %s310 = smul.addr %s309, 2
      %s311 = smul.addr %s310, 8
      %s312 = scalar_lea.vmem %s0, %s311
      %p313 = pneg %p40
      %p314 = pneg %p37
      %p315 = scmp.lt.s32.totalorder %s19, 3
      %s316 = scalar_select %p315, %s19, 3
      %s317 = smul.addr %s316, 2
      %s318 = smul.addr %s317, 8
      %s319 = scalar_lea.vmem %s1, %s318
      %p320 = pneg %p66
      %p321 = pneg %p63
      %p322 = scmp.lt.s32.totalorder %s19, 3
      %s323 = scalar_select %p322, %s19, 3
      %s324 = smul.addr %s323, 2
      %s325 = smul.addr %s324, 8
      %s326 = scalar_lea.vmem %s2, %s325
      %p327 = pneg %p92
      %p328 = pneg %p89
      %p329 = scmp.lt.s32.totalorder %s19, 3
      %s330 = scalar_select %p329, %s19, 3
      %s331 = smul.addr %s330, 2
      %s332 = smul.addr %s331, 8
      %s333 = scalar_lea.vmem %s3, %s332
      %p334 = pneg %p118
      %p335 = pneg %p115
      %p336 = scmp.lt.s32.totalorder %s19, 3
      %s337 = scalar_select %p336, %s19, 3
      %s338 = smul.addr %s337, 2
      %s339 = smul.addr %s338, 8
      %s340 = scalar_lea.vmem %s4, %s339
      %p341 = pneg %p144
      %p342 = pneg %p141
      %p343 = pneg %p165
      %p344 = pneg %p162
      %p345 = pneg %p186
      %p346 = pneg %p183
      %p347 = pneg %p207
      %p348 = pneg %p204
      %p349 = pneg %p233
      %p350 = pneg %p230
      %p351 = scmp.lt.s32.totalorder %s19, 3
      %s352 = scalar_select %p351, %s19, 3
      %s353 = smul.addr %s352, 2
      %s354 = smul.addr %s353, 8
      %s355 = scalar_lea.vmem %s8, %s354
      %p356 = scmp.lt.s32.totalorder %s19, 3
      %s357 = scalar_select %p356, %s19, 3
      %s358 = smul.addr %s357, 2
      %s359 = smul.addr %s358, 8
      %s360 = scalar_lea.vmem %s0, %s359
      %p361 = scmp.lt.s32.totalorder %s19, 3
      %s362 = scalar_select %p361, %s19, 3
      %s363 = smul.addr %s362, 2
      %s364 = smul.addr %s363, 8
      %s365 = scalar_lea.vmem %s1, %s364
      %p366 = scmp.lt.s32.totalorder %s19, 3
      %s367 = scalar_select %p366, %s19, 3
      %s368 = smul.addr %s367, 2
      %s369 = smul.addr %s368, 8
      %s370 = scalar_lea.vmem %s2, %s369
      %p371 = scmp.lt.s32.totalorder %s19, 3
      %s372 = scalar_select %p371, %s19, 3
      %s373 = smul.addr %s372, 2
      %s374 = smul.addr %s373, 8
      %s375 = scalar_lea.vmem %s3, %s374
      %p376 = scmp.lt.s32.totalorder %s19, 3
      %s377 = scalar_select %p376, %s19, 3
      %s378 = smul.addr %s377, 2
      %s379 = smul.addr %s378, 8
      %s380 = scalar_lea.vmem %s4, %s379
      %p381 = scmp.lt.s32.totalorder %s19, 3
      %s382 = scalar_select %p381, %s19, 3
      %s383 = smul.addr %s382, 2
      %s384 = smul.addr %s383, 8
      %s385 = scalar_lea.vmem %s8, %s384
      %v386 = vld [vmem:[%s360] sm:$0xff]
      %v387 = vld [vmem:[%s360 + $0x8] sm:$0xff]
      %v388 = vld [vmem:[%s365] sm:$0xff]
      %v389 = vld [vmem:[%s365 + $0x8] sm:$0xff]
      %v390 = vld [vmem:[%s7] sm:$0x1]
      %v392 = vperm.slane %v390, 0
      %v394 = vadd.f32 %v388, %v392
      %v395 = vadd.f32 %v389, %v392
      %v396 = vmax.f32 %v394, 0.0
      %v397 = vmax.f32 %v395, 0.0
      %v398 = vand.u32 2147483647, %v394
      %v399 = vand.u32 2147483647, %v395
      %v400 = vsub.f32 0.0, %v398
      %v401 = vsub.f32 0.0, %v399
      %v402 = vmul.f32 %v400, 1.442695
      %v403 = vpow.pop %v402
      %v404 = vmul.f32 %v401, 1.442695
      %v405 = vpow.pop %v404
      %v406 = vadd.f32 %v403, 1.0
      %v407 = vadd.f32 %v405, 1.0
      %v408 = vlog2.pop %v406
      %v409 = vmul.f32 %v408, 0.6931472
      %v410 = vlog2.pop %v407
      %v411 = vmul.f32 %v410, 0.6931472
      %v412 = vadd.f32 %v396, %v409
      %v413 = vadd.f32 %v397, %v411
      %vm414 = vcmask 523264
      %415 = vst.msk [vmem:[#allocation2] sm:$0xff] %vm414, %v412
      %416 = vst.msk [vmem:[#allocation2 + $0x8] sm:$0xff] %vm414, %v413
      %v417 = vmul.f32 %v412, %v386
      %v418 = vmul.f32 %v413, %v387
      %419 = vst.msk [vmem:[#allocation3] sm:$0xff] %vm414, %v417
      %420 = vst.msk [vmem:[#allocation3 + $0x8] sm:$0xff] %vm414, %v418
      %v421 = vld [vmem:[%s370] sm:$0xff]
      %v422 = vld [vmem:[%s370 + $0x8] sm:$0xff]
      %423 = vxpose.xlu0.b32.start [1/16] %v421, 128
      %424 = vxpose.xlu0.b32.cont [2/16] %v422, 128
      %425 = vxpose.xlu0.b32.cont [3/16] 0.0, 128
      %426 = vxpose.xlu0.b32.cont [4/16] 0.0, 128
      %427 = vxpose.xlu0.b32.cont [5/16] 0.0, 128
      %428 = vxpose.xlu0.b32.cont [6/16] 0.0, 128
      %429 = vxpose.xlu0.b32.cont [7/16] 0.0, 128
      %430 = vxpose.xlu0.b32.cont [8/16] 0.0, 128
      %431 = vxpose.xlu0.b32.cont [9/16] 0.0, 128
      %432 = vxpose.xlu0.b32.cont [10/16] 0.0, 128
      %433 = vxpose.xlu0.b32.cont [11/16] 0.0, 128
      %434 = vxpose.xlu0.b32.cont [12/16] 0.0, 128
      %435 = vxpose.xlu0.b32.cont [13/16] 0.0, 128
      %436 = vxpose.xlu0.b32.cont [14/16] 0.0, 128
      %437 = vxpose.xlu0.b32.cont [15/16] 0.0, 128
      %438 = vxpose.xlu0.b32.end [16/16] 0.0, 128
      %v439 = vpop.trf.xlu0
      %v440 = vpop.trf.xlu0
      %v441 = vpop.trf.xlu0
      %v442 = vpop.trf.xlu0
      %v443 = vpop.trf.xlu0
      %v444 = vpop.trf.xlu0
      %v445 = vpop.trf.xlu0
      %v446 = vpop.trf.xlu0
      %v447 = vpop.trf.xlu0
      %v448 = vpop.trf.xlu0
      %v449 = vpop.trf.xlu0
      %v450 = vpop.trf.xlu0
      %v451 = vpop.trf.xlu0
      %v452 = vpop.trf.xlu0
      %v453 = vpop.trf.xlu0
      %v454 = vpop.trf.xlu0
      %vm455 = vcmask 130048
      %456 = vst.msk [vmem:[#allocation4] sm:$0xff] %vm455, %v439
      %457 = vst.msk [vmem:[#allocation4 + $0x8] sm:$0xff] %vm455, %v440
      %v458 = vld [vmem:[%s5] sm:$0xff]
      %v459 = vld [vmem:[%s5 + $0x8] sm:$0xff]
      %v460 = vld [vmem:[#allocation2] sm:$0x1]
      %v461 = vld [vmem:[#allocation3] sm:$0x1]
      %v462 = vld [vmem:[#allocation4] sm:$0xff]
      %v463 = vld [vmem:[#allocation4 + $0x8] sm:$0xff]
      %v464 = vld [vmem:[%s375] sm:$0x1]
      %v465 = vperm.slane %v460, 0
      %v466 = vmul.f32 %v465, %v458
      %v467 = vmul.f32 %v465, %v459
      %v468 = vmul.f32 %v466, 1.442695
      %v469 = vpow.pop %v468
      %v470 = vmul.f32 %v467, 1.442695
      %v471 = vpow.pop %v470
      %v472 = vmul.f32 %v469, 0.0
      %v473 = vmul.f32 %v471, 0.0
      %475 = vset.pattern.permute.xlu0 0
      %476 = vperm.xlu0 %475, %v462
      %v477 = vpop.permute.xlu0 %476
      %480 = vset.pattern.permute.xlu0 0
      %481 = vperm.xlu0 %480, %v463
      %v482 = vpop.permute.xlu0 %481
      %v484 = vperm.slane %v461, 0
      %v485 = vmul.f32 %v477, %v484
      %v486 = vmul.f32 %v482, %v484
      %v487 = vadd.f32 %v472, %v485
      %v488 = vadd.f32 %v473, %v486
      %v490 = vsel %vm455, %v464, 0
      %492 = vmatpush.msra.mxu0 0.0
      %493 = vmatpush.msra.mxu0 0.0
      %494 = vmatpush.msra.mxu0 0.0
      %495 = vmatpush.msra.mxu0 0.0
      %496 = vmatpush.msra.mxu0 0.0
      %497 = vmatpush.msra.mxu0 0.0
      %498 = vmatpush.msra.mxu0 0.0
      %499 = vmatpush.msra.mxu0 0.0
      %500 = vmatpush.msra.mxu0 0.0
      %501 = vmatpush.msra.mxu0 0.0
      %502 = vmatpush.msra.mxu0 0.0
      %503 = vmatpush.msra.mxu0 0.0
      %504 = vmatpush.msra.mxu0 0.0
      %505 = vmatpush.msra.mxu0 0.0
      %506 = vmatpush.msra.mxu0 %v488
      %507 = vmatpush.msra.mxu0 %v487
      %508 = vmatmul.f32.gmra.mxu0 %v490
      %v509 = vpop.f32.mrf.mxu0
      %v510 = vadd.f32 0.0, %v509
      %511 = vdwg.mxu0
      %vm512 = vcmask 516096
      %513 = vst.msk [vmem:[%s385] sm:$0x1] %vm512, %v510
      %v514 = vld [vmem:[#allocation2 + $0x1] sm:$0x1]
      %v515 = vld [vmem:[#allocation3 + $0x1] sm:$0x1]
      %v516 = vld [vmem:[#allocation4] sm:$0xff]
      %v517 = vld [vmem:[#allocation4 + $0x8] sm:$0xff]
      %v518 = vld [vmem:[%s375 + $0x1] sm:$0x1]
      %v519 = vperm.slane %v514, 0
      %v520 = vmul.f32 %v519, %v458
      %v521 = vmul.f32 %v519, %v459
      %v522 = vmul.f32 %v520, 1.442695
      %v523 = vpow.pop %v522
      %v524 = vmul.f32 %v521, 1.442695
      %v525 = vpow.pop %v524
      %v526 = vmul.f32 %v523, %v487
      %v527 = vmul.f32 %v525, %v488
      %529 = vset.pattern.permute.xlu0 1
      %530 = vperm.xlu0 %529, %v516
      %v531 = vpop.permute.xlu0 %530
      %534 = vset.pattern.permute.xlu0 1
      %535 = vperm.xlu0 %534, %v517
      %v536 = vpop.permute.xlu0 %535
      %v538 = vperm.slane %v515, 0
      %v539 = vmul.f32 %v531, %v538
      %v540 = vmul.f32 %v536, %v538
      %v541 = vadd.f32 %v526, %v539
      %v542 = vadd.f32 %v527, %v540
      %v544 = vsel %vm455, %v518, 0
      %546 = vmatpush.msra.mxu0 0.0
      %547 = vmatpush.msra.mxu0 0.0
      %548 = vmatpush.msra.mxu0 0.0
      %549 = vmatpush.msra.mxu0 0.0
      %550 = vmatpush.msra.mxu0 0.0
      %551 = vmatpush.msra.mxu0 0.0
      %552 = vmatpush.msra.mxu0 0.0
      %553 = vmatpush.msra.mxu0 0.0
      %554 = vmatpush.msra.mxu0 0.0
      %555 = vmatpush.msra.mxu0 0.0
      %556 = vmatpush.msra.mxu0 0.0
      %557 = vmatpush.msra.mxu0 0.0
      %558 = vmatpush.msra.mxu0 0.0
      %559 = vmatpush.msra.mxu0 0.0
      %560 = vmatpush.msra.mxu0 %v542
      %561 = vmatpush.msra.mxu0 %v541
      %562 = vmatmul.f32.gmra.mxu0 %v544
      %v563 = vpop.f32.mrf.mxu0
      %v564 = vadd.f32 0.0, %v563
      %565 = vdwg.mxu0
      %566 = vst.msk [vmem:[%s385 + $0x1] sm:$0x1] %vm512, %v564
      %v567 = vld [vmem:[#allocation2 + $0x2] sm:$0x1]
      %v568 = vld [vmem:[#allocation3 + $0x2] sm:$0x1]
      %v569 = vld [vmem:[#allocation4] sm:$0xff]
      %v570 = vld [vmem:[#allocation4 + $0x8] sm:$0xff]
      %v571 = vld [vmem:[%s375 + $0x2] sm:$0x1]
      %v572 = vperm.slane %v567, 0
      %v573 = vmul.f32 %v572, %v458
      %v574 = vmul.f32 %v572, %v459
      %v575 = vmul.f32 %v573, 1.442695
      %v576 = vpow.pop %v575
      %v577 = vmul.f32 %v574, 1.442695
      %v578 = vpow.pop %v577
      %v579 = vmul.f32 %v576, %v541
      %v580 = vmul.f32 %v578, %v542
      %582 = vset.pattern.permute.xlu0 2
      %583 = vperm.xlu0 %582, %v569
      %v584 = vpop.permute.xlu0 %583
      %587 = vset.pattern.permute.xlu0 2
      %588 = vperm.xlu0 %587, %v570
      %v589 = vpop.permute.xlu0 %588
      %v591 = vperm.slane %v568, 0
      %v592 = vmul.f32 %v584, %v591
      %v593 = vmul.f32 %v589, %v591
      %v594 = vadd.f32 %v579, %v592
      %v595 = vadd.f32 %v580, %v593
      %v597 = vsel %vm455, %v571, 0
      %599 = vmatpush.msra.mxu0 0.0
      %600 = vmatpush.msra.mxu0 0.0
      %601 = vmatpush.msra.mxu0 0.0
      %602 = vmatpush.msra.mxu0 0.0
      %603 = vmatpush.msra.mxu0 0.0
      %604 = vmatpush.msra.mxu0 0.0
      %605 = vmatpush.msra.mxu0 0.0
      %606 = vmatpush.msra.mxu0 0.0
      %607 = vmatpush.msra.mxu0 0.0
      %608 = vmatpush.msra.mxu0 0.0
      %609 = vmatpush.msra.mxu0 0.0
      %610 = vmatpush.msra.mxu0 0.0
      %611 = vmatpush.msra.mxu0 0.0
      %612 = vmatpush.msra.mxu0 0.0
      %613 = vmatpush.msra.mxu0 %v595
      %614 = vmatpush.msra.mxu0 %v594
      %615 = vmatmul.f32.gmra.mxu0 %v597
      %v616 = vpop.f32.mrf.mxu0
      %v617 = vadd.f32 0.0, %v616
      %618 = vdwg.mxu0
      %619 = vst.msk [vmem:[%s385 + $0x2] sm:$0x1] %vm512, %v617
      %v620 = vld [vmem:[#allocation2 + $0x3] sm:$0x1]
      %v621 = vld [vmem:[#allocation3 + $0x3] sm:$0x1]
      %v622 = vld [vmem:[#allocation4] sm:$0xff]
      %v623 = vld [vmem:[#allocation4 + $0x8] sm:$0xff]
      %v624 = vld [vmem:[%s375 + $0x3] sm:$0x1]
      %v625 = vperm.slane %v620, 0
      %v626 = vmul.f32 %v625, %v458
      %v627 = vmul.f32 %v625, %v459
      %v628 = vmul.f32 %v626, 1.442695
      %v629 = vpow.pop %v628
      %v630 = vmul.f32 %v627, 1.442695
      %v631 = vpow.pop %v630
      %v632 = vmul.f32 %v629, %v594
      %v633 = vmul.f32 %v631, %v595
      %635 = vset.pattern.permute.xlu0 3
      %636 = vperm.xlu0 %635, %v622
      %v637 = vpop.permute.xlu0 %636
      %640 = vset.pattern.permute.xlu0 3
      %641 = vperm.xlu0 %640, %v623
      %v642 = vpop.permute.xlu0 %641
      %v644 = vperm.slane %v621, 0
      %v645 = vmul.f32 %v637, %v644
      %v646 = vmul.f32 %v642, %v644
      %v647 = vadd.f32 %v632, %v645
      %v648 = vadd.f32 %v633, %v646
      %v650 = vsel %vm455, %v624, 0
      %652 = vmatpush.msra.mxu0 0.0
      %653 = vmatpush.msra.mxu0 0.0
      %654 = vmatpush.msra.mxu0 0.0
      %655 = vmatpush.msra.mxu0 0.0
      %656 = vmatpush.msra.mxu0 0.0
      %657 = vmatpush.msra.mxu0 0.0
      %658 = vmatpush.msra.mxu0 0.0
      %659 = vmatpush.msra.mxu0 0.0
      %660 = vmatpush.msra.mxu0 0.0
      %661 = vmatpush.msra.mxu0 0.0
      %662 = vmatpush.msra.mxu0 0.0
      %663 = vmatpush.msra.mxu0 0.0
      %664 = vmatpush.msra.mxu0 0.0
      %665 = vmatpush.msra.mxu0 0.0
      %666 = vmatpush.msra.mxu0 %v648
      %667 = vmatpush.msra.mxu0 %v647
      %668 = vmatmul.f32.gmra.mxu0 %v650
      %v669 = vpop.f32.mrf.mxu0
      %v670 = vadd.f32 0.0, %v669
      %671 = vdwg.mxu0
      %672 = vst.msk [vmem:[%s385 + $0x3] sm:$0x1] %vm512, %v670
      %v673 = vld [vmem:[#allocation2 + $0x4] sm:$0x1]
      %v674 = vld [vmem:[#allocation3 + $0x4] sm:$0x1]
      %v675 = vld [vmem:[#allocation4] sm:$0xff]
      %v676 = vld [vmem:[#allocation4 + $0x8] sm:$0xff]
      %v677 = vld [vmem:[%s375 + $0x4] sm:$0x1]
      %v678 = vperm.slane %v673, 0
      %v679 = vmul.f32 %v678, %v458
      %v680 = vmul.f32 %v678, %v459
      %v681 = vmul.f32 %v679, 1.442695
      %v682 = vpow.pop %v681
      %v683 = vmul.f32 %v680, 1.442695
      %v684 = vpow.pop %v683
      %v685 = vmul.f32 %v682, %v647
      %v686 = vmul.f32 %v684, %v648
      %688 = vset.pattern.permute.xlu0 4
      %689 = vperm.xlu0 %688, %v675
      %v690 = vpop.permute.xlu0 %689
      %693 = vset.pattern.permute.xlu0 4
      %694 = vperm.xlu0 %693, %v676
      %v695 = vpop.permute.xlu0 %694
      %v697 = vperm.slane %v674, 0
      %v698 = vmul.f32 %v690, %v697
      %v699 = vmul.f32 %v695, %v697
      %v700 = vadd.f32 %v685, %v698
      %v701 = vadd.f32 %v686, %v699
      %v703 = vsel %vm455, %v677, 0
      %705 = vmatpush.msra.mxu0 0.0
      %706 = vmatpush.msra.mxu0 0.0
      %707 = vmatpush.msra.mxu0 0.0
      %708 = vmatpush.msra.mxu0 0.0
      %709 = vmatpush.msra.mxu0 0.0
      %710 = vmatpush.msra.mxu0 0.0
      %711 = vmatpush.msra.mxu0 0.0
      %712 = vmatpush.msra.mxu0 0.0
      %713 = vmatpush.msra.mxu0 0.0
      %714 = vmatpush.msra.mxu0 0.0
      %715 = vmatpush.msra.mxu0 0.0
      %716 = vmatpush.msra.mxu0 0.0
      %717 = vmatpush.msra.mxu0 0.0
      %718 = vmatpush.msra.mxu0 0.0
      %719 = vmatpush.msra.mxu0 %v701
      %720 = vmatpush.msra.mxu0 %v700
      %721 = vmatmul.f32.gmra.mxu0 %v703
      %v722 = vpop.f32.mrf.mxu0
      %v723 = vadd.f32 0.0, %v722
      %724 = vdwg.mxu0
      %725 = vst.msk [vmem:[%s385 + $0x4] sm:$0x1] %vm512, %v723
      %v726 = vld [vmem:[#allocation2 + $0x5] sm:$0x1]
      %v727 = vld [vmem:[#allocation3 + $0x5] sm:$0x1]
      %v728 = vld [vmem:[#allocation4] sm:$0xff]
      %v729 = vld [vmem:[#allocation4 + $0x8] sm:$0xff]
      %v730 = vld [vmem:[%s375 + $0x5] sm:$0x1]
      %v731 = vperm.slane %v726, 0
      %v732 = vmul.f32 %v731, %v458
      %v733 = vmul.f32 %v731, %v459
      %v734 = vmul.f32 %v732, 1.442695
      %v735 = vpow.pop %v734
      %v736 = vmul.f32 %v733, 1.442695
      %v737 = vpow.pop %v736
      %v738 = vmul.f32 %v735, %v700
      %v739 = vmul.f32 %v737, %v701
      %741 = vset.pattern.permute.xlu0 5
      %742 = vperm.xlu0 %741, %v728
      %v743 = vpop.permute.xlu0 %742
      %746 = vset.pattern.permute.xlu0 5
      %747 = vperm.xlu0 %746, %v729
      %v748 = vpop.permute.xlu0 %747
      %v750 = vperm.slane %v727, 0
      %v751 = vmul.f32 %v743, %v750
      %v752 = vmul.f32 %v748, %v750
      %v753 = vadd.f32 %v738, %v751
      %v754 = vadd.f32 %v739, %v752
      %v756 = vsel %vm455, %v730, 0
      %758 = vmatpush.msra.mxu0 0.0
      %759 = vmatpush.msra.mxu0 0.0
      %760 = vmatpush.msra.mxu0 0.0
      %761 = vmatpush.msra.mxu0 0.0
      %762 = vmatpush.msra.mxu0 0.0
      %763 = vmatpush.msra.mxu0 0.0
      %764 = vmatpush.msra.mxu0 0.0
      %765 = vmatpush.msra.mxu0 0.0
      %766 = vmatpush.msra.mxu0 0.0
      %767 = vmatpush.msra.mxu0 0.0
      %768 = vmatpush.msra.mxu0 0.0
      %769 = vmatpush.msra.mxu0 0.0
      %770 = vmatpush.msra.mxu0 0.0
      %771 = vmatpush.msra.mxu0 0.0
      %772 = vmatpush.msra.mxu0 %v754
      %773 = vmatpush.msra.mxu0 %v753
      %774 = vmatmul.f32.gmra.mxu0 %v756
      %v775 = vpop.f32.mrf.mxu0
      %v776 = vadd.f32 0.0, %v775
      %777 = vdwg.mxu0
      %778 = vst.msk [vmem:[%s385 + $0x5] sm:$0x1] %vm512, %v776
      %v779 = vld [vmem:[#allocation2 + $0x6] sm:$0x1]
      %v780 = vld [vmem:[#allocation3 + $0x6] sm:$0x1]
      %v781 = vld [vmem:[#allocation4] sm:$0xff]
      %v782 = vld [vmem:[#allocation4 + $0x8] sm:$0xff]
      %v783 = vld [vmem:[%s375 + $0x6] sm:$0x1]
      %v784 = vperm.slane %v779, 0
      %v785 = vmul.f32 %v784, %v458
      %v786 = vmul.f32 %v784, %v459
      %v787 = vmul.f32 %v785, 1.442695
      %v788 = vpow.pop %v787
      %v789 = vmul.f32 %v786, 1.442695
      %v790 = vpow.pop %v789
      %v791 = vmul.f32 %v788, %v753
      %v792 = vmul.f32 %v790, %v754
      %794 = vset.pattern.permute.xlu0 6
      %795 = vperm.xlu0 %794, %v781
      %v796 = vpop.permute.xlu0 %795
      %799 = vset.pattern.permute.xlu0 6
      %800 = vperm.xlu0 %799, %v782
      %v801 = vpop.permute.xlu0 %800
      %v803 = vperm.slane %v780, 0
      %v804 = vmul.f32 %v796, %v803
      %v805 = vmul.f32 %v801, %v803
      %v806 = vadd.f32 %v791, %v804
      %v807 = vadd.f32 %v792, %v805
      %v809 = vsel %vm455, %v783, 0
      %811 = vmatpush.msra.mxu0 0.0
      %812 = vmatpush.msra.mxu0 0.0
      %813 = vmatpush.msra.mxu0 0.0
      %814 = vmatpush.msra.mxu0 0.0
      %815 = vmatpush.msra.mxu0 0.0
      %816 = vmatpush.msra.mxu0 0.0
      %817 = vmatpush.msra.mxu0 0.0
      %818 = vmatpush.msra.mxu0 0.0
      %819 = vmatpush.msra.mxu0 0.0
      %820 = vmatpush.msra.mxu0 0.0
      %821 = vmatpush.msra.mxu0 0.0
      %822 = vmatpush.msra.mxu0 0.0
      %823 = vmatpush.msra.mxu0 0.0
      %824 = vmatpush.msra.mxu0 0.0
      %825 = vmatpush.msra.mxu0 %v807
      %826 = vmatpush.msra.mxu0 %v806
      %827 = vmatmul.f32.gmra.mxu0 %v809
      %v828 = vpop.f32.mrf.mxu0
      %v829 = vadd.f32 0.0, %v828
      %830 = vdwg.mxu0
      %831 = vst.msk [vmem:[%s385 + $0x6] sm:$0x1] %vm512, %v829
      %v832 = vld [vmem:[#allocation2 + $0x7] sm:$0x1]
      %v833 = vld [vmem:[#allocation3 + $0x7] sm:$0x1]
      %v834 = vld [vmem:[#allocation4] sm:$0xff]
      %v835 = vld [vmem:[#allocation4 + $0x8] sm:$0xff]
      %v836 = vld [vmem:[%s375 + $0x7] sm:$0x1]
      %v837 = vperm.slane %v832, 0
      %v838 = vmul.f32 %v837, %v458
      %v839 = vmul.f32 %v837, %v459
      %v840 = vmul.f32 %v838, 1.442695
      %v841 = vpow.pop %v840
      %v842 = vmul.f32 %v839, 1.442695
      %v843 = vpow.pop %v842
      %v844 = vmul.f32 %v841, %v806
      %v845 = vmul.f32 %v843, %v807
      %847 = vset.pattern.permute.xlu0 7
      %848 = vperm.xlu0 %847, %v834
      %v849 = vpop.permute.xlu0 %848
      %852 = vset.pattern.permute.xlu0 7
      %853 = vperm.xlu0 %852, %v835
      %v854 = vpop.permute.xlu0 %853
      %v856 = vperm.slane %v833, 0
      %v857 = vmul.f32 %v849, %v856
      %v858 = vmul.f32 %v854, %v856
      %v859 = vadd.f32 %v844, %v857
      %v860 = vadd.f32 %v845, %v858
      %v862 = vsel %vm455, %v836, 0
      %864 = vmatpush.msra.mxu0 0.0
      %865 = vmatpush.msra.mxu0 0.0
      %866 = vmatpush.msra.mxu0 0.0
      %867 = vmatpush.msra.mxu0 0.0
      %868 = vmatpush.msra.mxu0 0.0
      %869 = vmatpush.msra.mxu0 0.0
      %870 = vmatpush.msra.mxu0 0.0
      %871 = vmatpush.msra.mxu0 0.0
      %872 = vmatpush.msra.mxu0 0.0
      %873 = vmatpush.msra.mxu0 0.0
      %874 = vmatpush.msra.mxu0 0.0
      %875 = vmatpush.msra.mxu0 0.0
      %876 = vmatpush.msra.mxu0 0.0
      %877 = vmatpush.msra.mxu0 0.0
      %878 = vmatpush.msra.mxu0 %v860
      %879 = vmatpush.msra.mxu0 %v859
      %880 = vmatmul.f32.gmra.mxu0 %v862
      %v881 = vpop.f32.mrf.mxu0
      %v882 = vadd.f32 0.0, %v881
      %883 = vdwg.mxu0
      %884 = vst.msk [vmem:[%s385 + $0x7] sm:$0x1] %vm512, %v882
      %v885 = vld [vmem:[#allocation2 + $0x8] sm:$0x1]
      %v886 = vld [vmem:[#allocation3 + $0x8] sm:$0x1]
      %v887 = vld [vmem:[#allocation4] sm:$0xff]
      %v888 = vld [vmem:[#allocation4 + $0x8] sm:$0xff]
      %v889 = vld [vmem:[%s375 + $0x8] sm:$0x1]
      %v890 = vperm.slane %v885, 0
      %v891 = vmul.f32 %v890, %v458
      %v892 = vmul.f32 %v890, %v459
      %v893 = vmul.f32 %v891, 1.442695
      %v894 = vpow.pop %v893
      %v895 = vmul.f32 %v892, 1.442695
      %v896 = vpow.pop %v895
      %v897 = vmul.f32 %v894, %v859
      %v898 = vmul.f32 %v896, %v860
      %900 = vset.pattern.permute.xlu0 8
      %901 = vperm.xlu0 %900, %v887
      %v902 = vpop.permute.xlu0 %901
      %905 = vset.pattern.permute.xlu0 8
      %906 = vperm.xlu0 %905, %v888
      %v907 = vpop.permute.xlu0 %906
      %v909 = vperm.slane %v886, 0
      %v910 = vmul.f32 %v902, %v909
      %v911 = vmul.f32 %v907, %v909
      %v912 = vadd.f32 %v897, %v910
      %v913 = vadd.f32 %v898, %v911
      %v915 = vsel %vm455, %v889, 0
      %917 = vmatpush.msra.mxu0 0.0
      %918 = vmatpush.msra.mxu0 0.0
      %919 = vmatpush.msra.mxu0 0.0
      %920 = vmatpush.msra.mxu0 0.0
      %921 = vmatpush.msra.mxu0 0.0
      %922 = vmatpush.msra.mxu0 0.0
      %923 = vmatpush.msra.mxu0 0.0
      %924 = vmatpush.msra.mxu0 0.0
      %925 = vmatpush.msra.mxu0 0.0
      %926 = vmatpush.msra.mxu0 0.0
      %927 = vmatpush.msra.mxu0 0.0
      %928 = vmatpush.msra.mxu0 0.0
      %929 = vmatpush.msra.mxu0 0.0
      %930 = vmatpush.msra.mxu0 0.0
      %931 = vmatpush.msra.mxu0 %v913
      %932 = vmatpush.msra.mxu0 %v912
      %933 = vmatmul.f32.gmra.mxu0 %v915
      %v934 = vpop.f32.mrf.mxu0
      %v935 = vadd.f32 0.0, %v934
      %936 = vdwg.mxu0
      %937 = vst.msk [vmem:[%s385 + $0x8] sm:$0x1] %vm512, %v935
      %v938 = vld [vmem:[#allocation2 + $0x9] sm:$0x1]
      %v939 = vld [vmem:[#allocation3 + $0x9] sm:$0x1]
      %v940 = vld [vmem:[#allocation4] sm:$0xff]
      %v941 = vld [vmem:[#allocation4 + $0x8] sm:$0xff]
      %v942 = vld [vmem:[%s375 + $0x9] sm:$0x1]
      %v943 = vperm.slane %v938, 0
      %v944 = vmul.f32 %v943, %v458
      %v945 = vmul.f32 %v943, %v459
      %v946 = vmul.f32 %v944, 1.442695
      %v947 = vpow.pop %v946
      %v948 = vmul.f32 %v945, 1.442695
      %v949 = vpow.pop %v948
      %v950 = vmul.f32 %v947, %v912
      %v951 = vmul.f32 %v949, %v913
      %953 = vset.pattern.permute.xlu0 9
      %954 = vperm.xlu0 %953, %v940
      %v955 = vpop.permute.xlu0 %954
      %958 = vset.pattern.permute.xlu0 9
      %959 = vperm.xlu0 %958, %v941
      %v960 = vpop.permute.xlu0 %959
      %v962 = vperm.slane %v939, 0
      %v963 = vmul.f32 %v955, %v962
      %v964 = vmul.f32 %v960, %v962
      %v965 = vadd.f32 %v950, %v963
      %v966 = vadd.f32 %v951, %v964
      %v968 = vsel %vm455, %v942, 0
      %970 = vmatpush.msra.mxu0 0.0
      %971 = vmatpush.msra.mxu0 0.0
      %972 = vmatpush.msra.mxu0 0.0
      %973 = vmatpush.msra.mxu0 0.0
      %974 = vmatpush.msra.mxu0 0.0
      %975 = vmatpush.msra.mxu0 0.0
      %976 = vmatpush.msra.mxu0 0.0
      %977 = vmatpush.msra.mxu0 0.0
      %978 = vmatpush.msra.mxu0 0.0
      %979 = vmatpush.msra.mxu0 0.0
      %980 = vmatpush.msra.mxu0 0.0
      %981 = vmatpush.msra.mxu0 0.0
      %982 = vmatpush.msra.mxu0 0.0
      %983 = vmatpush.msra.mxu0 0.0
      %984 = vmatpush.msra.mxu0 %v966
      %985 = vmatpush.msra.mxu0 %v965
      %986 = vmatmul.f32.gmra.mxu0 %v968
      %v987 = vpop.f32.mrf.mxu0
      %v988 = vadd.f32 0.0, %v987
      %989 = vdwg.mxu0
      %990 = vst.msk [vmem:[%s385 + $0x9] sm:$0x1] %vm512, %v988
      %v991 = vld [vmem:[#allocation2 + $0xa] sm:$0x1]
      %v992 = vld [vmem:[#allocation3 + $0xa] sm:$0x1]
      %v993 = vld [vmem:[#allocation4] sm:$0xff]
      %v994 = vld [vmem:[#allocation4 + $0x8] sm:$0xff]
      %v995 = vld [vmem:[%s375 + $0xa] sm:$0x1]
      %v996 = vperm.slane %v991, 0
      %v997 = vmul.f32 %v996, %v458
      %v998 = vmul.f32 %v996, %v459
      %v999 = vmul.f32 %v997, 1.442695
      %v1000 = vpow.pop %v999
      %v1001 = vmul.f32 %v998, 1.442695
      %v1002 = vpow.pop %v1001
      %v1003 = vmul.f32 %v1000, %v965
      %v1004 = vmul.f32 %v1002, %v966
      %1006 = vset.pattern.permute.xlu0 10
      %1007 = vperm.xlu0 %1006, %v993
      %v1008 = vpop.permute.xlu0 %1007
      %1011 = vset.pattern.permute.xlu0 10
      %1012 = vperm.xlu0 %1011, %v994
      %v1013 = vpop.permute.xlu0 %1012
      %v1015 = vperm.slane %v992, 0
      %v1016 = vmul.f32 %v1008, %v1015
      %v1017 = vmul.f32 %v1013, %v1015
      %v1018 = vadd.f32 %v1003, %v1016
      %v1019 = vadd.f32 %v1004, %v1017
      %v1021 = vsel %vm455, %v995, 0
      %1023 = vmatpush.msra.mxu0 0.0
      %1024 = vmatpush.msra.mxu0 0.0
      %1025 = vmatpush.msra.mxu0 0.0
      %1026 = vmatpush.msra.mxu0 0.0
      %1027 = vmatpush.msra.mxu0 0.0
      %1028 = vmatpush.msra.mxu0 0.0
      %1029 = vmatpush.msra.mxu0 0.0
      %1030 = vmatpush.msra.mxu0 0.0
      %1031 = vmatpush.msra.mxu0 0.0
      %1032 = vmatpush.msra.mxu0 0.0
      %1033 = vmatpush.msra.mxu0 0.0
      %1034 = vmatpush.msra.mxu0 0.0
      %1035 = vmatpush.msra.mxu0 0.0
      %1036 = vmatpush.msra.mxu0 0.0
      %1037 = vmatpush.msra.mxu0 %v1019
      %1038 = vmatpush.msra.mxu0 %v1018
      %1039 = vmatmul.f32.gmra.mxu0 %v1021
      %v1040 = vpop.f32.mrf.mxu0
      %v1041 = vadd.f32 0.0, %v1040
      %1042 = vdwg.mxu0
      %1043 = vst.msk [vmem:[%s385 + $0xa] sm:$0x1] %vm512, %v1041
      %v1044 = vld [vmem:[#allocation2 + $0xb] sm:$0x1]
      %v1045 = vld [vmem:[#allocation3 + $0xb] sm:$0x1]
      %v1046 = vld [vmem:[#allocation4] sm:$0xff]
      %v1047 = vld [vmem:[#allocation4 + $0x8] sm:$0xff]
      %v1048 = vld [vmem:[%s375 + $0xb] sm:$0x1]
      %v1049 = vperm.slane %v1044, 0
      %v1050 = vmul.f32 %v1049, %v458
      %v1051 = vmul.f32 %v1049, %v459
      %v1052 = vmul.f32 %v1050, 1.442695
      %v1053 = vpow.pop %v1052
      %v1054 = vmul.f32 %v1051, 1.442695
      %v1055 = vpow.pop %v1054
      %v1056 = vmul.f32 %v1053, %v1018
      %v1057 = vmul.f32 %v1055, %v1019
      %1059 = vset.pattern.permute.xlu0 11
      %1060 = vperm.xlu0 %1059, %v1046
      %v1061 = vpop.permute.xlu0 %1060
      %1064 = vset.pattern.permute.xlu0 11
      %1065 = vperm.xlu0 %1064, %v1047
      %v1066 = vpop.permute.xlu0 %1065
      %v1068 = vperm.slane %v1045, 0
      %v1069 = vmul.f32 %v1061, %v1068
      %v1070 = vmul.f32 %v1066, %v1068
      %v1071 = vadd.f32 %v1056, %v1069
      %v1072 = vadd.f32 %v1057, %v1070
      %v1074 = vsel %vm455, %v1048, 0
      %1076 = vmatpush.msra.mxu0 0.0
      %1077 = vmatpush.msra.mxu0 0.0
      %1078 = vmatpush.msra.mxu0 0.0
      %1079 = vmatpush.msra.mxu0 0.0
      %1080 = vmatpush.msra.mxu0 0.0
      %1081 = vmatpush.msra.mxu0 0.0
      %1082 = vmatpush.msra.mxu0 0.0
      %1083 = vmatpush.msra.mxu0 0.0
      %1084 = vmatpush.msra.mxu0 0.0
      %1085 = vmatpush.msra.mxu0 0.0
      %1086 = vmatpush.msra.mxu0 0.0
      %1087 = vmatpush.msra.mxu0 0.0
      %1088 = vmatpush.msra.mxu0 0.0
      %1089 = vmatpush.msra.mxu0 0.0
      %1090 = vmatpush.msra.mxu0 %v1072
      %1091 = vmatpush.msra.mxu0 %v1071
      %1092 = vmatmul.f32.gmra.mxu0 %v1074
      %v1093 = vpop.f32.mrf.mxu0
      %v1094 = vadd.f32 0.0, %v1093
      %1095 = vdwg.mxu0
      %1096 = vst.msk [vmem:[%s385 + $0xb] sm:$0x1] %vm512, %v1094
      %v1097 = vld [vmem:[#allocation2 + $0xc] sm:$0x1]
      %v1098 = vld [vmem:[#allocation3 + $0xc] sm:$0x1]
      %v1099 = vld [vmem:[#allocation4] sm:$0xff]
      %v1100 = vld [vmem:[#allocation4 + $0x8] sm:$0xff]
      %v1101 = vld [vmem:[%s375 + $0xc] sm:$0x1]
      %v1102 = vperm.slane %v1097, 0
      %v1103 = vmul.f32 %v1102, %v458
      %v1104 = vmul.f32 %v1102, %v459
      %v1105 = vmul.f32 %v1103, 1.442695
      %v1106 = vpow.pop %v1105
      %v1107 = vmul.f32 %v1104, 1.442695
      %v1108 = vpow.pop %v1107
      %v1109 = vmul.f32 %v1106, %v1071
      %v1110 = vmul.f32 %v1108, %v1072
      %1112 = vset.pattern.permute.xlu0 12
      %1113 = vperm.xlu0 %1112, %v1099
      %v1114 = vpop.permute.xlu0 %1113
      %1117 = vset.pattern.permute.xlu0 12
      %1118 = vperm.xlu0 %1117, %v1100
      %v1119 = vpop.permute.xlu0 %1118
      %v1121 = vperm.slane %v1098, 0
      %v1122 = vmul.f32 %v1114, %v1121
      %v1123 = vmul.f32 %v1119, %v1121
      %v1124 = vadd.f32 %v1109, %v1122
      %v1125 = vadd.f32 %v1110, %v1123
      %v1127 = vsel %vm455, %v1101, 0
      %1129 = vmatpush.msra.mxu0 0.0
      %1130 = vmatpush.msra.mxu0 0.0
      %1131 = vmatpush.msra.mxu0 0.0
      %1132 = vmatpush.msra.mxu0 0.0
      %1133 = vmatpush.msra.mxu0 0.0
      %1134 = vmatpush.msra.mxu0 0.0
      %1135 = vmatpush.msra.mxu0 0.0
      %1136 = vmatpush.msra.mxu0 0.0
      %1137 = vmatpush.msra.mxu0 0.0
      %1138 = vmatpush.msra.mxu0 0.0
      %1139 = vmatpush.msra.mxu0 0.0
      %1140 = vmatpush.msra.mxu0 0.0
      %1141 = vmatpush.msra.mxu0 0.0
      %1142 = vmatpush.msra.mxu0 0.0
      %1143 = vmatpush.msra.mxu0 %v1125
      %1144 = vmatpush.msra.mxu0 %v1124
      %1145 = vmatmul.f32.gmra.mxu0 %v1127
      %v1146 = vpop.f32.mrf.mxu0
      %v1147 = vadd.f32 0.0, %v1146
      %1148 = vdwg.mxu0
      %1149 = vst.msk [vmem:[%s385 + $0xc] sm:$0x1] %vm512, %v1147
      %v1150 = vld [vmem:[#allocation2 + $0xd] sm:$0x1]
      %v1151 = vld [vmem:[#allocation3 + $0xd] sm:$0x1]
      %v1152 = vld [vmem:[#allocation4] sm:$0xff]
      %v1153 = vld [vmem:[#allocation4 + $0x8] sm:$0xff]
      %v1154 = vld [vmem:[%s375 + $0xd] sm:$0x1]
      %v1155 = vperm.slane %v1150, 0
      %v1156 = vmul.f32 %v1155, %v458
      %v1157 = vmul.f32 %v1155, %v459
      %v1158 = vmul.f32 %v1156, 1.442695
      %v1159 = vpow.pop %v1158
      %v1160 = vmul.f32 %v1157, 1.442695
      %v1161 = vpow.pop %v1160
      %v1162 = vmul.f32 %v1159, %v1124
      %v1163 = vmul.f32 %v1161, %v1125
      %1165 = vset.pattern.permute.xlu0 13
      %1166 = vperm.xlu0 %1165, %v1152
      %v1167 = vpop.permute.xlu0 %1166
      %1170 = vset.pattern.permute.xlu0 13
      %1171 = vperm.xlu0 %1170, %v1153
      %v1172 = vpop.permute.xlu0 %1171
      %v1174 = vperm.slane %v1151, 0
      %v1175 = vmul.f32 %v1167, %v1174
      %v1176 = vmul.f32 %v1172, %v1174
      %v1177 = vadd.f32 %v1162, %v1175
      %v1178 = vadd.f32 %v1163, %v1176
      %v1180 = vsel %vm455, %v1154, 0
      %1182 = vmatpush.msra.mxu0 0.0
      %1183 = vmatpush.msra.mxu0 0.0
      %1184 = vmatpush.msra.mxu0 0.0
      %1185 = vmatpush.msra.mxu0 0.0
      %1186 = vmatpush.msra.mxu0 0.0
      %1187 = vmatpush.msra.mxu0 0.0
      %1188 = vmatpush.msra.mxu0 0.0
      %1189 = vmatpush.msra.mxu0 0.0
      %1190 = vmatpush.msra.mxu0 0.0
      %1191 = vmatpush.msra.mxu0 0.0
      %1192 = vmatpush.msra.mxu0 0.0
      %1193 = vmatpush.msra.mxu0 0.0
      %1194 = vmatpush.msra.mxu0 0.0
      %1195 = vmatpush.msra.mxu0 0.0
      %1196 = vmatpush.msra.mxu0 %v1178
      %1197 = vmatpush.msra.mxu0 %v1177
      %1198 = vmatmul.f32.gmra.mxu0 %v1180
      %v1199 = vpop.f32.mrf.mxu0
      %v1200 = vadd.f32 0.0, %v1199
      %1201 = vdwg.mxu0
      %1202 = vst.msk [vmem:[%s385 + $0xd] sm:$0x1] %vm512, %v1200
      %v1203 = vld [vmem:[#allocation2 + $0xe] sm:$0x1]
      %v1204 = vld [vmem:[#allocation3 + $0xe] sm:$0x1]
      %v1205 = vld [vmem:[#allocation4] sm:$0xff]
      %v1206 = vld [vmem:[#allocation4 + $0x8] sm:$0xff]
      %v1207 = vld [vmem:[%s375 + $0xe] sm:$0x1]
      %v1208 = vperm.slane %v1203, 0
      %v1209 = vmul.f32 %v1208, %v458
      %v1210 = vmul.f32 %v1208, %v459
      %v1211 = vmul.f32 %v1209, 1.442695
      %v1212 = vpow.pop %v1211
      %v1213 = vmul.f32 %v1210, 1.442695
      %v1214 = vpow.pop %v1213
      %v1215 = vmul.f32 %v1212, %v1177
      %v1216 = vmul.f32 %v1214, %v1178
      %1218 = vset.pattern.permute.xlu0 14
      %1219 = vperm.xlu0 %1218, %v1205
      %v1220 = vpop.permute.xlu0 %1219
      %1223 = vset.pattern.permute.xlu0 14
      %1224 = vperm.xlu0 %1223, %v1206
      %v1225 = vpop.permute.xlu0 %1224
      %v1227 = vperm.slane %v1204, 0
      %v1228 = vmul.f32 %v1220, %v1227
      %v1229 = vmul.f32 %v1225, %v1227
      %v1230 = vadd.f32 %v1215, %v1228
      %v1231 = vadd.f32 %v1216, %v1229
      %v1233 = vsel %vm455, %v1207, 0
      %1235 = vmatpush.msra.mxu0 0.0
      %1236 = vmatpush.msra.mxu0 0.0
      %1237 = vmatpush.msra.mxu0 0.0
      %1238 = vmatpush.msra.mxu0 0.0
      %1239 = vmatpush.msra.mxu0 0.0
      %1240 = vmatpush.msra.mxu0 0.0
      %1241 = vmatpush.msra.mxu0 0.0
      %1242 = vmatpush.msra.mxu0 0.0
      %1243 = vmatpush.msra.mxu0 0.0
      %1244 = vmatpush.msra.mxu0 0.0
      %1245 = vmatpush.msra.mxu0 0.0
      %1246 = vmatpush.msra.mxu0 0.0
      %1247 = vmatpush.msra.mxu0 0.0
      %1248 = vmatpush.msra.mxu0 0.0
      %1249 = vmatpush.msra.mxu0 %v1231
      %1250 = vmatpush.msra.mxu0 %v1230
      %1251 = vmatmul.f32.gmra.mxu0 %v1233
      %v1252 = vpop.f32.mrf.mxu0
      %v1253 = vadd.f32 0.0, %v1252
      %1254 = vdwg.mxu0
      %1255 = vst.msk [vmem:[%s385 + $0xe] sm:$0x1] %vm512, %v1253
      %v1256 = vld [vmem:[#allocation2 + $0xf] sm:$0x1]
      %v1257 = vld [vmem:[#allocation3 + $0xf] sm:$0x1]
      %v1258 = vld [vmem:[#allocation4] sm:$0xff]
      %v1259 = vld [vmem:[#allocation4 + $0x8] sm:$0xff]
      %v1260 = vld [vmem:[%s375 + $0xf] sm:$0x1]
      %v1261 = vperm.slane %v1256, 0
      %v1262 = vmul.f32 %v1261, %v458
      %v1263 = vmul.f32 %v1261, %v459
      %v1264 = vmul.f32 %v1262, 1.442695
      %v1265 = vpow.pop %v1264
      %v1266 = vmul.f32 %v1263, 1.442695
      %v1267 = vpow.pop %v1266
      %v1268 = vmul.f32 %v1265, %v1230
      %v1269 = vmul.f32 %v1267, %v1231
      %1271 = vset.pattern.permute.xlu0 15
      %1272 = vperm.xlu0 %1271, %v1258
      %v1273 = vpop.permute.xlu0 %1272
      %1276 = vset.pattern.permute.xlu0 15
      %1277 = vperm.xlu0 %1276, %v1259
      %v1278 = vpop.permute.xlu0 %1277
      %v1280 = vperm.slane %v1257, 0
      %v1281 = vmul.f32 %v1273, %v1280
      %v1282 = vmul.f32 %v1278, %v1280
      %v1283 = vadd.f32 %v1268, %v1281
      %v1284 = vadd.f32 %v1269, %v1282
      %v1286 = vsel %vm455, %v1260, 0
      %1288 = vmatpush.msra.mxu0 0.0
      %1289 = vmatpush.msra.mxu0 0.0
      %1290 = vmatpush.msra.mxu0 0.0
      %1291 = vmatpush.msra.mxu0 0.0
      %1292 = vmatpush.msra.mxu0 0.0
      %1293 = vmatpush.msra.mxu0 0.0
      %1294 = vmatpush.msra.mxu0 0.0
      %1295 = vmatpush.msra.mxu0 0.0
      %1296 = vmatpush.msra.mxu0 0.0
      %1297 = vmatpush.msra.mxu0 0.0
      %1298 = vmatpush.msra.mxu0 0.0
      %1299 = vmatpush.msra.mxu0 0.0
      %1300 = vmatpush.msra.mxu0 0.0
      %1301 = vmatpush.msra.mxu0 0.0
      %1302 = vmatpush.msra.mxu0 %v1284
      %1303 = vmatpush.msra.mxu0 %v1283
      %1304 = vmatmul.f32.gmra.mxu0 %v1286
      %v1305 = vpop.f32.mrf.mxu0
      %v1306 = vadd.f32 0.0, %v1305
      %1307 = vdwg.mxu0
      %1308 = vst.msk [vmem:[%s385 + $0xf] sm:$0x1] %vm512, %v1306
      %v1309 = vld [vmem:[%s380] sm:$0xff]
      %v1310 = vld [vmem:[%s380 + $0x8] sm:$0xff]
      %v1311 = vsub.f32 0.0, %v1309
      %v1312 = vsub.f32 0.0, %v1310
      %v1313 = vmul.f32 %v1311, 1.442695
      %v1314 = vpow.pop %v1313
      %v1315 = vmul.f32 %v1312, 1.442695
      %v1316 = vpow.pop %v1315
      %v1317 = vadd.f32 %v1314, 1.0
      %v1318 = vadd.f32 %v1316, 1.0
      %v1319 = vrcp.pop %v1317
      %v1320 = vmul.f32 %v1317, %v1319
      %v1321 = vsub.f32 1.0, %v1320
      %v1322 = vmul.f32 %v1319, %v1321
      %v1323 = vadd.f32 %v1319, %v1322
      %vm1324 = vweird.f32 %v1317
      %vm1325 = vweird.f32 %v1319
      %vm1326 = vmor %vm1324, %vm1325
      %v1327 = vsel %vm1326, %v1319, %v1323
      %v1328 = vand.u32 2147483647, %v1317
      %vm1329 = vcmp.eq.f32.partialorder %v1328, 8.507059e+37
      %v1330 = vand.u32 %v1317, 2147483648
      %v1331 = vor.u32 1.1754944e-38, %v1330
      %v1332 = vsel %vm1329, %v1331, %v1327
      %v1333 = vmul.f32 1.0, %v1332
      %v1334 = vrcp.pop %v1318
      %v1335 = vmul.f32 %v1318, %v1334
      %v1336 = vsub.f32 1.0, %v1335
      %v1337 = vmul.f32 %v1334, %v1336
      %v1338 = vadd.f32 %v1334, %v1337
      %vm1339 = vweird.f32 %v1318
      %vm1340 = vweird.f32 %v1334
      %vm1341 = vmor %vm1339, %vm1340
      %v1342 = vsel %vm1341, %v1334, %v1338
      %v1343 = vand.u32 2147483647, %v1318
      %vm1344 = vcmp.eq.f32.partialorder %v1343, 8.507059e+37
      %v1345 = vand.u32 %v1318, 2147483648
      %v1346 = vor.u32 1.1754944e-38, %v1345
      %v1347 = vsel %vm1344, %v1346, %v1342
      %v1348 = vmul.f32 1.0, %v1347
      %v1349 = vmul.f32 %v1309, %v1333
      %v1350 = vmul.f32 %v1310, %v1348
      %v1351 = vld [vmem:[%s385] sm:$0xff]
      %v1352 = vld [vmem:[%s385 + $0x8] sm:$0xff]
      %v1353 = vld [vmem:[%s6] sm:$0x1]
      %v1355 = vperm.slane %v1353, 0
      %v1357 = vmul.f32 %v1355, %v386
      %v1358 = vmul.f32 %v1355, %v387
      %v1359 = vadd.f32 %v1351, %v1357
      %v1360 = vadd.f32 %v1352, %v1358
      %v1361 = vmul.f32 %v1359, %v1349
      %v1362 = vmul.f32 %v1360, %v1350
      %1363 = vst.msk [vmem:[%s385] sm:$0xff] %vm414, %v1361
      %1364 = vst.msk [vmem:[%s385 + $0x8] sm:$0xff] %vm414, %v1362
      %p1365 = scmp.lt.s32.totalorder %s19, 3
      %s1366 = scalar_select %p1365, %s19, 3
      %s1367 = smul.addr %s1366, 2
      %s1368 = smul.addr %s1367, 8
      %s1369 = scalar_lea.vmem %s8, %s1368
      // Predicated region
      $region53: #{run.25} parent=51 // pred_check
        %p1370 = pneg %p230
      $region54: #{run.25} parent=51 // pred_check_branch
        %1372 = sbr.rel (%p1370) target = $region56
      $region55: #{run.25} parent=51 // pred_region
        _
      $region56: #{run.25} parent=51 // pred_fallthru
        _
    $region52: #{run.25} parent=5 // pred_fallthru
      _
    %p1373 = scmp.le.s32.totalorder 2, %s14
    // Predicated region
    $region57: #{run.25} parent=5 // pred_check
      %p1374 = pneg %p1373
    $region58: #{run.25} parent=5 // pred_check_branch
      %1376 = sbr.rel (%p1374) target = $region60
    $region59: #{run.25} parent=5 // pred_region
      %s1377 = ssub.s32 %s14, 2
      // Predicated region
      $region61: #{run.25} parent=59 // pred_check
        %p1378 = pneg %p236
      $region62: #{run.25} parent=59 // pred_check_branch
        %1380 = sbr.rel (%p1378) target = $region64
      $region63: #{run.25} parent=59 // pred_region
        %p1381 = scmp.lt.s32.totalorder %s20, 3
        %s1382 = scalar_select %p1381, %s20, 3
        %s1383 = smul.addr %s1382, 2
        %s1384 = smul.addr %s1383, 8
        %s1385 = scalar_lea.vmem %s8, %s1384
      $region64: #{run.25} parent=59 // pred_fallthru
        _
    $region60: #{run.25} parent=5 // pred_fallthru
      _
  $region6: #{run.25} parent=0 // loop_footer
    %s18 = sadd.s32 1, %s14
  $region7: #{run.25} parent=0 // loop_footer_branch
    %13 = sbr.rel target = $region3
  $region8: #{run.25} parent=0 // loop_exit
    _

// kernel: run.32
$region0: #{run.32}
  #allocation0 [shape = 'u32[]', space=smem, size = 0x4, offset = 0x4, fixed_abs, tag = 'smem constant byte address 0x4 - core index']
  #allocation1 [shape = 'u32[72,128]{1,0:T(1,128)}', space=vmem, size = 0x9000, scoped, tag = 'internal scratch']
  %s0 = inlined_call_operand.vmem [shape: bf16[16,128], index: 0, kind: input, shape index: {}]
  %s1 = inlined_call_operand.vmem [shape: bf16[128,160], index: 1, kind: input, shape index: {}]
  %s2 = inlined_call_operand.vmem [shape: f32[16,160], index: 2, kind: output, shape index: {}]
  %s3 = sld [smem:[#allocation0]]
  $region18: #{run.32} parent=0
    _
  %s5 = ssub.s32 1, %s3
  %s6 = scalar_select 0, %s5, %s3
  // Predicated region
  $region2: #{run.32} parent=0 // pred_check
    _
  $region3: #{run.32} parent=0 // pred_check_branch
    %8 = sbr.rel (0) target = $region5
  $region4: #{run.32} parent=0 // pred_region
    _
  $region5: #{run.32} parent=0 // pred_fallthru
    _
  // Predicated region
  $region6: #{run.32} parent=0 // pred_check
    _
  $region7: #{run.32} parent=0 // pred_check_branch
    %10 = sbr.rel (0) target = $region9
  $region8: #{run.32} parent=0 // pred_region
    _
  $region9: #{run.32} parent=0 // pred_fallthru
    _
  %v11 = vld [vmem:[%s0] sm:$0xf]
  %v12 = vld [vmem:[%s0 + $0x4] sm:$0xf]
  %v13 = vld [vmem:[%s1] sm:$0xff]
  %v14 = vld [vmem:[%s1 + $0x8] sm:$0xff]
  %v15 = vld [vmem:[%s1 + $0x10] sm:$0xff]
  %v16 = vld [vmem:[%s1 + $0x18] sm:$0xff]
  %v17 = vld [vmem:[%s1 + $0x20] sm:$0xff]
  %v18 = vld [vmem:[%s1 + $0x28] sm:$0xff]
  %v19 = vld [vmem:[%s1 + $0x30] sm:$0xff]
  %v20 = vld [vmem:[%s1 + $0x38] sm:$0xff]
  %v21 = vld [vmem:[%s1 + $0x40] sm:$0xff]
  %v22 = vld [vmem:[%s1 + $0x48] sm:$0xff]
  %v23 = vld [vmem:[%s1 + $0x50] sm:$0xff]
  %v24 = vld [vmem:[%s1 + $0x58] sm:$0xff]
  %v25 = vld [vmem:[%s1 + $0x60] sm:$0xff]
  %v26 = vld [vmem:[%s1 + $0x68] sm:$0xff]
  %v27 = vld [vmem:[%s1 + $0x70] sm:$0xff]
  %v28 = vld [vmem:[%s1 + $0x78] sm:$0xff]
  %v31 = vunpack.c.l.b16 %v11
  %v32 = vunpack.c.l.b16 %v12
  %v33 = vpack.c.b16 %v32, %v31
  %v51 = vunpack.c.l.b16 %v13
  %v52 = vunpack.c.h.b16 %v13
  %v53 = vunpack.c.l.b16 %v14
  %v54 = vunpack.c.h.b16 %v14
  %v55 = vunpack.c.l.b16 %v15
  %v56 = vunpack.c.h.b16 %v15
  %v57 = vunpack.c.l.b16 %v16
  %v58 = vunpack.c.h.b16 %v16
  %v59 = vunpack.c.l.b16 %v17
  %v60 = vunpack.c.h.b16 %v17
  %v61 = vunpack.c.l.b16 %v18
  %v62 = vunpack.c.h.b16 %v18
  %v63 = vunpack.c.l.b16 %v19
  %v64 = vunpack.c.h.b16 %v19
  %v65 = vunpack.c.l.b16 %v20
  %v66 = vunpack.c.h.b16 %v20
  %v67 = vunpack.c.l.b16 %v21
  %v68 = vunpack.c.h.b16 %v21
  %v69 = vunpack.c.l.b16 %v22
  %v70 = vunpack.c.h.b16 %v22
  %v71 = vunpack.c.l.b16 %v23
  %v72 = vunpack.c.h.b16 %v23
  %v73 = vunpack.c.l.b16 %v24
  %v74 = vunpack.c.h.b16 %v24
  %v75 = vunpack.c.l.b16 %v25
  %v76 = vunpack.c.h.b16 %v25
  %v77 = vunpack.c.l.b16 %v26
  %v78 = vunpack.c.h.b16 %v26
  %v79 = vunpack.c.l.b16 %v27
  %v80 = vunpack.c.h.b16 %v27
  %v81 = vunpack.c.l.b16 %v28
  %v82 = vunpack.c.h.b16 %v28
  %v83 = vpack.c.b16 %v53, %v51
  %v84 = vpack.c.b16 %v54, %v52
  %v85 = vpack.c.b16 %v57, %v55
  %v86 = vpack.c.b16 %v58, %v56
  %v87 = vpack.c.b16 %v61, %v59
  %v88 = vpack.c.b16 %v62, %v60
  %v89 = vpack.c.b16 %v65, %v63
  %v90 = vpack.c.b16 %v66, %v64
  %v91 = vpack.c.b16 %v69, %v67
  %v92 = vpack.c.b16 %v70, %v68
  %v93 = vpack.c.b16 %v73, %v71
  %v94 = vpack.c.b16 %v74, %v72
  %v95 = vpack.c.b16 %v77, %v75
  %v96 = vpack.c.b16 %v78, %v76
  %v97 = vpack.c.b16 %v81, %v79
  %v98 = vpack.c.b16 %v82, %v80
  %115 = vmatpush.bf16.msra.mxu0 %v97
  %116 = vmatpush.bf16.msra.mxu0 %v95
  %117 = vmatpush.bf16.msra.mxu0 %v93
  %118 = vmatpush.bf16.msra.mxu0 %v91
  %119 = vmatpush.bf16.msra.mxu0 %v89
  %120 = vmatpush.bf16.msra.mxu0 %v87
  %121 = vmatpush.bf16.msra.mxu0 %v85
  %122 = vmatpush.bf16.msra.mxu0 %v83
  %123 = vmatmul.bf16.gmra.mxu0 %v33
  %v124 = vpop.f32.mrf.mxu0
  %v125 = vadd.f32 0.0, %v124
  %v126 = vpop.f32.mrf.mxu0
  %v127 = vadd.f32 0.0, %v126
  %128 = vdwg.mxu0
  %129 = vmatpush.bf16.msra.mxu0 %v98
  %130 = vmatpush.bf16.msra.mxu0 %v96
  %131 = vmatpush.bf16.msra.mxu0 %v94
  %132 = vmatpush.bf16.msra.mxu0 %v92
  %133 = vmatpush.bf16.msra.mxu0 %v90
  %134 = vmatpush.bf16.msra.mxu0 %v88
  %135 = vmatpush.bf16.msra.mxu0 %v86
  %136 = vmatpush.bf16.msra.mxu0 %v84
  %137 = vmatmul.bf16.gmra.mxu0 %v33
  %v138 = vpop.f32.mrf.mxu0
  %v139 = vadd.f32 0.0, %v138
  %v140 = vpop.f32.mrf.mxu0
  %v141 = vadd.f32 0.0, %v140
  %142 = vdwg.mxu0
  %143 = vst [vmem:[%s2] sm:$0xff] %v125
  %vm144 = vcmask 261120
  %145 = vst.msk [vmem:[%s2 + $0x8] sm:$0xff] %vm144, %v139
  %146 = vst [vmem:[%s2 + $0x10] sm:$0xff] %v127
  %147 = vst.msk [vmem:[%s2 + $0x18] sm:$0xff] %vm144, %v141
  // Predicated region
  $region10: #{run.32} parent=0 // pred_check
    _
  $region11: #{run.32} parent=0 // pred_check_branch
    %149 = sbr.rel (0) target = $region13
  $region12: #{run.32} parent=0 // pred_region
    _
  $region13: #{run.32} parent=0 // pred_fallthru
    _
  // Predicated region
  $region14: #{run.32} parent=0 // pred_check
    _
  $region15: #{run.32} parent=0 // pred_check_branch
    %151 = sbr.rel (0) target = $region17
  $region16: #{run.32} parent=0 // pred_region
    _
  $region17: #{run.32} parent=0 // pred_fallthru
    _

// kernel: run.36
$region0: #{run.36}
  #allocation0 [shape = 'u32[]', space=smem, size = 0x4, offset = 0x4, fixed_abs, tag = 'smem constant byte address 0x4 - core index']
  #allocation1 [shape = 'u32[72,128]{1,0:T(1,128)}', space=vmem, size = 0x9000, scoped, tag = 'internal scratch']
  %s0 = inlined_call_operand.vmem [shape: f32[2,4,64], index: 0, kind: input, shape index: {}]
  %s1 = inlined_call_operand.vmem [shape: f32[2,64], index: 1, kind: output, shape index: {}]
  %s2 = sld [smem:[#allocation0]]
  $region14: #{run.36} parent=0
    _
  %s4 = ssub.s32 1, %s2
  %s5 = scalar_select 0, %s4, %s2
  // Predicated region
  $region2: #{run.36} parent=0 // pred_check
    _
  $region3: #{run.36} parent=0 // pred_check_branch
    %7 = sbr.rel (0) target = $region5
  $region4: #{run.36} parent=0 // pred_region
    _
  $region5: #{run.36} parent=0 // pred_fallthru
    _
  %v8 = vld [vmem:[%s0] sm:$0xf]
  %v9 = vld [vmem:[%s0 + $0x4] sm:$0xf]
  %vm10 = vcmask 519168
  %v11 = vsel %vm10, %v8, 0.0
  %v12 = vrot.slane %v11, 4
  %v13 = vadd.f32 %v11, %v12
  %v14 = vrot.slane %v13, 2
  %v15 = vadd.f32 %v13, %v14
  %v16 = vrot.slane %v15, 1
  %v17 = vadd.f32 %v15, %v16
  %v18 = vsel %vm10, %v9, 0.0
  %v19 = vrot.slane %v18, 4
  %v20 = vadd.f32 %v18, %v19
  %v21 = vrot.slane %v20, 2
  %v22 = vadd.f32 %v20, %v21
  %v23 = vrot.slane %v22, 1
  %v24 = vadd.f32 %v22, %v23
  %v25 = vrcp.pop 4.0
  %v26 = vmul.f32 4.0, %v25
  %v27 = vsub.f32 1.0, %v26
  %v28 = vmul.f32 %v25, %v27
  %v29 = vadd.f32 %v25, %v28
  %vm30 = vweird.f32 %v25
  %v31 = vsel %vm30, %v25, %v29
  %v32 = vmul.f32 %v17, %v31
  %v33 = vmul.f32 %v24, %v31
  %vm36 = vcmask 1041409
  %v37 = vsel %vm36, %v33, %v32
  %vm39 = vcmask 517120
  %40 = vst.msk [vmem:[%s1] sm:$0x3] %vm39, %v37
  // Predicated region
  $region6: #{run.36} parent=0 // pred_check
    _
  $region7: #{run.36} parent=0 // pred_check_branch
    %42 = sbr.rel (0) target = $region9
  $region8: #{run.36} parent=0 // pred_region
    _
  $region9: #{run.36} parent=0 // pred_fallthru
    _
  // Predicated region
  $region10: #{run.36} parent=0 // pred_check
    _
  $region11: #{run.36} parent=0 // pred_check_branch
    %44 = sbr.rel (0) target = $region13
  $region12: #{run.36} parent=0 // pred_region
    _
  $region13: #{run.36} parent=0 // pred_fallthru
    _

// kernel: run.35
$region0: #{run.35}
  #allocation0 [shape = 'u32[]', space=smem, size = 0x4, offset = 0x4, fixed_abs, tag = 'smem constant byte address 0x4 - core index']
  #allocation1 [shape = 'u32[72,128]{1,0:T(1,128)}', space=vmem, size = 0x9000, scoped, tag = 'internal scratch']
  %s0 = inlined_call_operand.vmem [shape: f32[8,64], index: 0, kind: input, shape index: {}]
  %s1 = inlined_call_operand.vmem [shape: f32[1,64], index: 1, kind: input, shape index: {}]
  %s2 = inlined_call_operand.vmem [shape: f32[1,64], index: 2, kind: input, shape index: {}]
  %s3 = inlined_call_operand.vmem [shape: f32[8,64], index: 3, kind: output, shape index: {}]
  %s4 = sld [smem:[#allocation0]]
  $region22: #{run.35} parent=0
    _
  %s6 = ssub.s32 1, %s4
  %s7 = scalar_select 0, %s6, %s4
  // Predicated region
  $region2: #{run.35} parent=0 // pred_check
    _
  $region3: #{run.35} parent=0 // pred_check_branch
    %9 = sbr.rel (0) target = $region5
  $region4: #{run.35} parent=0 // pred_region
    _
  $region5: #{run.35} parent=0 // pred_fallthru
    _
  // Predicated region
  $region6: #{run.35} parent=0 // pred_check
    _
  $region7: #{run.35} parent=0 // pred_check_branch
    %11 = sbr.rel (0) target = $region9
  $region8: #{run.35} parent=0 // pred_region
    _
  $region9: #{run.35} parent=0 // pred_fallthru
    _
  // Predicated region
  $region10: #{run.35} parent=0 // pred_check
    _
  $region11: #{run.35} parent=0 // pred_check_branch
    %13 = sbr.rel (0) target = $region13
  $region12: #{run.35} parent=0 // pred_region
    _
  $region13: #{run.35} parent=0 // pred_fallthru
    _
  %v14 = vld [vmem:[%s0] sm:$0xff]
  %vm15 = vcmask 523264
  %v16 = vsel %vm15, %v14, 0.0
  %17 = vadd.xlane.f32.xlu0 %v16
  %v18 = vpop.xlane.xlu0 %17
  %v19 = vrcp.pop 64.0
  %v20 = vmul.f32 64.0, %v19
  %v21 = vsub.f32 1.0, %v20
  %v22 = vmul.f32 %v19, %v21
  %v23 = vadd.f32 %v19, %v22
  %vm24 = vweird.f32 %v19
  %v25 = vsel %vm24, %v19, %v23
  %v26 = vmul.f32 %v18, %v25
  %v27 = vsub.f32 %v14, %v26
  %v28 = vmul.f32 %v27, %v27
  %v29 = vsel %vm15, %v28, 0.0
  %30 = vadd.xlane.f32.xlu0 %v29
  %v31 = vpop.xlane.xlu0 %30
  %v32 = vmul.f32 %v31, %v25
  %v33 = vadd.f32 %v32, 1e-05
  %v34 = vrsqrt.pop %v33
  %v35 = vmul.f32 %v34, %v33
  %v36 = vmul.f32 %v35, %v34
  %v37 = vmul.f32 0.5, %v36
  %v38 = vsub.f32 1.5, %v37
  %v39 = vmul.f32 %v34, %v38
  %vm40 = vweird.f32 %v33
  %vm41 = vweird.f32 %v34
  %vm42 = vmor %vm40, %vm41
  %v43 = vsel %vm42, %v34, %v39
  %v44 = vmul.f32 %v27, %v43
  %v45 = vld [vmem:[%s1] sm:$0x1]
  %v47 = vperm.slane %v45, 0
  %v49 = vmul.f32 %v44, %v47
  %v50 = vld [vmem:[%s2] sm:$0x1]
  %v52 = vperm.slane %v50, 0
  %v54 = vadd.f32 %v49, %v52
  %55 = vst.msk [vmem:[%s3] sm:$0xff] %vm15, %v54
  // Predicated region
  $region14: #{run.35} parent=0 // pred_check
    _
  $region15: #{run.35} parent=0 // pred_check_branch
    %57 = sbr.rel (0) target = $region17
  $region16: #{run.35} parent=0 // pred_region
    _
  $region17: #{run.35} parent=0 // pred_fallthru
    _
  // Predicated region
  $region18: #{run.35} parent=0 // pred_check
    _
  $region19: #{run.35} parent=0 // pred_check_branch
    %59 = sbr.rel (0) target = $region21
  $region20: #{run.35} parent=0 // pred_region
    _
  $region21: #{run.35} parent=0 // pred_fallthru
    _

// kernel: run.33
$region0: #{run.33}
  #allocation0 [shape = 'u32[]', space=smem, size = 0x4, offset = 0x4, fixed_abs, tag = 'smem constant byte address 0x4 - core index']
  #allocation1 [shape = 'u32[72,128]{1,0:T(1,128)}', space=vmem, size = 0x9000, scoped, tag = 'internal scratch']
  #allocation2 [shape = 'f32[4,128]{1,0:T(4,128)}', space=vmem, size = 0x800, scoped, tag = 'scratch operand']
  #allocation3 [shape = 'f32[4,128]{1,0:T(4,128)}', space=vmem, size = 0x800, scoped, tag = 'scratch operand']
  #allocation4 [shape = 'f32[16,4]{1,0:T(8,128)}', space=vmem, size = 0x2000, scoped, tag = 'scratch operand']
  %s0 = inlined_call_operand.vmem [shape: f32[4,4,128], index: 0, kind: input, shape index: {}]
  %s1 = inlined_call_operand.vmem [shape: f32[4,4,128], index: 1, kind: input, shape index: {}]
  %s2 = inlined_call_operand.vmem [shape: f32[4,4,16], index: 2, kind: input, shape index: {}]
  %s3 = inlined_call_operand.vmem [shape: f32[4,4,16], index: 3, kind: input, shape index: {}]
  %s4 = inlined_call_operand.vmem [shape: f32[4,4,128], index: 4, kind: input, shape index: {}]
  %s5 = inlined_call_operand.vmem [shape: f32[16,128], index: 5, kind: input, shape index: {}]
  %s6 = inlined_call_operand.vmem [shape: f32[1,128], index: 6, kind: input, shape index: {}]
  %s7 = inlined_call_operand.vmem [shape: f32[1,128], index: 7, kind: input, shape index: {}]
  %s8 = inlined_call_operand.vmem [shape: f32[4,4,128], index: 8, kind: output, shape index: {}]
  %s9 = sld [smem:[#allocation0]]
  $region65: #{run.33} parent=0
    _
  %s11 = ssub.s32 1, %s9
  %s12 = scalar_select 0, %s11, %s9
  loop: start=0, step=1, limit=6
  $region2: #{run.33} parent=0 // loop_pre_header
    _
  $region3: #{run.33} parent=0 // loop_header
    %s14 = sphi 0, %s18
    %p15 = scmp.ge.s32.totalorder %s14, 6
    %s24 = sphi 0, %s26
    %s27 = sphi 0, %s24
    %s28 = sphi 0, %s27
    %s44 = sphi 0, %s28
    %s50 = sphi 0, %s52
    %s53 = sphi 0, %s50
    %s54 = sphi 0, %s53
    %s70 = sphi 0, %s54
    %s76 = sphi 0, %s78
    %s79 = sphi 0, %s76
    %s80 = sphi 0, %s79
    %s96 = sphi 0, %s80
    %s102 = sphi 0, %s104
    %s105 = sphi 0, %s102
    %s106 = sphi 0, %s105
    %s122 = sphi 0, %s106
    %s128 = sphi 0, %s130
    %s131 = sphi 0, %s128
    %s132 = sphi 0, %s131
    %s148 = sphi 0, %s132
    %s152 = sphi 0, %s152
    %s154 = sphi 0, %s152
    %s155 = sphi 0, %s154
    %s169 = sphi 0, %s155
    %s173 = sphi 0, %s173
    %s175 = sphi 0, %s173
    %s176 = sphi 0, %s175
    %s190 = sphi 0, %s176
    %s194 = sphi 0, %s194
    %s196 = sphi 0, %s194
    %s197 = sphi 0, %s196
    %s211 = sphi 0, %s197
    %s217 = sphi 0, %s219
    %s220 = sphi 0, %s217
    %s221 = sphi 0, %s220
    %s237 = sphi 0, %s221
  $region4: #{run.33} parent=0 // loop_header_branch
    %17 = sbr.rel (%p15) target = $region8
  $region5: #{run.33} parent=0 // loop_body
    %s19 = ssub.s32 %s14, 1
    %s20 = ssub.s32 %s14, 2
    %s21 = sadd.s32 %s14, 1
    %s22 = ssub.s32 %s14, %s21
    %p23 = scmp.eq.s32.totalorder %s22, 0
    %s25 = sadd.s32 %s24, 1
    %s26 = scalar_select %p23, %s24, %s25
    %p29 = pneg %p23
    %p30 = scmp.eq.s32.totalorder %s14, 3
    %p31 = por %p29, %p30
    %p32 = scmp.ne.s32.totalorder %s24, %s27
    %p33 = scmp.eq.s32.totalorder %s14, 0
    %p34 = por %p32, %p33
    %p35 = scmp.ne.s32.totalorder %s24, %s27
    %p36 = scmp.eq.s32.totalorder %s19, 3
    %p37 = por %p35, %p36
    %p38 = scmp.ne.s32.totalorder %s27, %s28
    %p39 = scmp.eq.s32.totalorder %s19, 0
    %p40 = por %p38, %p39
    %p41 = scmp.ne.s32.totalorder %s27, %s28
    %p42 = scmp.eq.s32.totalorder %s20, 3
    %p43 = por %p41, %p42
    %p45 = scmp.ne.s32.totalorder %s28, %s44
    %p46 = scmp.eq.s32.totalorder %s20, 0
    %p47 = por %p45, %p46
    %s48 = ssub.s32 %s14, %s21
    %p49 = scmp.eq.s32.totalorder %s48, 0
    %s51 = sadd.s32 %s50, 1
    %s52 = scalar_select %p49, %s50, %s51
    %p55 = pneg %p49
    %p56 = scmp.eq.s32.totalorder %s14, 3
    %p57 = por %p55, %p56
    %p58 = scmp.ne.s32.totalorder %s50, %s53
    %p59 = scmp.eq.s32.totalorder %s14, 0
    %p60 = por %p58, %p59
    %p61 = scmp.ne.s32.totalorder %s50, %s53
    %p62 = scmp.eq.s32.totalorder %s19, 3
    %p63 = por %p61, %p62
    %p64 = scmp.ne.s32.totalorder %s53, %s54
    %p65 = scmp.eq.s32.totalorder %s19, 0
    %p66 = por %p64, %p65
    %p67 = scmp.ne.s32.totalorder %s53, %s54
    %p68 = scmp.eq.s32.totalorder %s20, 3
    %p69 = por %p67, %p68
    %p71 = scmp.ne.s32.totalorder %s54, %s70
    %p72 = scmp.eq.s32.totalorder %s20, 0
    %p73 = por %p71, %p72
    %s74 = ssub.s32 %s14, %s21
    %p75 = scmp.eq.s32.totalorder %s74, 0
    %s77 = sadd.s32 %s76, 1
    %s78 = scalar_select %p75, %s76, %s77
    %p81 = pneg %p75
    %p82 = scmp.eq.s32.totalorder %s14, 3
    %p83 = por %p81, %p82
    %p84 = scmp.ne.s32.totalorder %s76, %s79
    %p85 = scmp.eq.s32.totalorder %s14, 0
    %p86 = por %p84, %p85
    %p87 = scmp.ne.s32.totalorder %s76, %s79
    %p88 = scmp.eq.s32.totalorder %s19, 3
    %p89 = por %p87, %p88
    %p90 = scmp.ne.s32.totalorder %s79, %s80
    %p91 = scmp.eq.s32.totalorder %s19, 0
    %p92 = por %p90, %p91
    %p93 = scmp.ne.s32.totalorder %s79, %s80
    %p94 = scmp.eq.s32.totalorder %s20, 3
    %p95 = por %p93, %p94
    %p97 = scmp.ne.s32.totalorder %s80, %s96
    %p98 = scmp.eq.s32.totalorder %s20, 0
    %p99 = por %p97, %p98
    %s100 = ssub.s32 %s14, %s21
    %p101 = scmp.eq.s32.totalorder %s100, 0
    %s103 = sadd.s32 %s102, 1
    %s104 = scalar_select %p101, %s102, %s103
    %p107 = pneg %p101
    %p108 = scmp.eq.s32.totalorder %s14, 3
    %p109 = por %p107, %p108
    %p110 = scmp.ne.s32.totalorder %s102, %s105
    %p111 = scmp.eq.s32.totalorder %s14, 0
    %p112 = por %p110, %p111
    %p113 = scmp.ne.s32.totalorder %s102, %s105
    %p114 = scmp.eq.s32.totalorder %s19, 3
    %p115 = por %p113, %p114
    %p116 = scmp.ne.s32.totalorder %s105, %s106
    %p117 = scmp.eq.s32.totalorder %s19, 0
    %p118 = por %p116, %p117
    %p119 = scmp.ne.s32.totalorder %s105, %s106
    %p120 = scmp.eq.s32.totalorder %s20, 3
    %p121 = por %p119, %p120
    %p123 = scmp.ne.s32.totalorder %s106, %s122
    %p124 = scmp.eq.s32.totalorder %s20, 0
    %p125 = por %p123, %p124
    %s126 = ssub.s32 %s14, %s21
    %p127 = scmp.eq.s32.totalorder %s126, 0
    %s129 = sadd.s32 %s128, 1
    %s130 = scalar_select %p127, %s128, %s129
    %p133 = pneg %p127
    %p134 = scmp.eq.s32.totalorder %s14, 3
    %p135 = por %p133, %p134
    %p136 = scmp.ne.s32.totalorder %s128, %s131
    %p137 = scmp.eq.s32.totalorder %s14, 0
    %p138 = por %p136, %p137
    %p139 = scmp.ne.s32.totalorder %s128, %s131
    %p140 = scmp.eq.s32.totalorder %s19, 3
    %p141 = por %p139, %p140
    %p142 = scmp.ne.s32.totalorder %s131, %s132
    %p143 = scmp.eq.s32.totalorder %s19, 0
    %p144 = por %p142, %p143
    %p145 = scmp.ne.s32.totalorder %s131, %s132
    %p146 = scmp.eq.s32.totalorder %s20, 3
    %p147 = por %p145, %p146
    %p149 = scmp.ne.s32.totalorder %s132, %s148
    %p150 = scmp.eq.s32.totalorder %s20, 0
    %p151 = por %p149, %p150
    %s153 = sadd.s32 %s152, 1
    %p156 = scmp.eq.s32.totalorder %s14, 3
    %p157 = scmp.ne.s32.totalorder %s152, %s154
    %p158 = scmp.eq.s32.totalorder %s14, 0
    %p159 = por %p157, %p158
    %p160 = scmp.ne.s32.totalorder %s152, %s154
    %p161 = scmp.eq.s32.totalorder %s19, 3
    %p162 = por %p160, %p161
    %p163 = scmp.ne.s32.totalorder %s154, %s155
    %p164 = scmp.eq.s32.totalorder %s19, 0
    %p165 = por %p163, %p164
    %p166 = scmp.ne.s32.totalorder %s154, %s155
    %p167 = scmp.eq.s32.totalorder %s20, 3
    %p168 = por %p166, %p167
    %p170 = scmp.ne.s32.totalorder %s155, %s169
    %p171 = scmp.eq.s32.totalorder %s20, 0
    %p172 = por %p170, %p171
    %s174 = sadd.s32 %s173, 1
    %p177 = scmp.eq.s32.totalorder %s14, 3
    %p178 = scmp.ne.s32.totalorder %s173, %s175
    %p179 = scmp.eq.s32.totalorder %s14, 0
    %p180 = por %p178, %p179
    %p181 = scmp.ne.s32.totalorder %s173, %s175
    %p182 = scmp.eq.s32.totalorder %s19, 3
    %p183 = por %p181, %p182
    %p184 = scmp.ne.s32.totalorder %s175, %s176
    %p185 = scmp.eq.s32.totalorder %s19, 0
    %p186 = por %p184, %p185
    %p187 = scmp.ne.s32.totalorder %s175, %s176
    %p188 = scmp.eq.s32.totalorder %s20, 3
    %p189 = por %p187, %p188
    %p191 = scmp.ne.s32.totalorder %s176, %s190
    %p192 = scmp.eq.s32.totalorder %s20, 0
    %p193 = por %p191, %p192
    %s195 = sadd.s32 %s194, 1
    %p198 = scmp.eq.s32.totalorder %s14, 3
    %p199 = scmp.ne.s32.totalorder %s194, %s196
    %p200 = scmp.eq.s32.totalorder %s14, 0
    %p201 = por %p199, %p200
    %p202 = scmp.ne.s32.totalorder %s194, %s196
    %p203 = scmp.eq.s32.totalorder %s19, 3
    %p204 = por %p202, %p203
    %p205 = scmp.ne.s32.totalorder %s196, %s197
    %p206 = scmp.eq.s32.totalorder %s19, 0
    %p207 = por %p205, %p206
    %p208 = scmp.ne.s32.totalorder %s196, %s197
    %p209 = scmp.eq.s32.totalorder %s20, 3
    %p210 = por %p208, %p209
    %p212 = scmp.ne.s32.totalorder %s197, %s211
    %p213 = scmp.eq.s32.totalorder %s20, 0
    %p214 = por %p212, %p213
    %s215 = ssub.s32 %s14, %s21
    %p216 = scmp.eq.s32.totalorder %s215, 0
    %s218 = sadd.s32 %s217, 1
    %s219 = scalar_select %p216, %s217, %s218
    %p222 = pneg %p216
    %p223 = scmp.eq.s32.totalorder %s14, 3
    %p224 = por %p222, %p223
    %p225 = scmp.ne.s32.totalorder %s217, %s220
    %p226 = scmp.eq.s32.totalorder %s14, 0
    %p227 = por %p225, %p226
    %p228 = scmp.ne.s32.totalorder %s217, %s220
    %p229 = scmp.eq.s32.totalorder %s19, 3
    %p230 = por %p228, %p229
    %p231 = scmp.ne.s32.totalorder %s220, %s221
    %p232 = scmp.eq.s32.totalorder %s19, 0
    %p233 = por %p231, %p232
    %p234 = scmp.ne.s32.totalorder %s220, %s221
    %p235 = scmp.eq.s32.totalorder %s20, 3
    %p236 = por %p234, %p235
    %p238 = scmp.ne.s32.totalorder %s221, %s237
    %p239 = scmp.eq.s32.totalorder %s20, 0
    %p240 = por %p238, %p239
    %p241 = scmp.le.s32.totalorder 1, %s14
    %p242 = scmp.lt.s32.totalorder %s14, 5
    %p243 = pnand %p241, %p242
    %p244 = pneg %p243
    // Predicated region
    $region9: #{run.33} parent=5 // pred_check
      _
    $region10: #{run.33} parent=5 // pred_check_branch
      %246 = sbr.rel (%p243) target = $region12
    $region11: #{run.33} parent=5 // pred_region
      %s247 = ssub.s32 %s14, 1
      // Predicated region
      $region13: #{run.33} parent=11 // pred_check
        %p248 = pneg %p165
      $region14: #{run.33} parent=11 // pred_check_branch
        %250 = sbr.rel (%p248) target = $region16
      $region15: #{run.33} parent=11 // pred_region
        _
      $region16: #{run.33} parent=11 // pred_fallthru
        _
      // Predicated region
      $region17: #{run.33} parent=11 // pred_check
        %p251 = pneg %p186
      $region18: #{run.33} parent=11 // pred_check_branch
        %253 = sbr.rel (%p251) target = $region20
      $region19: #{run.33} parent=11 // pred_region
        _
      $region20: #{run.33} parent=11 // pred_fallthru
        _
      // Predicated region
      $region21: #{run.33} parent=11 // pred_check
        %p254 = pneg %p207
      $region22: #{run.33} parent=11 // pred_check_branch
        %256 = sbr.rel (%p254) target = $region24
      $region23: #{run.33} parent=11 // pred_region
        _
      $region24: #{run.33} parent=11 // pred_fallthru
        _
    $region12: #{run.33} parent=5 // pred_fallthru
      _
    %p257 = scmp.lt.s32.totalorder %s14, 4
    // Predicated region
    $region25: #{run.33} parent=5 // pred_check
      %p258 = pneg %p257
    $region26: #{run.33} parent=5 // pred_check_branch
      %260 = sbr.rel (%p258) target = $region28
    $region27: #{run.33} parent=5 // pred_region
      // Predicated region
      $region29: #{run.33} parent=27 // pred_check
        %p261 = pneg %p34
      $region30: #{run.33} parent=27 // pred_check_branch
        %263 = sbr.rel (%p261) target = $region32
      $region31: #{run.33} parent=27 // pred_region
        %p264 = scmp.lt.s32.totalorder %s14, 3
        %s265 = scalar_select %p264, %s14, 3
        %s266 = smul.addr %s265, 4
        %s267 = scalar_lea.vmem %s0, %s266
      $region32: #{run.33} parent=27 // pred_fallthru
        _
      // Predicated region
      $region33: #{run.33} parent=27 // pred_check
        %p268 = pneg %p60
      $region34: #{run.33} parent=27 // pred_check_branch
        %270 = sbr.rel (%p268) target = $region36
      $region35: #{run.33} parent=27 // pred_region
        %p271 = scmp.lt.s32.totalorder %s14, 3
        %s272 = scalar_select %p271, %s14, 3
        %s273 = smul.addr %s272, 4
        %s274 = scalar_lea.vmem %s1, %s273
      $region36: #{run.33} parent=27 // pred_fallthru
        _
      // Predicated region
      $region37: #{run.33} parent=27 // pred_check
        %p275 = pneg %p86
      $region38: #{run.33} parent=27 // pred_check_branch
        %277 = sbr.rel (%p275) target = $region40
      $region39: #{run.33} parent=27 // pred_region
        %p278 = scmp.lt.s32.totalorder %s14, 3
        %s279 = scalar_select %p278, %s14, 3
        %s280 = smul.addr %s279, 4
        %s281 = scalar_lea.vmem %s2, %s280
      $region40: #{run.33} parent=27 // pred_fallthru
        _
      // Predicated region
      $region41: #{run.33} parent=27 // pred_check
        %p282 = pneg %p112
      $region42: #{run.33} parent=27 // pred_check_branch
        %284 = sbr.rel (%p282) target = $region44
      $region43: #{run.33} parent=27 // pred_region
        %p285 = scmp.lt.s32.totalorder %s14, 3
        %s286 = scalar_select %p285, %s14, 3
        %s287 = smul.addr %s286, 4
        %s288 = scalar_lea.vmem %s3, %s287
      $region44: #{run.33} parent=27 // pred_fallthru
        _
      // Predicated region
      $region45: #{run.33} parent=27 // pred_check
        %p289 = pneg %p138
      $region46: #{run.33} parent=27 // pred_check_branch
        %291 = sbr.rel (%p289) target = $region48
      $region47: #{run.33} parent=27 // pred_region
        %p292 = scmp.lt.s32.totalorder %s14, 3
        %s293 = scalar_select %p292, %s14, 3
        %s294 = smul.addr %s293, 4
        %s295 = scalar_lea.vmem %s4, %s294
      $region48: #{run.33} parent=27 // pred_fallthru
        _
    $region28: #{run.33} parent=5 // pred_fallthru
      _
    %p296 = scmp.le.s32.totalorder 1, %s14
    %p297 = scmp.lt.s32.totalorder %s14, 5
    %p298 = pnand %p296, %p297
    %p299 = pneg %p298
    // Predicated region
    $region49: #{run.33} parent=5 // pred_check
      _
    $region50: #{run.33} parent=5 // pred_check_branch
      %301 = sbr.rel (%p298) target = $region52
    $region51: #{run.33} parent=5 // pred_region
      %s302 = ssub.s32 %s14, 1
      %p303 = scmp.lt.s32.totalorder %s19, 3
      %s304 = scalar_select %p303, %s19, 3
      %s305 = smul.addr %s304, 4
      %s306 = scalar_lea.vmem %s0, %s305
      %p307 = pneg %p40
      %p308 = pneg %p37
      %p309 = scmp.lt.s32.totalorder %s19, 3
      %s310 = scalar_select %p309, %s19, 3
      %s311 = smul.addr %s310, 4
      %s312 = scalar_lea.vmem %s1, %s311
      %p313 = pneg %p66
      %p314 = pneg %p63
      %p315 = scmp.lt.s32.totalorder %s19, 3
      %s316 = scalar_select %p315, %s19, 3
      %s317 = smul.addr %s316, 4
      %s318 = scalar_lea.vmem %s2, %s317
      %p319 = pneg %p92
      %p320 = pneg %p89
      %p321 = scmp.lt.s32.totalorder %s19, 3
      %s322 = scalar_select %p321, %s19, 3
      %s323 = smul.addr %s322, 4
      %s324 = scalar_lea.vmem %s3, %s323
      %p325 = pneg %p118
      %p326 = pneg %p115
      %p327 = scmp.lt.s32.totalorder %s19, 3
      %s328 = scalar_select %p327, %s19, 3
      %s329 = smul.addr %s328, 4
      %s330 = scalar_lea.vmem %s4, %s329
      %p331 = pneg %p144
      %p332 = pneg %p141
      %p333 = pneg %p165
      %p334 = pneg %p162
      %p335 = pneg %p186
      %p336 = pneg %p183
      %p337 = pneg %p207
      %p338 = pneg %p204
      %p339 = pneg %p233
      %p340 = pneg %p230
      %p341 = scmp.lt.s32.totalorder %s19, 3
      %s342 = scalar_select %p341, %s19, 3
      %s343 = smul.addr %s342, 4
      %s344 = scalar_lea.vmem %s8, %s343
      %p345 = scmp.lt.s32.totalorder %s19, 3
      %s346 = scalar_select %p345, %s19, 3
      %s347 = smul.addr %s346, 4
      %s348 = scalar_lea.vmem %s0, %s347
      %p349 = scmp.lt.s32.totalorder %s19, 3
      %s350 = scalar_select %p349, %s19, 3
      %s351 = smul.addr %s350, 4
      %s352 = scalar_lea.vmem %s1, %s351
      %p353 = scmp.lt.s32.totalorder %s19, 3
      %s354 = scalar_select %p353, %s19, 3
      %s355 = smul.addr %s354, 4
      %s356 = scalar_lea.vmem %s2, %s355
      %p357 = scmp.lt.s32.totalorder %s19, 3
      %s358 = scalar_select %p357, %s19, 3
      %s359 = smul.addr %s358, 4
      %s360 = scalar_lea.vmem %s3, %s359
      %p361 = scmp.lt.s32.totalorder %s19, 3
      %s362 = scalar_select %p361, %s19, 3
      %s363 = smul.addr %s362, 4
      %s364 = scalar_lea.vmem %s4, %s363
      %p365 = scmp.lt.s32.totalorder %s19, 3
      %s366 = scalar_select %p365, %s19, 3
      %s367 = smul.addr %s366, 4
      %s368 = scalar_lea.vmem %s8, %s367
      %v369 = vld [vmem:[%s348] sm:$0xf]
      %v370 = vld [vmem:[%s352] sm:$0xf]
      %v371 = vld [vmem:[%s7] sm:$0x1]
      %v373 = vperm.slane %v371, 0
      %v375 = vadd.f32 %v370, %v373
      %v376 = vmax.f32 %v375, 0.0
      %v377 = vand.u32 2147483647, %v375
      %v378 = vsub.f32 0.0, %v377
      %v379 = vmul.f32 %v378, 1.442695
      %v380 = vpow.pop %v379
      %v381 = vadd.f32 %v380, 1.0
      %v382 = vlog2.pop %v381
      %v383 = vmul.f32 %v382, 0.6931472
      %v384 = vadd.f32 %v376, %v383
      %385 = vst [vmem:[#allocation2] sm:$0xf] %v384
      %v386 = vmul.f32 %v384, %v369
      %387 = vst [vmem:[#allocation3] sm:$0xf] %v386
      %v388 = vld [vmem:[%s356] sm:$0xf]
      %389 = vxpose.xlu0.b32.start [1/16] %v388, 128
      %390 = vxpose.xlu0.b32.cont [2/16] 0.0, 128
      %391 = vxpose.xlu0.b32.cont [3/16] 0.0, 128
      %392 = vxpose.xlu0.b32.cont [4/16] 0.0, 128
      %393 = vxpose.xlu0.b32.cont [5/16] 0.0, 128
      %394 = vxpose.xlu0.b32.cont [6/16] 0.0, 128
      %395 = vxpose.xlu0.b32.cont [7/16] 0.0, 128
      %396 = vxpose.xlu0.b32.cont [8/16] 0.0, 128
      %397 = vxpose.xlu0.b32.cont [9/16] 0.0, 128
      %398 = vxpose.xlu0.b32.cont [10/16] 0.0, 128
      %399 = vxpose.xlu0.b32.cont [11/16] 0.0, 128
      %400 = vxpose.xlu0.b32.cont [12/16] 0.0, 128
      %401 = vxpose.xlu0.b32.cont [13/16] 0.0, 128
      %402 = vxpose.xlu0.b32.cont [14/16] 0.0, 128
      %403 = vxpose.xlu0.b32.cont [15/16] 0.0, 128
      %404 = vxpose.xlu0.b32.end [16/16] 0.0, 128
      %v405 = vpop.trf.xlu0
      %v406 = vpop.trf.xlu0
      %v407 = vpop.trf.xlu0
      %v408 = vpop.trf.xlu0
      %v409 = vpop.trf.xlu0
      %v410 = vpop.trf.xlu0
      %v411 = vpop.trf.xlu0
      %v412 = vpop.trf.xlu0
      %v413 = vpop.trf.xlu0
      %v414 = vpop.trf.xlu0
      %v415 = vpop.trf.xlu0
      %v416 = vpop.trf.xlu0
      %v417 = vpop.trf.xlu0
      %v418 = vpop.trf.xlu0
      %v419 = vpop.trf.xlu0
      %v420 = vpop.trf.xlu0
      %vm421 = vcmask 31744
      %422 = vst.msk [vmem:[#allocation4] sm:$0xff] %vm421, %v405
      %423 = vst.msk [vmem:[#allocation4 + $0x8] sm:$0xff] %vm421, %v406
      %v424 = vld [vmem:[%s5] sm:$0xff]
      %v425 = vld [vmem:[%s5 + $0x8] sm:$0xff]
      %v426 = vld [vmem:[#allocation2] sm:$0x1]
      %v427 = vld [vmem:[#allocation3] sm:$0x1]
      %v428 = vld [vmem:[#allocation4] sm:$0xff]
      %v429 = vld [vmem:[#allocation4 + $0x8] sm:$0xff]
      %v430 = vld [vmem:[%s360] sm:$0x1]
      %v431 = vperm.slane %v426, 0
      %v432 = vmul.f32 %v431, %v424
      %v433 = vmul.f32 %v431, %v425
      %v434 = vmul.f32 %v432, 1.442695
      %v435 = vpow.pop %v434
      %v436 = vmul.f32 %v433, 1.442695
      %v437 = vpow.pop %v436
      %v438 = vmul.f32 %v435, 0.0
      %v439 = vmul.f32 %v437, 0.0
      %441 = vset.pattern.permute.xlu0 0
      %442 = vperm.xlu0 %441, %v428
      %v443 = vpop.permute.xlu0 %442
      %446 = vset.pattern.permute.xlu0 0
      %447 = vperm.xlu0 %446, %v429
      %v448 = vpop.permute.xlu0 %447
      %v450 = vperm.slane %v427, 0
      %v451 = vmul.f32 %v443, %v450
      %v452 = vmul.f32 %v448, %v450
      %v453 = vadd.f32 %v438, %v451
      %v454 = vadd.f32 %v439, %v452
      %vm455 = vcmask 130048
      %v457 = vsel %vm455, %v430, 0
      %459 = vmatpush.msra.mxu0 0.0
      %460 = vmatpush.msra.mxu0 0.0
      %461 = vmatpush.msra.mxu0 0.0
      %462 = vmatpush.msra.mxu0 0.0
      %463 = vmatpush.msra.mxu0 0.0
      %464 = vmatpush.msra.mxu0 0.0
      %465 = vmatpush.msra.mxu0 0.0
      %466 = vmatpush.msra.mxu0 0.0
      %467 = vmatpush.msra.mxu0 0.0
      %468 = vmatpush.msra.mxu0 0.0
      %469 = vmatpush.msra.mxu0 0.0
      %470 = vmatpush.msra.mxu0 0.0
      %471 = vmatpush.msra.mxu0 0.0
      %472 = vmatpush.msra.mxu0 0.0
      %473 = vmatpush.msra.mxu0 %v454
      %474 = vmatpush.msra.mxu0 %v453
      %475 = vmatmul.f32.gmra.mxu0 %v457
      %v476 = vpop.f32.mrf.mxu0
      %v477 = vadd.f32 0.0, %v476
      %478 = vdwg.mxu0
      %479 = vst [vmem:[%s368] sm:$0x1] %v477
      %v480 = vld [vmem:[#allocation2 + $0x1] sm:$0x1]
      %v481 = vld [vmem:[#allocation3 + $0x1] sm:$0x1]
      %v482 = vld [vmem:[#allocation4] sm:$0xff]
      %v483 = vld [vmem:[#allocation4 + $0x8] sm:$0xff]
      %v484 = vld [vmem:[%s360 + $0x1] sm:$0x1]
      %v485 = vperm.slane %v480, 0
      %v486 = vmul.f32 %v485, %v424
      %v487 = vmul.f32 %v485, %v425
      %v488 = vmul.f32 %v486, 1.442695
      %v489 = vpow.pop %v488
      %v490 = vmul.f32 %v487, 1.442695
      %v491 = vpow.pop %v490
      %v492 = vmul.f32 %v489, %v453
      %v493 = vmul.f32 %v491, %v454
      %495 = vset.pattern.permute.xlu0 1
      %496 = vperm.xlu0 %495, %v482
      %v497 = vpop.permute.xlu0 %496
      %500 = vset.pattern.permute.xlu0 1
      %501 = vperm.xlu0 %500, %v483
      %v502 = vpop.permute.xlu0 %501
      %v504 = vperm.slane %v481, 0
      %v505 = vmul.f32 %v497, %v504
      %v506 = vmul.f32 %v502, %v504
      %v507 = vadd.f32 %v492, %v505
      %v508 = vadd.f32 %v493, %v506
      %v510 = vsel %vm455, %v484, 0
      %512 = vmatpush.msra.mxu0 0.0
      %513 = vmatpush.msra.mxu0 0.0
      %514 = vmatpush.msra.mxu0 0.0
      %515 = vmatpush.msra.mxu0 0.0
      %516 = vmatpush.msra.mxu0 0.0
      %517 = vmatpush.msra.mxu0 0.0
      %518 = vmatpush.msra.mxu0 0.0
      %519 = vmatpush.msra.mxu0 0.0
      %520 = vmatpush.msra.mxu0 0.0
      %521 = vmatpush.msra.mxu0 0.0
      %522 = vmatpush.msra.mxu0 0.0
      %523 = vmatpush.msra.mxu0 0.0
      %524 = vmatpush.msra.mxu0 0.0
      %525 = vmatpush.msra.mxu0 0.0
      %526 = vmatpush.msra.mxu0 %v508
      %527 = vmatpush.msra.mxu0 %v507
      %528 = vmatmul.f32.gmra.mxu0 %v510
      %v529 = vpop.f32.mrf.mxu0
      %v530 = vadd.f32 0.0, %v529
      %531 = vdwg.mxu0
      %532 = vst [vmem:[%s368 + $0x1] sm:$0x1] %v530
      %v533 = vld [vmem:[#allocation2 + $0x2] sm:$0x1]
      %v534 = vld [vmem:[#allocation3 + $0x2] sm:$0x1]
      %v535 = vld [vmem:[#allocation4] sm:$0xff]
      %v536 = vld [vmem:[#allocation4 + $0x8] sm:$0xff]
      %v537 = vld [vmem:[%s360 + $0x2] sm:$0x1]
      %v538 = vperm.slane %v533, 0
      %v539 = vmul.f32 %v538, %v424
      %v540 = vmul.f32 %v538, %v425
      %v541 = vmul.f32 %v539, 1.442695
      %v542 = vpow.pop %v541
      %v543 = vmul.f32 %v540, 1.442695
      %v544 = vpow.pop %v543
      %v545 = vmul.f32 %v542, %v507
      %v546 = vmul.f32 %v544, %v508
      %548 = vset.pattern.permute.xlu0 2
      %549 = vperm.xlu0 %548, %v535
      %v550 = vpop.permute.xlu0 %549
      %553 = vset.pattern.permute.xlu0 2
      %554 = vperm.xlu0 %553, %v536
      %v555 = vpop.permute.xlu0 %554
      %v557 = vperm.slane %v534, 0
      %v558 = vmul.f32 %v550, %v557
      %v559 = vmul.f32 %v555, %v557
      %v560 = vadd.f32 %v545, %v558
      %v561 = vadd.f32 %v546, %v559
      %v563 = vsel %vm455, %v537, 0
      %565 = vmatpush.msra.mxu0 0.0
      %566 = vmatpush.msra.mxu0 0.0
      %567 = vmatpush.msra.mxu0 0.0
      %568 = vmatpush.msra.mxu0 0.0
      %569 = vmatpush.msra.mxu0 0.0
      %570 = vmatpush.msra.mxu0 0.0
      %571 = vmatpush.msra.mxu0 0.0
      %572 = vmatpush.msra.mxu0 0.0
      %573 = vmatpush.msra.mxu0 0.0
      %574 = vmatpush.msra.mxu0 0.0
      %575 = vmatpush.msra.mxu0 0.0
      %576 = vmatpush.msra.mxu0 0.0
      %577 = vmatpush.msra.mxu0 0.0
      %578 = vmatpush.msra.mxu0 0.0
      %579 = vmatpush.msra.mxu0 %v561
      %580 = vmatpush.msra.mxu0 %v560
      %581 = vmatmul.f32.gmra.mxu0 %v563
      %v582 = vpop.f32.mrf.mxu0
      %v583 = vadd.f32 0.0, %v582
      %584 = vdwg.mxu0
      %585 = vst [vmem:[%s368 + $0x2] sm:$0x1] %v583
      %v586 = vld [vmem:[#allocation2 + $0x3] sm:$0x1]
      %v587 = vld [vmem:[#allocation3 + $0x3] sm:$0x1]
      %v588 = vld [vmem:[#allocation4] sm:$0xff]
      %v589 = vld [vmem:[#allocation4 + $0x8] sm:$0xff]
      %v590 = vld [vmem:[%s360 + $0x3] sm:$0x1]
      %v591 = vperm.slane %v586, 0
      %v592 = vmul.f32 %v591, %v424
      %v593 = vmul.f32 %v591, %v425
      %v594 = vmul.f32 %v592, 1.442695
      %v595 = vpow.pop %v594
      %v596 = vmul.f32 %v593, 1.442695
      %v597 = vpow.pop %v596
      %v598 = vmul.f32 %v595, %v560
      %v599 = vmul.f32 %v597, %v561
      %601 = vset.pattern.permute.xlu0 3
      %602 = vperm.xlu0 %601, %v588
      %v603 = vpop.permute.xlu0 %602
      %606 = vset.pattern.permute.xlu0 3
      %607 = vperm.xlu0 %606, %v589
      %v608 = vpop.permute.xlu0 %607
      %v610 = vperm.slane %v587, 0
      %v611 = vmul.f32 %v603, %v610
      %v612 = vmul.f32 %v608, %v610
      %v613 = vadd.f32 %v598, %v611
      %v614 = vadd.f32 %v599, %v612
      %v616 = vsel %vm455, %v590, 0
      %618 = vmatpush.msra.mxu0 0.0
      %619 = vmatpush.msra.mxu0 0.0
      %620 = vmatpush.msra.mxu0 0.0
      %621 = vmatpush.msra.mxu0 0.0
      %622 = vmatpush.msra.mxu0 0.0
      %623 = vmatpush.msra.mxu0 0.0
      %624 = vmatpush.msra.mxu0 0.0
      %625 = vmatpush.msra.mxu0 0.0
      %626 = vmatpush.msra.mxu0 0.0
      %627 = vmatpush.msra.mxu0 0.0
      %628 = vmatpush.msra.mxu0 0.0
      %629 = vmatpush.msra.mxu0 0.0
      %630 = vmatpush.msra.mxu0 0.0
      %631 = vmatpush.msra.mxu0 0.0
      %632 = vmatpush.msra.mxu0 %v614
      %633 = vmatpush.msra.mxu0 %v613
      %634 = vmatmul.f32.gmra.mxu0 %v616
      %v635 = vpop.f32.mrf.mxu0
      %v636 = vadd.f32 0.0, %v635
      %637 = vdwg.mxu0
      %638 = vst [vmem:[%s368 + $0x3] sm:$0x1] %v636
      %v639 = vld [vmem:[%s364] sm:$0xf]
      %v640 = vsub.f32 0.0, %v639
      %v641 = vmul.f32 %v640, 1.442695
      %v642 = vpow.pop %v641
      %v643 = vadd.f32 %v642, 1.0
      %v644 = vrcp.pop %v643
      %v645 = vmul.f32 %v643, %v644
      %v646 = vsub.f32 1.0, %v645
      %v647 = vmul.f32 %v644, %v646
      %v648 = vadd.f32 %v644, %v647
      %vm649 = vweird.f32 %v643
      %vm650 = vweird.f32 %v644
      %vm651 = vmor %vm649, %vm650
      %v652 = vsel %vm651, %v644, %v648
      %v653 = vand.u32 2147483647, %v643
      %vm654 = vcmp.eq.f32.partialorder %v653, 8.507059e+37
      %v655 = vand.u32 %v643, 2147483648
      %v656 = vor.u32 1.1754944e-38, %v655
      %v657 = vsel %vm654, %v656, %v652
      %v658 = vmul.f32 1.0, %v657
      %v659 = vmul.f32 %v639, %v658
      %v660 = vld [vmem:[%s368] sm:$0xf]
      %v661 = vld [vmem:[%s6] sm:$0x1]
      %v663 = vperm.slane %v661, 0
      %v665 = vmul.f32 %v663, %v369
      %v666 = vadd.f32 %v660, %v665
      %v667 = vmul.f32 %v666, %v659
      %668 = vst [vmem:[%s368] sm:$0xf] %v667
      %p669 = scmp.lt.s32.totalorder %s19, 3
      %s670 = scalar_select %p669, %s19, 3
      %s671 = smul.addr %s670, 4
      %s672 = scalar_lea.vmem %s8, %s671
      // Predicated region
      $region53: #{run.33} parent=51 // pred_check
        %p673 = pneg %p230
      $region54: #{run.33} parent=51 // pred_check_branch
        %675 = sbr.rel (%p673) target = $region56
      $region55: #{run.33} parent=51 // pred_region
        _
      $region56: #{run.33} parent=51 // pred_fallthru
        _
    $region52: #{run.33} parent=5 // pred_fallthru
      _
    %p676 = scmp.le.s32.totalorder 2, %s14
    // Predicated region
    $region57: #{run.33} parent=5 // pred_check
      %p677 = pneg %p676
    $region58: #{run.33} parent=5 // pred_check_branch
      %679 = sbr.rel (%p677) target = $region60
    $region59: #{run.33} parent=5 // pred_region
      %s680 = ssub.s32 %s14, 2
      // Predicated region
      $region61: #{run.33} parent=59 // pred_check
        %p681 = pneg %p236
      $region62: #{run.33} parent=59 // pred_check_branch
        %683 = sbr.rel (%p681) target = $region64
      $region63: #{run.33} parent=59 // pred_region
        %p684 = scmp.lt.s32.totalorder %s20, 3
        %s685 = scalar_select %p684, %s20, 3
        %s686 = smul.addr %s685, 4
        %s687 = scalar_lea.vmem %s8, %s686
      $region64: #{run.33} parent=59 // pred_fallthru
        _
    $region60: #{run.33} parent=5 // pred_fallthru
      _
  $region6: #{run.33} parent=0 // loop_footer
    %s18 = sadd.s32 1, %s14
  $region7: #{run.33} parent=0 // loop_footer_branch
    %13 = sbr.rel target = $region3
  $region8: #{run.33} parent=0 // loop_exit
    _

// kernel: run.37
$region0: #{run.37}
  #allocation0 [shape = 'u32[]', space=smem, size = 0x4, offset = 0x4, fixed_abs, tag = 'smem constant byte address 0x4 - core index']
  #allocation1 [shape = 'u32[72,128]{1,0:T(1,128)}', space=vmem, size = 0x9000, scoped, tag = 'internal scratch']
  %s0 = inlined_call_operand.vmem [shape: bf16[2,64], index: 0, kind: input, shape index: {}]
  %s1 = inlined_call_operand.vmem [shape: bf16[64,10], index: 1, kind: input, shape index: {}]
  %s2 = inlined_call_operand.vmem [shape: f32[1,10], index: 2, kind: input, shape index: {}]
  %s3 = inlined_call_operand.hbm [shape: f32[2,10], index: 3, kind: output, shape index: {}]
  %s4 = sld [smem:[#allocation0]]
  $region22: #{run.37} parent=0
    _
  %s6 = ssub.s32 1, %s4
  %s7 = scalar_select 0, %s6, %s4
  $region1: #{run.37} parent=0
    #allocation2 [shape = 'u8[1024]{0}', space=vmem, size = 0x400, scoped, tag = 'output window, operand 0, single buffered']
    #allocation3 [shape = 's32[1]{0}', space=sflag, size = 0x4, scoped, tag = 'scoped memory for run.37']
    %8 = vsyncpa [#allocation3], 0
    // Predicated region
    $region2: #{run.37} parent=1 // pred_check
      _
    $region3: #{run.37} parent=1 // pred_check_branch
      %10 = sbr.rel (0) target = $region5
    $region4: #{run.37} parent=1 // pred_region
      _
    $region5: #{run.37} parent=1 // pred_fallthru
      _
    // Predicated region
    $region6: #{run.37} parent=1 // pred_check
      _
    $region7: #{run.37} parent=1 // pred_check_branch
      %12 = sbr.rel (0) target = $region9
    $region8: #{run.37} parent=1 // pred_region
      _
    $region9: #{run.37} parent=1 // pred_fallthru
      _
    // Predicated region
    $region10: #{run.37} parent=1 // pred_check
      _
    $region11: #{run.37} parent=1 // pred_check_branch
      %14 = sbr.rel (0) target = $region13
    $region12: #{run.37} parent=1 // pred_region
      _
    $region13: #{run.37} parent=1 // pred_fallthru
      _
    %v16 = vld [vmem:[%s0] sm:$0x1]
    %v17 = vld [vmem:[%s1] sm:$0xf]
    %v18 = vld [vmem:[%s1 + $0x4] sm:$0xf]
    %v19 = vld [vmem:[%s1 + $0x8] sm:$0xf]
    %v20 = vld [vmem:[%s1 + $0xc] sm:$0xf]
    %v21 = vld [vmem:[%s1 + $0x10] sm:$0xf]
    %v22 = vld [vmem:[%s1 + $0x14] sm:$0xf]
    %v23 = vld [vmem:[%s1 + $0x18] sm:$0xf]
    %v24 = vld [vmem:[%s1 + $0x1c] sm:$0xf]
    %v25 = vld [vmem:[%s2] sm:$0x1]
    %v27 = vperm.slane %v25, 0
    %v37 = vunpack.c.l.b16 %v17
    %v38 = vunpack.c.l.b16 %v18
    %v39 = vunpack.c.l.b16 %v19
    %v40 = vunpack.c.l.b16 %v20
    %v41 = vunpack.c.l.b16 %v21
    %v42 = vunpack.c.l.b16 %v22
    %v43 = vunpack.c.l.b16 %v23
    %v44 = vunpack.c.l.b16 %v24
    %v45 = vpack.c.b16 %v38, %v37
    %v46 = vpack.c.b16 %v40, %v39
    %v47 = vpack.c.b16 %v42, %v41
    %v48 = vpack.c.b16 %v44, %v43
    %vm53 = vcmask 523264
    %v55 = vsel %vm53, %v16, 0
    %57 = vmatpush.bf16.msra.mxu0 0
    %58 = vmatpush.bf16.msra.mxu0 0
    %59 = vmatpush.bf16.msra.mxu0 0
    %60 = vmatpush.bf16.msra.mxu0 0
    %61 = vmatpush.bf16.msra.mxu0 %v48
    %62 = vmatpush.bf16.msra.mxu0 %v47
    %63 = vmatpush.bf16.msra.mxu0 %v46
    %64 = vmatpush.bf16.msra.mxu0 %v45
    %65 = vmatmul.bf16.gmra.mxu0 %v55
    %v66 = vpop.f32.mrf.mxu0
    %v67 = vadd.f32 %v27, %v66
    %v68 = vpop.f32.mrf.mxu0
    %69 = vdwg.mxu0
    %vm70 = vcmask 74752
    %71 = vst.msk [vmem:[#allocation2] sm:$0x3] %vm70, %v67
    // Predicated region
    $region14: #{run.37} parent=1 // pred_check
      _
    $region15: #{run.37} parent=1 // pred_check_branch
      %73 = sbr.rel (0) target = $region17
    $region16: #{run.37} parent=1 // pred_region
      %75 = vsyncadd [#allocation3], 0
      %s77 = sshll.u32 [#allocation2], 4
      %s78 = int_to_ptr.vmem [resolvable:$true] %s77
      %s79 = sshll.u32 %s3, 4
      %s80 = int_to_ptr.hbm [resolvable:$true] %s79
      %82 = dma.vmem_to_hbm [thread:$0]  %s78, 32, %s80, [#allocation3]
    $region17: #{run.37} parent=1 // pred_fallthru
      _
    // Predicated region
    $region18: #{run.37} parent=1 // pred_check
      _
    $region19: #{run.37} parent=1 // pred_check_branch
      %84 = sbr.rel (0) target = $region21
    $region20: #{run.37} parent=1 // pred_region
      %86 = dma.done [#allocation3], 32
    $region21: #{run.37} parent=1 // pred_fallthru
      _
    %87 = vsyncpa [#allocation3], 1

</llo_original>
